<compile_context>
chip_gen: v6e
topology: v6e:2x2x1
jax: 0.10.0
libtpu: 0.0.40
codegen_flags: <defaults>
</compile_context>

<pallas_src>
import functools

import jax
import jax.numpy as jnp
from jax import lax
from jax.experimental import pallas as pl
from jax.experimental.pallas import tpu as pltpu


def _mm(a, b, dtype):
    """MXU matmul with optional low-precision operands, f32 accumulation."""
    return jnp.dot(a.astype(dtype), b.astype(dtype),
                   preferred_element_type=jnp.float32)


# ---------------------------------------------------------------------------
# Kernel 1: fused Q/K/V projection (per node tile), head-major outputs.
#   grid = (node_tiles,) "parallel"
# ---------------------------------------------------------------------------
def _proj_kernel(s_ref, v_ref, wqk_s_ref, wqk_v_ref, bqk_ref, wv_ref, bv_ref,
                 q_out_ref, k_out_ref, v_out_ref,
                 *, n_heads, head_dim, node_dim, matmul_dtype):
    s = s_ref[...]                                         # [T1, ds]
    v3 = v_ref[...]                                        # [3, T1, dv]
    vnorm = jnp.sqrt(v3[0] ** 2 + v3[1] ** 2 + v3[2] ** 2)  # [T1, dv]

    # combined = [s || vnorm]; Q and K fused into one wide matmul pair.
    qk = (_mm(s, wqk_s_ref[...], matmul_dtype)
          + _mm(vnorm, wqk_v_ref[...], matmul_dtype)
          + bqk_ref[...])                                  # [T1, 2*H*C] f32
    vv = _mm(s, wv_ref[...], matmul_dtype) + bv_ref[...]   # [T1, H*ds]  f32

    H, C, ds = n_heads, head_dim, node_dim
    for h in range(H):                                     # head-major stores
        q_out_ref[h] = qk[:, h * C:(h + 1) * C].astype(q_out_ref.dtype)
        k_out_ref[h] = qk[:, H * C + h * C:
                          H * C + (h + 1) * C].astype(k_out_ref.dtype)
        v_out_ref[h] = vv[:, h * ds:(h + 1) * ds].astype(v_out_ref.dtype)


# ---------------------------------------------------------------------------
# Kernel 2: multi-head attention + head-mean + output projection.
#   grid = (query_tiles,) "parallel"; K/V all-heads VMEM-resident; head loop
#   unrolled in-kernel; accumulator kept in registers.
# ---------------------------------------------------------------------------
def _attn_kernel(*refs, n_heads, matmul_dtype, masked):
    if masked:
        q_ref, k_ref, v_ref, kmask_ref, wo_ref, bo_ref, out_ref = refs
    else:
        q_ref, k_ref, v_ref, wo_ref, bo_ref, out_ref = refs

    T = q_ref.shape[1]
    ds = v_ref.shape[2]
    acc = jnp.zeros((T, ds), jnp.float32)

    for h in range(n_heads):                               # unrolled
        # score scale already folded into W_Q / b_Q in the wrapper.
        scores = lax.dot_general(
            q_ref[h].astype(matmul_dtype), k_ref[h].astype(matmul_dtype),
            (((1,), (1,)), ((), ())),
            preferred_element_type=jnp.float32)            # [T, Np]
        if masked:
            scores = scores + kmask_ref[...]               # mask padded keys
        m = jnp.max(scores, axis=-1, keepdims=True)
        p = jnp.exp(scores - m)
        l = jnp.sum(p, axis=-1, keepdims=True)
        if matmul_dtype == jnp.float32:
            p = p / l                                      # exact (validation)
        else:
            p = p * pl.reciprocal(l, approx=True)          # EUP slot (perf)
        acc = acc + _mm(p, v_ref[h], matmul_dtype)         # [T, ds]

    mean_h = acc * (1.0 / n_heads)
    out_ref[...] = (_mm(mean_h, wo_ref[...], matmul_dtype)
                    + bo_ref[...]).astype(out_ref.dtype)


# ---------------------------------------------------------------------------
# Wrapper
# ---------------------------------------------------------------------------
def graph_attention_layer(params, node_s, node_v, *, n_heads=4, concat=False,
                          block_nodes=128, matmul_dtype=jnp.float32):
    """Eval-mode forward of GraphAttentionLayer. Returns (s_out, node_v)."""
    assert not concat        # TODO(synk): concat=True path
    N, ds = node_s.shape
    dv = node_v.shape[1]
    assert dv > 0            # TODO(synk): vector_h_dim == 0 path
    C = ds + dv              # combined_dim == head_dim
    H = n_heads
    scale = float(C) ** -0.5

    T2 = int(block_nodes)    # kernel-2 query tile
    assert T2 % 8 == 0
    Np = ((N + T2 - 1) // T2) * T2
    pad = Np - N
    masked = pad > 0

    # Kernel-1 node tile: larger than T2 (per-step work is tiny) but still a
    # divisor of Np so both grids tile cleanly.
    ntiles = Np // T2
    m_best = 1
    for m in range(1, min(ntiles, max(1, 1024 // T2)) + 1):
        if ntiles % m == 0:
            m_best = m
    T1 = m_best * T2

    s_p = jnp.pad(node_s.astype(jnp.float32), ((0, pad), (0, 0)))
    v3_p = jnp.pad(jnp.transpose(node_v.astype(jnp.float32), (2, 0, 1)),
                   ((0, 0), (0, pad), (0, 0)))             # [3, Np, dv]

    # Fold the 1/sqrt(C) score scale into W_Q / b_Q (in f32, before any cast).
    w_q = params["w_q"] * scale
    b_q = params["b_q"] * scale
    # Fuse Q and K projections into one wide matmul; pre-split into
    # scalar-feature rows and vector-norm rows (no in-kernel concat).
    wqk_s = jnp.concatenate([w_q[:ds], params["w_k"][:ds]], axis=1)  # [ds,2HC]
    wqk_v = jnp.concatenate([w_q[ds:], params["w_k"][ds:]], axis=1)  # [dv,2HC]
    bqk = jnp.concatenate([b_q, params["b_k"]], axis=1)              # [1, 2HC]

    # bf16 intermediates on the perf path: halves Q/K/V HBM traffic and K/V
    # VMEM residency in kernel 2.
    qkv_dtype = matmul_dtype if matmul_dtype != jnp.float32 else jnp.float32

    const2 = lambda i: (0, 0)          # VMEM-resident weights (constant block)

    # ---- Kernel 1: Q/K/V projection, tiled over nodes, head-major out ------
    q_h, k_h, v_h = pl.pallas_call(
        functools.partial(_proj_kernel, n_heads=H, head_dim=C, node_dim=ds,
                          matmul_dtype=matmul_dtype),
        grid=(Np // T1,),
        in_specs=[
            pl.BlockSpec((T1, ds), lambda i: (i, 0)),
            pl.BlockSpec((3, T1, dv), lambda i: (0, i, 0)),
            pl.BlockSpec((ds, 2 * H * C), const2),
            pl.BlockSpec((dv, 2 * H * C), const2),
            pl.BlockSpec((1, 2 * H * C), const2),
            pl.BlockSpec((ds, H * ds), const2),
            pl.BlockSpec((1, H * ds), const2),
        ],
        out_specs=(
            pl.BlockSpec((H, T1, C), lambda i: (0, i, 0)),
            pl.BlockSpec((H, T1, C), lambda i: (0, i, 0)),
            pl.BlockSpec((H, T1, ds), lambda i: (0, i, 0)),
        ),
        out_shape=(
            jax.ShapeDtypeStruct((H, Np, C), qkv_dtype),
            jax.ShapeDtypeStruct((H, Np, C), qkv_dtype),
            jax.ShapeDtypeStruct((H, Np, ds), qkv_dtype),
        ),
        compiler_params=pltpu.CompilerParams(
            dimension_semantics=("parallel",)),
    )(s_p, v3_p, wqk_s, wqk_v, bqk, params["w_v"], params["b_v"])

    # ---- Kernel 2: attention + head mean + W_O ------------------------------
    in_specs = [
        pl.BlockSpec((H, T2, C), lambda qi: (0, qi, 0)),     # Q tile (per step)
        pl.BlockSpec((H, Np, C), lambda qi: (0, 0, 0)),      # K resident
        pl.BlockSpec((H, Np, ds), lambda qi: (0, 0, 0)),     # V resident
    ]
    args = [q_h, k_h, v_h]
    if masked:
        kmask = jnp.where(jnp.arange(Np) < N, 0.0,
                          -1e30).astype(jnp.float32)[None]   # [1, Np]
        in_specs.append(pl.BlockSpec((1, Np), lambda qi: (0, 0)))
        args.append(kmask)
    in_specs += [
        pl.BlockSpec((ds, ds), lambda qi: (0, 0)),
        pl.BlockSpec((1, ds), lambda qi: (0, 0)),
    ]
    args += [params["w_o"], params["b_o"]]

    s_out_p = pl.pallas_call(
        functools.partial(_attn_kernel, n_heads=H, matmul_dtype=matmul_dtype,
                          masked=masked),
        grid=(Np // T2,),
        in_specs=in_specs,
        out_specs=pl.BlockSpec((T2, ds), lambda qi: (qi, 0)),
        out_shape=jax.ShapeDtypeStruct((Np, ds), jnp.float32),
        compiler_params=pltpu.CompilerParams(
            dimension_semantics=("parallel",)),
    )(*args)

    return s_out_p[:N], node_v


# ---------------------------------------------------------------------------
# Deterministic parameter init (weights stored as [in, out], i.e. W.T of the
# corresponding torch.nn.Linear; biases as [1, out]).
# ---------------------------------------------------------------------------
def init_params(key, ds, dv, n_heads):
    C = ds + dv
    ks = jax.random.split(key, 8)

    def lin(kw, kb, fan_in, fan_out):
        bound = float(fan_in) ** -0.5
        w = jax.random.uniform(kw, (fan_in, fan_out), jnp.float32, -bound, bound)
        b = jax.random.uniform(kb, (1, fan_out), jnp.float32, -bound, bound)
        return w, b

    p = {}
    p["w_q"], p["b_q"] = lin(ks[0], ks[1], C, n_heads * C)
    p["w_k"], p["b_k"] = lin(ks[2], ks[3], C, n_heads * C)
    p["w_v"], p["b_v"] = lin(ks[4], ks[5], ds, n_heads * ds)
    p["w_o"], p["b_o"] = lin(ks[6], ks[7], ds, ds)
    return p


# ---------------------------------------------------------------------------
# Pure-JAX reference mirroring the PyTorch module (eval mode, mask=None,
# concat=False).
# ---------------------------------------------------------------------------
def ref_forward(params, node_s, node_v, *, n_heads=4):
    N, ds = node_s.shape
    dv = node_v.shape[1]
    C = ds + dv
    H = n_heads
    vnorm = jnp.sqrt(jnp.sum(node_v ** 2, axis=2))
    comb = jnp.concatenate([node_s, vnorm], axis=1)
    Q = (comb @ params["w_q"] + params["b_q"]).reshape(N, H, C).transpose(1, 0, 2)
    K = (comb @ params["w_k"] + params["b_k"]).reshape(N, H, C).transpose(1, 0, 2)
    V = (node_s @ params["w_v"] + params["b_v"]).reshape(N, H, ds).transpose(1, 0, 2)
    scores = jnp.einsum("hqc,hkc->hqk", Q, K) * (float(C) ** -0.5)
    attn = jax.nn.softmax(scores, axis=-1)
    hp = jnp.einsum("hqk,hkd->hqd", attn, V).transpose(1, 0, 2).mean(axis=1)
    s_out = hp @ params["w_o"] + params["b_o"]
    return s_out, node_v


# ---------------------------------------------------------------------------
if __name__ == "__main__":
    ds, dv, H = 16, 4, 4                  # scalar dim, vector dim, heads

    key = jax.random.PRNGKey(0)
    k1, k2, kp = jax.random.split(key, 3)
    params = init_params(kp, ds, dv, H)

    fwd = jax.jit(functools.partial(
        graph_attention_layer, n_heads=H, block_nodes=32))

    # Case 1: N not a multiple of the tile -> padded-key mask path.
    N = 60
    node_s = jax.random.normal(k1, (N, ds), jnp.float32)
    node_v = jax.random.normal(k2, (N, dv, 3), jnp.float32)
    out_s, out_v = fwd(params, node_s, node_v)
    jax.block_until_ready((out_s, out_v))
    ref_s, ref_v = ref_forward(params, node_s, node_v, n_heads=H)
    assert out_s.shape == (N, ds) and out_v.shape == (N, dv, 3)
    assert jnp.allclose(out_s, ref_s, atol=1e-4, rtol=1e-4), \
        float(jnp.max(jnp.abs(out_s - ref_s)))
    assert jnp.allclose(out_v, ref_v)

    # Case 2: N a multiple of the tile -> unmasked fast path.
    N2 = 64
    node_s2 = jax.random.normal(k1, (N2, ds), jnp.float32)
    node_v2 = jax.random.normal(k2, (N2, dv, 3), jnp.float32)
    out_s2, _ = fwd(params, node_s2, node_v2)
    jax.block_until_ready(out_s2)
    ref_s2, _ = ref_forward(params, node_s2, node_v2, n_heads=H)
    assert jnp.allclose(out_s2, ref_s2, atol=1e-4, rtol=1e-4), \
        float(jnp.max(jnp.abs(out_s2 - ref_s2)))

    # bf16-MXU perf path (recommended on v6e/v7x): run + loose sanity only.
    fwd_bf16 = jax.jit(functools.partial(
        graph_attention_layer, n_heads=H, block_nodes=32,
        matmul_dtype=jnp.bfloat16))
    bf_s, _ = fwd_bf16(params, node_s2, node_v2)
    jax.block_until_ready(bf_s)
    assert jnp.all(jnp.isfinite(bf_s))
    assert float(jnp.max(jnp.abs(bf_s - ref_s2))) < 0.1

    print("KERNEL_OK")
</pallas_src>

<mosaic_0001>
module attributes {stable_mosaic.version = 11 : i64} {
  func.func @_proj_kernel(%arg0: i32, %arg1: memref<64x16xf32, #tpu.memory_space<vmem>>, %arg2: memref<3x64x4xf32, #tpu.memory_space<vmem>>, %arg3: memref<16x160xf32, #tpu.memory_space<vmem>>, %arg4: memref<4x160xf32, #tpu.memory_space<vmem>>, %arg5: memref<1x160xf32, #tpu.memory_space<vmem>>, %arg6: memref<16x64xf32, #tpu.memory_space<vmem>>, %arg7: memref<1x64xf32, #tpu.memory_space<vmem>>, %arg8: memref<4x64x20xf32, #tpu.memory_space<vmem>>, %arg9: memref<4x64x20xf32, #tpu.memory_space<vmem>>, %arg10: memref<4x64x16xf32, #tpu.memory_space<vmem>>) attributes {dimension_semantics = [#tpu.dimension_semantics<parallel>], iteration_bounds = array<i64: 1>, scalar_prefetch = 0 : i64, scratch_operands = 0 : i64, tpu.core_type = #tpu.core_type<tc>, window_params = [{transform_indices = @transform_0, window_bounds = array<i64: 64, 16>}, {transform_indices = @transform_1, window_bounds = array<i64: 3, 64, 4>}, {pipeline_mode = #tpu.pipeline_mode<synchronous>, transform_indices = @transform_2, window_bounds = array<i64: 16, 160>}, {pipeline_mode = #tpu.pipeline_mode<synchronous>, transform_indices = @transform_3, window_bounds = array<i64: 4, 160>}, {pipeline_mode = #tpu.pipeline_mode<synchronous>, transform_indices = @transform_4, window_bounds = array<i64: 1, 160>}, {pipeline_mode = #tpu.pipeline_mode<synchronous>, transform_indices = @transform_5, window_bounds = array<i64: 16, 64>}, {pipeline_mode = #tpu.pipeline_mode<synchronous>, transform_indices = @transform_6, window_bounds = array<i64: 1, 64>}, {transform_indices = @transform_7, window_bounds = array<i64: 4, 64, 20>}, {transform_indices = @transform_8, window_bounds = array<i64: 4, 64, 20>}, {transform_indices = @transform_9, window_bounds = array<i64: 4, 64, 16>}]} {
    %c0 = arith.constant 0 : index
    %c0_0 = arith.constant 0 : index
    %0 = vector.load %arg1[%c0, %c0_0] : memref<64x16xf32, #tpu.memory_space<vmem>>, vector<64x16xf32>
    %c0_1 = arith.constant 0 : index
    %c0_2 = arith.constant 0 : index
    %c0_3 = arith.constant 0 : index
    %1 = vector.load %arg2[%c0_1, %c0_2, %c0_3] : memref<3x64x4xf32, #tpu.memory_space<vmem>>, vector<3x64x4xf32>
    %2 = vector.extract_strided_slice %1 {offsets = [0, 0, 0], sizes = [1, 64, 4], strides = [1, 1, 1]} : vector<3x64x4xf32> to vector<1x64x4xf32>
    %3 = vector.shape_cast %2 : vector<1x64x4xf32> to vector<64x4xf32>
    %4 = arith.mulf %3, %3 : vector<64x4xf32>
    %5 = vector.extract_strided_slice %1 {offsets = [1, 0, 0], sizes = [1, 64, 4], strides = [1, 1, 1]} : vector<3x64x4xf32> to vector<1x64x4xf32>
    %6 = vector.shape_cast %5 : vector<1x64x4xf32> to vector<64x4xf32>
    %7 = arith.mulf %6, %6 : vector<64x4xf32>
    %8 = arith.addf %4, %7 : vector<64x4xf32>
    %9 = vector.extract_strided_slice %1 {offsets = [2, 0, 0], sizes = [1, 64, 4], strides = [1, 1, 1]} : vector<3x64x4xf32> to vector<1x64x4xf32>
    %10 = vector.shape_cast %9 : vector<1x64x4xf32> to vector<64x4xf32>
    %11 = arith.mulf %10, %10 : vector<64x4xf32>
    %12 = arith.addf %8, %11 : vector<64x4xf32>
    %13 = math.sqrt %12 : vector<64x4xf32>
    %c0_4 = arith.constant 0 : index
    %c0_5 = arith.constant 0 : index
    %14 = vector.load %arg3[%c0_4, %c0_5] : memref<16x160xf32, #tpu.memory_space<vmem>>, vector<16x160xf32>
    %cst = arith.constant dense<0.000000e+00> : vector<64x160xf32>
    %15 = tpu.matmul %0, %14, %cst {dimension_numbers = #tpu.dot_dimension_numbers<[1], [0], [0], [1], [0, 0, 1, 1], [], []>} : vector<64x16xf32>, vector<16x160xf32>, vector<64x160xf32> -> vector<64x160xf32>
    %c0_6 = arith.constant 0 : index
    %c0_7 = arith.constant 0 : index
    %16 = vector.load %arg4[%c0_6, %c0_7] : memref<4x160xf32, #tpu.memory_space<vmem>>, vector<4x160xf32>
    %cst_8 = arith.constant dense<0.000000e+00> : vector<64x160xf32>
    %17 = tpu.matmul %13, %16, %cst_8 {dimension_numbers = #tpu.dot_dimension_numbers<[1], [0], [0], [1], [0, 0, 1, 1], [], []>} : vector<64x4xf32>, vector<4x160xf32>, vector<64x160xf32> -> vector<64x160xf32>
    %18 = arith.addf %15, %17 : vector<64x160xf32>
    %c0_9 = arith.constant 0 : index
    %c0_10 = arith.constant 0 : index
    %19 = vector.load %arg5[%c0_9, %c0_10] : memref<1x160xf32, #tpu.memory_space<vmem>>, vector<1x160xf32>
    %20 = vector.broadcast %19 : vector<1x160xf32> to vector<64x160xf32>
    %21 = arith.addf %18, %20 : vector<64x160xf32>
    %c0_11 = arith.constant 0 : index
    %c0_12 = arith.constant 0 : index
    %22 = vector.load %arg6[%c0_11, %c0_12] : memref<16x64xf32, #tpu.memory_space<vmem>>, vector<16x64xf32>
    %cst_13 = arith.constant dense<0.000000e+00> : vector<64x64xf32>
    %23 = tpu.matmul %0, %22, %cst_13 {dimension_numbers = #tpu.dot_dimension_numbers<[1], [0], [0], [1], [0, 0, 1, 1], [], []>} : vector<64x16xf32>, vector<16x64xf32>, vector<64x64xf32> -> vector<64x64xf32>
    %c0_14 = arith.constant 0 : index
    %c0_15 = arith.constant 0 : index
    %24 = vector.load %arg7[%c0_14, %c0_15] : memref<1x64xf32, #tpu.memory_space<vmem>>, vector<1x64xf32>
    %25 = vector.broadcast %24 : vector<1x64xf32> to vector<64x64xf32>
    %26 = arith.addf %23, %25 : vector<64x64xf32>
    %27 = vector.extract_strided_slice %21 {offsets = [0, 0], sizes = [64, 20], strides = [1, 1]} : vector<64x160xf32> to vector<64x20xf32>
    %c0_16 = arith.constant 0 : index
    %c0_17 = arith.constant 0 : index
    %c0_18 = arith.constant 0 : index
    %28 = vector.load %arg8[%c0_16, %c0_17, %c0_18] : memref<4x64x20xf32, #tpu.memory_space<vmem>>, vector<1x64x20xf32>
    %29 = vector.shape_cast %28 : vector<1x64x20xf32> to vector<64x20xf32>
    %30 = vector.shape_cast %27 : vector<64x20xf32> to vector<1x64x20xf32>
    tpu.vector_store %arg8[%c0_16, %c0_17, %c0_18], %30 {strides = array<i32>} : memref<4x64x20xf32, #tpu.memory_space<vmem>>, vector<1x64x20xf32>,
    %31 = vector.extract_strided_slice %21 {offsets = [0, 80], sizes = [64, 20], strides = [1, 1]} : vector<64x160xf32> to vector<64x20xf32>
    %c0_19 = arith.constant 0 : index
    %c0_20 = arith.constant 0 : index
    %c0_21 = arith.constant 0 : index
    %32 = vector.load %arg9[%c0_19, %c0_20, %c0_21] : memref<4x64x20xf32, #tpu.memory_space<vmem>>, vector<1x64x20xf32>
    %33 = vector.shape_cast %32 : vector<1x64x20xf32> to vector<64x20xf32>
    %34 = vector.shape_cast %31 : vector<64x20xf32> to vector<1x64x20xf32>
    tpu.vector_store %arg9[%c0_19, %c0_20, %c0_21], %34 {strides = array<i32>} : memref<4x64x20xf32, #tpu.memory_space<vmem>>, vector<1x64x20xf32>,
    %35 = vector.extract_strided_slice %26 {offsets = [0, 0], sizes = [64, 16], strides = [1, 1]} : vector<64x64xf32> to vector<64x16xf32>
    %c0_22 = arith.constant 0 : index
    %c0_23 = arith.constant 0 : index
    %c0_24 = arith.constant 0 : index
    %36 = vector.load %arg10[%c0_22, %c0_23, %c0_24] : memref<4x64x16xf32, #tpu.memory_space<vmem>>, vector<1x64x16xf32>
    %37 = vector.shape_cast %36 : vector<1x64x16xf32> to vector<64x16xf32>
    %38 = vector.shape_cast %35 : vector<64x16xf32> to vector<1x64x16xf32>
    tpu.vector_store %arg10[%c0_22, %c0_23, %c0_24], %38 {strides = array<i32>} : memref<4x64x16xf32, #tpu.memory_space<vmem>>, vector<1x64x16xf32>,
    %39 = vector.extract_strided_slice %21 {offsets = [0, 20], sizes = [64, 20], strides = [1, 1]} : vector<64x160xf32> to vector<64x20xf32>
    %c1 = arith.constant 1 : index
    %c0_25 = arith.constant 0 : index
    %c0_26 = arith.constant 0 : index
    %40 = vector.load %arg8[%c1, %c0_25, %c0_26] : memref<4x64x20xf32, #tpu.memory_space<vmem>>, vector<1x64x20xf32>
    %41 = vector.shape_cast %40 : vector<1x64x20xf32> to vector<64x20xf32>
    %42 = vector.shape_cast %39 : vector<64x20xf32> to vector<1x64x20xf32>
    tpu.vector_store %arg8[%c1, %c0_25, %c0_26], %42 {strides = array<i32>} : memref<4x64x20xf32, #tpu.memory_space<vmem>>, vector<1x64x20xf32>,
    %43 = vector.extract_strided_slice %21 {offsets = [0, 100], sizes = [64, 20], strides = [1, 1]} : vector<64x160xf32> to vector<64x20xf32>
    %c1_27 = arith.constant 1 : index
    %c0_28 = arith.constant 0 : index
    %c0_29 = arith.constant 0 : index
    %44 = vector.load %arg9[%c1_27, %c0_28, %c0_29] : memref<4x64x20xf32, #tpu.memory_space<vmem>>, vector<1x64x20xf32>
    %45 = vector.shape_cast %44 : vector<1x64x20xf32> to vector<64x20xf32>
    %46 = vector.shape_cast %43 : vector<64x20xf32> to vector<1x64x20xf32>
    tpu.vector_store %arg9[%c1_27, %c0_28, %c0_29], %46 {strides = array<i32>} : memref<4x64x20xf32, #tpu.memory_space<vmem>>, vector<1x64x20xf32>,
    %47 = vector.extract_strided_slice %26 {offsets = [0, 16], sizes = [64, 16], strides = [1, 1]} : vector<64x64xf32> to vector<64x16xf32>
    %c1_30 = arith.constant 1 : index
    %c0_31 = arith.constant 0 : index
    %c0_32 = arith.constant 0 : index
    %48 = vector.load %arg10[%c1_30, %c0_31, %c0_32] : memref<4x64x16xf32, #tpu.memory_space<vmem>>, vector<1x64x16xf32>
    %49 = vector.shape_cast %48 : vector<1x64x16xf32> to vector<64x16xf32>
    %50 = vector.shape_cast %47 : vector<64x16xf32> to vector<1x64x16xf32>
    tpu.vector_store %arg10[%c1_30, %c0_31, %c0_32], %50 {strides = array<i32>} : memref<4x64x16xf32, #tpu.memory_space<vmem>>, vector<1x64x16xf32>,
    %51 = vector.extract_strided_slice %21 {offsets = [0, 40], sizes = [64, 20], strides = [1, 1]} : vector<64x160xf32> to vector<64x20xf32>
    %c2 = arith.constant 2 : index
    %c0_33 = arith.constant 0 : index
    %c0_34 = arith.constant 0 : index
    %52 = vector.load %arg8[%c2, %c0_33, %c0_34] : memref<4x64x20xf32, #tpu.memory_space<vmem>>, vector<1x64x20xf32>
    %53 = vector.shape_cast %52 : vector<1x64x20xf32> to vector<64x20xf32>
    %54 = vector.shape_cast %51 : vector<64x20xf32> to vector<1x64x20xf32>
    tpu.vector_store %arg8[%c2, %c0_33, %c0_34], %54 {strides = array<i32>} : memref<4x64x20xf32, #tpu.memory_space<vmem>>, vector<1x64x20xf32>,
    %55 = vector.extract_strided_slice %21 {offsets = [0, 120], sizes = [64, 20], strides = [1, 1]} : vector<64x160xf32> to vector<64x20xf32>
    %c2_35 = arith.constant 2 : index
    %c0_36 = arith.constant 0 : index
    %c0_37 = arith.constant 0 : index
    %56 = vector.load %arg9[%c2_35, %c0_36, %c0_37] : memref<4x64x20xf32, #tpu.memory_space<vmem>>, vector<1x64x20xf32>
    %57 = vector.shape_cast %56 : vector<1x64x20xf32> to vector<64x20xf32>
    %58 = vector.shape_cast %55 : vector<64x20xf32> to vector<1x64x20xf32>
    tpu.vector_store %arg9[%c2_35, %c0_36, %c0_37], %58 {strides = array<i32>} : memref<4x64x20xf32, #tpu.memory_space<vmem>>, vector<1x64x20xf32>,
    %59 = vector.extract_strided_slice %26 {offsets = [0, 32], sizes = [64, 16], strides = [1, 1]} : vector<64x64xf32> to vector<64x16xf32>
    %c2_38 = arith.constant 2 : index
    %c0_39 = arith.constant 0 : index
    %c0_40 = arith.constant 0 : index
    %60 = vector.load %arg10[%c2_38, %c0_39, %c0_40] : memref<4x64x16xf32, #tpu.memory_space<vmem>>, vector<1x64x16xf32>
    %61 = vector.shape_cast %60 : vector<1x64x16xf32> to vector<64x16xf32>
    %62 = vector.shape_cast %59 : vector<64x16xf32> to vector<1x64x16xf32>
    tpu.vector_store %arg10[%c2_38, %c0_39, %c0_40], %62 {strides = array<i32>} : memref<4x64x16xf32, #tpu.memory_space<vmem>>, vector<1x64x16xf32>,
    %63 = vector.extract_strided_slice %21 {offsets = [0, 60], sizes = [64, 20], strides = [1, 1]} : vector<64x160xf32> to vector<64x20xf32>
    %c3 = arith.constant 3 : index
    %c0_41 = arith.constant 0 : index
    %c0_42 = arith.constant 0 : index
    %64 = vector.load %arg8[%c3, %c0_41, %c0_42] : memref<4x64x20xf32, #tpu.memory_space<vmem>>, vector<1x64x20xf32>
    %65 = vector.shape_cast %64 : vector<1x64x20xf32> to vector<64x20xf32>
    %66 = vector.shape_cast %63 : vector<64x20xf32> to vector<1x64x20xf32>
    tpu.vector_store %arg8[%c3, %c0_41, %c0_42], %66 {strides = array<i32>} : memref<4x64x20xf32, #tpu.memory_space<vmem>>, vector<1x64x20xf32>,
    %67 = vector.extract_strided_slice %21 {offsets = [0, 140], sizes = [64, 20], strides = [1, 1]} : vector<64x160xf32> to vector<64x20xf32>
    %c3_43 = arith.constant 3 : index
    %c0_44 = arith.constant 0 : index
    %c0_45 = arith.constant 0 : index
    %68 = vector.load %arg9[%c3_43, %c0_44, %c0_45] : memref<4x64x20xf32, #tpu.memory_space<vmem>>, vector<1x64x20xf32>
    %69 = vector.shape_cast %68 : vector<1x64x20xf32> to vector<64x20xf32>
    %70 = vector.shape_cast %67 : vector<64x20xf32> to vector<1x64x20xf32>
    tpu.vector_store %arg9[%c3_43, %c0_44, %c0_45], %70 {strides = array<i32>} : memref<4x64x20xf32, #tpu.memory_space<vmem>>, vector<1x64x20xf32>,
    %71 = vector.extract_strided_slice %26 {offsets = [0, 48], sizes = [64, 16], strides = [1, 1]} : vector<64x64xf32> to vector<64x16xf32>
    %c3_46 = arith.constant 3 : index
    %c0_47 = arith.constant 0 : index
    %c0_48 = arith.constant 0 : index
    %72 = vector.load %arg10[%c3_46, %c0_47, %c0_48] : memref<4x64x16xf32, #tpu.memory_space<vmem>>, vector<1x64x16xf32>
    %73 = vector.shape_cast %72 : vector<1x64x16xf32> to vector<64x16xf32>
    %74 = vector.shape_cast %71 : vector<64x16xf32> to vector<1x64x16xf32>
    tpu.vector_store %arg10[%c3_46, %c0_47, %c0_48], %74 {strides = array<i32>} : memref<4x64x16xf32, #tpu.memory_space<vmem>>, vector<1x64x16xf32>,
    return
  }
  func.func @transform_0(%arg0: i32) -> (i32, i32) {
    %c0_i32 = arith.constant 0 : i32
    %c0_i32_0 = arith.constant 0 : i32
    return %arg0, %c0_i32 : i32, i32
  }
  func.func @transform_1(%arg0: i32) -> (i32, i32, i32) {
    %c0_i32 = arith.constant 0 : i32
    %c0_i32_0 = arith.constant 0 : i32
    %c0_i32_1 = arith.constant 0 : i32
    return %c0_i32, %arg0, %c0_i32_0 : i32, i32, i32
  }
  func.func @transform_2(%arg0: i32) -> (i32, i32) {
    %c0_i32 = arith.constant 0 : i32
    %c0_i32_0 = arith.constant 0 : i32
    %c0_i32_1 = arith.constant 0 : i32
    return %c0_i32, %c0_i32_0 : i32, i32
  }
  func.func @transform_3(%arg0: i32) -> (i32, i32) {
    %c0_i32 = arith.constant 0 : i32
    %c0_i32_0 = arith.constant 0 : i32
    %c0_i32_1 = arith.constant 0 : i32
    return %c0_i32, %c0_i32_0 : i32, i32
  }
  func.func @transform_4(%arg0: i32) -> (i32, i32) {
    %c0_i32 = arith.constant 0 : i32
    %c0_i32_0 = arith.constant 0 : i32
    %c0_i32_1 = arith.constant 0 : i32
    return %c0_i32, %c0_i32_0 : i32, i32
  }
  func.func @transform_5(%arg0: i32) -> (i32, i32) {
    %c0_i32 = arith.constant 0 : i32
    %c0_i32_0 = arith.constant 0 : i32
    %c0_i32_1 = arith.constant 0 : i32
    return %c0_i32, %c0_i32_0 : i32, i32
  }
  func.func @transform_6(%arg0: i32) -> (i32, i32) {
    %c0_i32 = arith.constant 0 : i32
    %c0_i32_0 = arith.constant 0 : i32
    %c0_i32_1 = arith.constant 0 : i32
    return %c0_i32, %c0_i32_0 : i32, i32
  }
  func.func @transform_7(%arg0: i32) -> (i32, i32, i32) {
    %c0_i32 = arith.constant 0 : i32
    %c0_i32_0 = arith.constant 0 : i32
    %c0_i32_1 = arith.constant 0 : i32
    return %c0_i32, %arg0, %c0_i32_0 : i32, i32, i32
  }
  func.func @transform_8(%arg0: i32) -> (i32, i32, i32) {
    %c0_i32 = arith.constant 0 : i32
    %c0_i32_0 = arith.constant 0 : i32
    %c0_i32_1 = arith.constant 0 : i32
    return %c0_i32, %arg0, %c0_i32_0 : i32, i32, i32
  }
  func.func @transform_9(%arg0: i32) -> (i32, i32, i32) {
    %c0_i32 = arith.constant 0 : i32
    %c0_i32_0 = arith.constant 0 : i32
    %c0_i32_1 = arith.constant 0 : i32
    return %c0_i32, %arg0, %c0_i32_0 : i32, i32, i32
  }
}

module attributes {stable_mosaic.version = 11 : i64} {
  func.func @_attn_kernel(%arg0: i32, %arg1: memref<4x32x20xf32, #tpu.memory_space<vmem>>, %arg2: memref<4x64x20xf32, #tpu.memory_space<vmem>>, %arg3: memref<4x64x16xf32, #tpu.memory_space<vmem>>, %arg4: memref<1x64xf32, #tpu.memory_space<vmem>>, %arg5: memref<16x16xf32, #tpu.memory_space<vmem>>, %arg6: memref<1x16xf32, #tpu.memory_space<vmem>>, %arg7: memref<32x16xf32, #tpu.memory_space<vmem>>) attributes {dimension_semantics = [#tpu.dimension_semantics<parallel>], iteration_bounds = array<i64: 2>, scalar_prefetch = 0 : i64, scratch_operands = 0 : i64, tpu.core_type = #tpu.core_type<tc>, window_params = [{transform_indices = @transform_0, window_bounds = array<i64: 4, 32, 20>}, {pipeline_mode = #tpu.pipeline_mode<synchronous>, transform_indices = @transform_1, window_bounds = array<i64: 4, 64, 20>}, {pipeline_mode = #tpu.pipeline_mode<synchronous>, transform_indices = @transform_2, window_bounds = array<i64: 4, 64, 16>}, {pipeline_mode = #tpu.pipeline_mode<synchronous>, transform_indices = @transform_3, window_bounds = array<i64: 1, 64>}, {pipeline_mode = #tpu.pipeline_mode<synchronous>, transform_indices = @transform_4, window_bounds = array<i64: 16, 16>}, {pipeline_mode = #tpu.pipeline_mode<synchronous>, transform_indices = @transform_5, window_bounds = array<i64: 1, 16>}, {transform_indices = @transform_6, window_bounds = array<i64: 32, 16>}]} {
    %cst = arith.constant 0.000000e+00 : f32
    %0 = vector.broadcast %cst : f32 to vector<32x16xf32>
    %c0 = arith.constant 0 : index
    %c0_0 = arith.constant 0 : index
    %c0_1 = arith.constant 0 : index
    %1 = vector.load %arg1[%c0, %c0_0, %c0_1] : memref<4x32x20xf32, #tpu.memory_space<vmem>>, vector<1x32x20xf32>
    %2 = vector.shape_cast %1 : vector<1x32x20xf32> to vector<32x20xf32>
    %c0_2 = arith.constant 0 : index
    %c0_3 = arith.constant 0 : index
    %c0_4 = arith.constant 0 : index
    %3 = vector.load %arg2[%c0_2, %c0_3, %c0_4] : memref<4x64x20xf32, #tpu.memory_space<vmem>>, vector<1x64x20xf32>
    %4 = vector.shape_cast %3 : vector<1x64x20xf32> to vector<64x20xf32>
    %cst_5 = arith.constant dense<0.000000e+00> : vector<32x64xf32>
    %5 = tpu.matmul %2, %4, %cst_5 {dimension_numbers = #tpu.dot_dimension_numbers<[1], [1], [0], [0], [0, 0, 1, 0], [], []>} : vector<32x20xf32>, vector<64x20xf32>, vector<32x64xf32> -> vector<32x64xf32>
    %c0_6 = arith.constant 0 : index
    %c0_7 = arith.constant 0 : index
    %6 = vector.load %arg4[%c0_6, %c0_7] : memref<1x64xf32, #tpu.memory_space<vmem>>, vector<1x64xf32>
    %7 = vector.broadcast %6 : vector<1x64xf32> to vector<32x64xf32>
    %8 = arith.addf %5, %7 : vector<32x64xf32>
    %cst_8 = arith.constant dense<0xFF800000> : vector<32xf32>
    %9 = vector.multi_reduction <maximumf>, %8, %cst_8 [1] : vector<32x64xf32> to vector<32xf32>
    %10 = vector.shape_cast %9 : vector<32xf32> to vector<32x1xf32>
    %11 = vector.broadcast %10 : vector<32x1xf32> to vector<32x64xf32>
    %12 = arith.subf %8, %11 : vector<32x64xf32>
    %13 = math.exp %12 : vector<32x64xf32>
    %cst_9 = arith.constant dense<0.000000e+00> : vector<32xf32>
    %14 = vector.multi_reduction <add>, %13, %cst_9 [1] : vector<32x64xf32> to vector<32xf32>
    %15 = vector.shape_cast %14 : vector<32xf32> to vector<32x1xf32>
    %16 = vector.broadcast %15 : vector<32x1xf32> to vector<32x64xf32>
    %17 = arith.divf %13, %16 : vector<32x64xf32>
    %c0_10 = arith.constant 0 : index
    %c0_11 = arith.constant 0 : index
    %c0_12 = arith.constant 0 : index
    %18 = vector.load %arg3[%c0_10, %c0_11, %c0_12] : memref<4x64x16xf32, #tpu.memory_space<vmem>>, vector<1x64x16xf32>
    %19 = vector.shape_cast %18 : vector<1x64x16xf32> to vector<64x16xf32>
    %cst_13 = arith.constant dense<0.000000e+00> : vector<32x16xf32>
    %20 = tpu.matmul %17, %19, %cst_13 {dimension_numbers = #tpu.dot_dimension_numbers<[1], [0], [0], [1], [0, 0, 1, 1], [], []>} : vector<32x64xf32>, vector<64x16xf32>, vector<32x16xf32> -> vector<32x16xf32>
    %21 = arith.addf %0, %20 : vector<32x16xf32>
    %c1 = arith.constant 1 : index
    %c0_14 = arith.constant 0 : index
    %c0_15 = arith.constant 0 : index
    %22 = vector.load %arg1[%c1, %c0_14, %c0_15] : memref<4x32x20xf32, #tpu.memory_space<vmem>>, vector<1x32x20xf32>
    %23 = vector.shape_cast %22 : vector<1x32x20xf32> to vector<32x20xf32>
    %c1_16 = arith.constant 1 : index
    %c0_17 = arith.constant 0 : index
    %c0_18 = arith.constant 0 : index
    %24 = vector.load %arg2[%c1_16, %c0_17, %c0_18] : memref<4x64x20xf32, #tpu.memory_space<vmem>>, vector<1x64x20xf32>
    %25 = vector.shape_cast %24 : vector<1x64x20xf32> to vector<64x20xf32>
    %cst_19 = arith.constant dense<0.000000e+00> : vector<32x64xf32>
    %26 = tpu.matmul %23, %25, %cst_19 {dimension_numbers = #tpu.dot_dimension_numbers<[1], [1], [0], [0], [0, 0, 1, 0], [], []>} : vector<32x20xf32>, vector<64x20xf32>, vector<32x64xf32> -> vector<32x64xf32>
    %c0_20 = arith.constant 0 : index
    %c0_21 = arith.constant 0 : index
    %27 = vector.load %arg4[%c0_20, %c0_21] : memref<1x64xf32, #tpu.memory_space<vmem>>, vector<1x64xf32>
    %28 = vector.broadcast %27 : vector<1x64xf32> to vector<32x64xf32>
    %29 = arith.addf %26, %28 : vector<32x64xf32>
    %cst_22 = arith.constant dense<0xFF800000> : vector<32xf32>
    %30 = vector.multi_reduction <maximumf>, %29, %cst_22 [1] : vector<32x64xf32> to vector<32xf32>
    %31 = vector.shape_cast %30 : vector<32xf32> to vector<32x1xf32>
    %32 = vector.broadcast %31 : vector<32x1xf32> to vector<32x64xf32>
    %33 = arith.subf %29, %32 : vector<32x64xf32>
    %34 = math.exp %33 : vector<32x64xf32>
    %cst_23 = arith.constant dense<0.000000e+00> : vector<32xf32>
    %35 = vector.multi_reduction <add>, %34, %cst_23 [1] : vector<32x64xf32> to vector<32xf32>
    %36 = vector.shape_cast %35 : vector<32xf32> to vector<32x1xf32>
    %37 = vector.broadcast %36 : vector<32x1xf32> to vector<32x64xf32>
    %38 = arith.divf %34, %37 : vector<32x64xf32>
    %c1_24 = arith.constant 1 : index
    %c0_25 = arith.constant 0 : index
    %c0_26 = arith.constant 0 : index
    %39 = vector.load %arg3[%c1_24, %c0_25, %c0_26] : memref<4x64x16xf32, #tpu.memory_space<vmem>>, vector<1x64x16xf32>
    %40 = vector.shape_cast %39 : vector<1x64x16xf32> to vector<64x16xf32>
    %cst_27 = arith.constant dense<0.000000e+00> : vector<32x16xf32>
    %41 = tpu.matmul %38, %40, %cst_27 {dimension_numbers = #tpu.dot_dimension_numbers<[1], [0], [0], [1], [0, 0, 1, 1], [], []>} : vector<32x64xf32>, vector<64x16xf32>, vector<32x16xf32> -> vector<32x16xf32>
    %42 = arith.addf %21, %41 : vector<32x16xf32>
    %c2 = arith.constant 2 : index
    %c0_28 = arith.constant 0 : index
    %c0_29 = arith.constant 0 : index
    %43 = vector.load %arg1[%c2, %c0_28, %c0_29] : memref<4x32x20xf32, #tpu.memory_space<vmem>>, vector<1x32x20xf32>
    %44 = vector.shape_cast %43 : vector<1x32x20xf32> to vector<32x20xf32>
    %c2_30 = arith.constant 2 : index
    %c0_31 = arith.constant 0 : index
    %c0_32 = arith.constant 0 : index
    %45 = vector.load %arg2[%c2_30, %c0_31, %c0_32] : memref<4x64x20xf32, #tpu.memory_space<vmem>>, vector<1x64x20xf32>
    %46 = vector.shape_cast %45 : vector<1x64x20xf32> to vector<64x20xf32>
    %cst_33 = arith.constant dense<0.000000e+00> : vector<32x64xf32>
    %47 = tpu.matmul %44, %46, %cst_33 {dimension_numbers = #tpu.dot_dimension_numbers<[1], [1], [0], [0], [0, 0, 1, 0], [], []>} : vector<32x20xf32>, vector<64x20xf32>, vector<32x64xf32> -> vector<32x64xf32>
    %c0_34 = arith.constant 0 : index
    %c0_35 = arith.constant 0 : index
    %48 = vector.load %arg4[%c0_34, %c0_35] : memref<1x64xf32, #tpu.memory_space<vmem>>, vector<1x64xf32>
    %49 = vector.broadcast %48 : vector<1x64xf32> to vector<32x64xf32>
    %50 = arith.addf %47, %49 : vector<32x64xf32>
    %cst_36 = arith.constant dense<0xFF800000> : vector<32xf32>
    %51 = vector.multi_reduction <maximumf>, %50, %cst_36 [1] : vector<32x64xf32> to vector<32xf32>
    %52 = vector.shape_cast %51 : vector<32xf32> to vector<32x1xf32>
    %53 = vector.broadcast %52 : vector<32x1xf32> to vector<32x64xf32>
    %54 = arith.subf %50, %53 : vector<32x64xf32>
    %55 = math.exp %54 : vector<32x64xf32>
    %cst_37 = arith.constant dense<0.000000e+00> : vector<32xf32>
    %56 = vector.multi_reduction <add>, %55, %cst_37 [1] : vector<32x64xf32> to vector<32xf32>
    %57 = vector.shape_cast %56 : vector<32xf32> to vector<32x1xf32>
    %58 = vector.broadcast %57 : vector<32x1xf32> to vector<32x64xf32>
    %59 = arith.divf %55, %58 : vector<32x64xf32>
    %c2_38 = arith.constant 2 : index
    %c0_39 = arith.constant 0 : index
    %c0_40 = arith.constant 0 : index
    %60 = vector.load %arg3[%c2_38, %c0_39, %c0_40] : memref<4x64x16xf32, #tpu.memory_space<vmem>>, vector<1x64x16xf32>
    %61 = vector.shape_cast %60 : vector<1x64x16xf32> to vector<64x16xf32>
    %cst_41 = arith.constant dense<0.000000e+00> : vector<32x16xf32>
    %62 = tpu.matmul %59, %61, %cst_41 {dimension_numbers = #tpu.dot_dimension_numbers<[1], [0], [0], [1], [0, 0, 1, 1], [], []>} : vector<32x64xf32>, vector<64x16xf32>, vector<32x16xf32> -> vector<32x16xf32>
    %63 = arith.addf %42, %62 : vector<32x16xf32>
    %c3 = arith.constant 3 : index
    %c0_42 = arith.constant 0 : index
    %c0_43 = arith.constant 0 : index
    %64 = vector.load %arg1[%c3, %c0_42, %c0_43] : memref<4x32x20xf32, #tpu.memory_space<vmem>>, vector<1x32x20xf32>
    %65 = vector.shape_cast %64 : vector<1x32x20xf32> to vector<32x20xf32>
    %c3_44 = arith.constant 3 : index
    %c0_45 = arith.constant 0 : index
    %c0_46 = arith.constant 0 : index
    %66 = vector.load %arg2[%c3_44, %c0_45, %c0_46] : memref<4x64x20xf32, #tpu.memory_space<vmem>>, vector<1x64x20xf32>
    %67 = vector.shape_cast %66 : vector<1x64x20xf32> to vector<64x20xf32>
    %cst_47 = arith.constant dense<0.000000e+00> : vector<32x64xf32>
    %68 = tpu.matmul %65, %67, %cst_47 {dimension_numbers = #tpu.dot_dimension_numbers<[1], [1], [0], [0], [0, 0, 1, 0], [], []>} : vector<32x20xf32>, vector<64x20xf32>, vector<32x64xf32> -> vector<32x64xf32>
    %c0_48 = arith.constant 0 : index
    %c0_49 = arith.constant 0 : index
    %69 = vector.load %arg4[%c0_48, %c0_49] : memref<1x64xf32, #tpu.memory_space<vmem>>, vector<1x64xf32>
    %70 = vector.broadcast %69 : vector<1x64xf32> to vector<32x64xf32>
    %71 = arith.addf %68, %70 : vector<32x64xf32>
    %cst_50 = arith.constant dense<0xFF800000> : vector<32xf32>
    %72 = vector.multi_reduction <maximumf>, %71, %cst_50 [1] : vector<32x64xf32> to vector<32xf32>
    %73 = vector.shape_cast %72 : vector<32xf32> to vector<32x1xf32>
    %74 = vector.broadcast %73 : vector<32x1xf32> to vector<32x64xf32>
    %75 = arith.subf %71, %74 : vector<32x64xf32>
    %76 = math.exp %75 : vector<32x64xf32>
    %cst_51 = arith.constant dense<0.000000e+00> : vector<32xf32>
    %77 = vector.multi_reduction <add>, %76, %cst_51 [1] : vector<32x64xf32> to vector<32xf32>
    %78 = vector.shape_cast %77 : vector<32xf32> to vector<32x1xf32>
    %79 = vector.broadcast %78 : vector<32x1xf32> to vector<32x64xf32>
    %80 = arith.divf %76, %79 : vector<32x64xf32>
    %c3_52 = arith.constant 3 : index
    %c0_53 = arith.constant 0 : index
    %c0_54 = arith.constant 0 : index
    %81 = vector.load %arg3[%c3_52, %c0_53, %c0_54] : memref<4x64x16xf32, #tpu.memory_space<vmem>>, vector<1x64x16xf32>
    %82 = vector.shape_cast %81 : vector<1x64x16xf32> to vector<64x16xf32>
    %cst_55 = arith.constant dense<0.000000e+00> : vector<32x16xf32>
    %83 = tpu.matmul %80, %82, %cst_55 {dimension_numbers = #tpu.dot_dimension_numbers<[1], [0], [0], [1], [0, 0, 1, 1], [], []>} : vector<32x64xf32>, vector<64x16xf32>, vector<32x16xf32> -> vector<32x16xf32>
    %84 = arith.addf %63, %83 : vector<32x16xf32>
    %cst_56 = arith.constant 2.500000e-01 : f32
    %85 = vector.broadcast %cst_56 : f32 to vector<32x16xf32>
    %86 = arith.mulf %84, %85 : vector<32x16xf32>
    %c0_57 = arith.constant 0 : index
    %c0_58 = arith.constant 0 : index
    %87 = vector.load %arg5[%c0_57, %c0_58] : memref<16x16xf32, #tpu.memory_space<vmem>>, vector<16x16xf32>
    %cst_59 = arith.constant dense<0.000000e+00> : vector<32x16xf32>
    %88 = tpu.matmul %86, %87, %cst_59 {dimension_numbers = #tpu.dot_dimension_numbers<[1], [0], [0], [1], [0, 0, 1, 1], [], []>} : vector<32x16xf32>, vector<16x16xf32>, vector<32x16xf32> -> vector<32x16xf32>
    %c0_60 = arith.constant 0 : index
    %c0_61 = arith.constant 0 : index
    %89 = vector.load %arg6[%c0_60, %c0_61] : memref<1x16xf32, #tpu.memory_space<vmem>>, vector<1x16xf32>
    %90 = vector.broadcast %89 : vector<1x16xf32> to vector<32x16xf32>
    %91 = arith.addf %88, %90 : vector<32x16xf32>
    %c0_62 = arith.constant 0 : index
    %c0_63 = arith.constant 0 : index
    %92 = vector.load %arg7[%c0_62, %c0_63] : memref<32x16xf32, #tpu.memory_space<vmem>>, vector<32x16xf32>
    tpu.vector_store %arg7[%c0_62, %c0_63], %91 {strides = array<i32>} : memref<32x16xf32, #tpu.memory_space<vmem>>, vector<32x16xf32>,
    return
  }
  func.func @transform_0(%arg0: i32) -> (i32, i32, i32) {
    %c0_i32 = arith.constant 0 : i32
    %c0_i32_0 = arith.constant 0 : i32
    %c0_i32_1 = arith.constant 0 : i32
    return %c0_i32, %arg0, %c0_i32_0 : i32, i32, i32
  }
  func.func @transform_1(%arg0: i32) -> (i32, i32, i32) {
    %c0_i32 = arith.constant 0 : i32
    %c0_i32_0 = arith.constant 0 : i32
    %c0_i32_1 = arith.constant 0 : i32
    %c0_i32_2 = arith.constant 0 : i32
    return %c0_i32, %c0_i32_0, %c0_i32_1 : i32, i32, i32
  }
  func.func @transform_2(%arg0: i32) -> (i32, i32, i32) {
    %c0_i32 = arith.constant 0 : i32
    %c0_i32_0 = arith.constant 0 : i32
    %c0_i32_1 = arith.constant 0 : i32
    %c0_i32_2 = arith.constant 0 : i32
    return %c0_i32, %c0_i32_0, %c0_i32_1 : i32, i32, i32
  }
  func.func @transform_3(%arg0: i32) -> (i32, i32) {
    %c0_i32 = arith.constant 0 : i32
    %c0_i32_0 = arith.constant 0 : i32
    %c0_i32_1 = arith.constant 0 : i32
    return %c0_i32, %c0_i32_0 : i32, i32
  }
  func.func @transform_4(%arg0: i32) -> (i32, i32) {
    %c0_i32 = arith.constant 0 : i32
    %c0_i32_0 = arith.constant 0 : i32
    %c0_i32_1 = arith.constant 0 : i32
    return %c0_i32, %c0_i32_0 : i32, i32
  }
  func.func @transform_5(%arg0: i32) -> (i32, i32) {
    %c0_i32 = arith.constant 0 : i32
    %c0_i32_0 = arith.constant 0 : i32
    %c0_i32_1 = arith.constant 0 : i32
    return %c0_i32, %c0_i32_0 : i32, i32
  }
  func.func @transform_6(%arg0: i32) -> (i32, i32) {
    %c0_i32 = arith.constant 0 : i32
    %c0_i32_0 = arith.constant 0 : i32
    return %arg0, %c0_i32 : i32, i32
  }
}

</mosaic_0001>

<llo_original>
// kernel: graph_attention_layer.2
$region0: #{graph_attention_layer.2}
  #allocation0 [shape = 'u32[]', space=smem, size = 0x4, offset = 0x4, fixed_abs, tag = 'smem constant byte address 0x4 - core index']
  #allocation1 [shape = 'u32[144,128]{1,0:T(1,128)}', space=vmem, size = 0x12000, scoped, tag = 'internal scratch']
  %s0 = inlined_call_operand.vmem [shape: f32[64,16], index: 0, kind: input, shape index: {}]
  %s1 = inlined_call_operand.vmem [shape: f32[3,64,4], index: 1, kind: input, shape index: {}]
  %s2 = inlined_call_operand.vmem [shape: f32[16,160], index: 2, kind: input, shape index: {}]
  %s3 = inlined_call_operand.vmem [shape: f32[4,160], index: 3, kind: input, shape index: {}]
  %s4 = inlined_call_operand.vmem [shape: f32[1,160], index: 4, kind: input, shape index: {}]
  %s5 = inlined_call_operand.vmem [shape: f32[16,64], index: 5, kind: input, shape index: {}]
  %s6 = inlined_call_operand.vmem [shape: f32[1,64], index: 6, kind: input, shape index: {}]
  %s7 = inlined_call_operand.vmem [shape: f32[4,64,20], index: 7, kind: output, shape index: {0}]
  %s8 = inlined_call_operand.vmem [shape: f32[4,64,20], index: 8, kind: output, shape index: {1}]
  %s9 = inlined_call_operand.vmem [shape: f32[4,64,16], index: 9, kind: output, shape index: {2}]
  %10 = xla_tuple %s7, %s8, %s9
  %s11 = sld [smem:[#allocation0]]
  $region54: #{graph_attention_layer.2} parent=0
    _
  %s13 = ssub.s32 1, %s11
  %s14 = scalar_select 0, %s13, %s11
  // Predicated region
  $region2: #{graph_attention_layer.2} parent=0 // pred_check
    _
  $region3: #{graph_attention_layer.2} parent=0 // pred_check_branch
    %16 = sbr.rel (0) target = $region5
  $region4: #{graph_attention_layer.2} parent=0 // pred_region
    _
  $region5: #{graph_attention_layer.2} parent=0 // pred_fallthru
    _
  // Predicated region
  $region6: #{graph_attention_layer.2} parent=0 // pred_check
    _
  $region7: #{graph_attention_layer.2} parent=0 // pred_check_branch
    %18 = sbr.rel (0) target = $region9
  $region8: #{graph_attention_layer.2} parent=0 // pred_region
    _
  $region9: #{graph_attention_layer.2} parent=0 // pred_fallthru
    _
  // Predicated region
  $region10: #{graph_attention_layer.2} parent=0 // pred_check
    _
  $region11: #{graph_attention_layer.2} parent=0 // pred_check_branch
    %20 = sbr.rel (0) target = $region13
  $region12: #{graph_attention_layer.2} parent=0 // pred_region
    _
  $region13: #{graph_attention_layer.2} parent=0 // pred_fallthru
    _
  // Predicated region
  $region14: #{graph_attention_layer.2} parent=0 // pred_check
    _
  $region15: #{graph_attention_layer.2} parent=0 // pred_check_branch
    %22 = sbr.rel (0) target = $region17
  $region16: #{graph_attention_layer.2} parent=0 // pred_region
    _
  $region17: #{graph_attention_layer.2} parent=0 // pred_fallthru
    _
  // Predicated region
  $region18: #{graph_attention_layer.2} parent=0 // pred_check
    _
  $region19: #{graph_attention_layer.2} parent=0 // pred_check_branch
    %24 = sbr.rel (0) target = $region21
  $region20: #{graph_attention_layer.2} parent=0 // pred_region
    _
  $region21: #{graph_attention_layer.2} parent=0 // pred_fallthru
    _
  // Predicated region
  $region22: #{graph_attention_layer.2} parent=0 // pred_check
    _
  $region23: #{graph_attention_layer.2} parent=0 // pred_check_branch
    %26 = sbr.rel (0) target = $region25
  $region24: #{graph_attention_layer.2} parent=0 // pred_region
    _
  $region25: #{graph_attention_layer.2} parent=0 // pred_fallthru
    _
  // Predicated region
  $region26: #{graph_attention_layer.2} parent=0 // pred_check
    _
  $region27: #{graph_attention_layer.2} parent=0 // pred_check_branch
    %28 = sbr.rel (0) target = $region29
  $region28: #{graph_attention_layer.2} parent=0 // pred_region
    _
  $region29: #{graph_attention_layer.2} parent=0 // pred_fallthru
    _
  %v29 = vld [vmem:[%s0] sm:$0xff]
  %v30 = vld [vmem:[%s0 + $0x8] sm:$0xff]
  %v31 = vld [vmem:[%s0 + $0x10] sm:$0xff]
  %v32 = vld [vmem:[%s0 + $0x18] sm:$0xff]
  %v33 = vld [vmem:[%s0 + $0x20] sm:$0xff]
  %v34 = vld [vmem:[%s0 + $0x28] sm:$0xff]
  %v35 = vld [vmem:[%s0 + $0x30] sm:$0xff]
  %v36 = vld [vmem:[%s0 + $0x38] sm:$0xff]
  %v37 = vld [vmem:[%s1] sm:$0xff]
  %v38 = vld [vmem:[%s1 + $0x8] sm:$0xff]
  %v39 = vld [vmem:[%s1 + $0x10] sm:$0xff]
  %v40 = vld [vmem:[%s1 + $0x18] sm:$0xff]
  %v41 = vld [vmem:[%s1 + $0x20] sm:$0xff]
  %v42 = vld [vmem:[%s1 + $0x28] sm:$0xff]
  %v43 = vld [vmem:[%s1 + $0x30] sm:$0xff]
  %v44 = vld [vmem:[%s1 + $0x38] sm:$0xff]
  %v45 = vld [vmem:[%s1 + $0x40] sm:$0xff]
  %v46 = vld [vmem:[%s1 + $0x48] sm:$0xff]
  %v47 = vld [vmem:[%s1 + $0x50] sm:$0xff]
  %v48 = vld [vmem:[%s1 + $0x58] sm:$0xff]
  %v49 = vld [vmem:[%s1 + $0x60] sm:$0xff]
  %v50 = vld [vmem:[%s1 + $0x68] sm:$0xff]
  %v51 = vld [vmem:[%s1 + $0x70] sm:$0xff]
  %v52 = vld [vmem:[%s1 + $0x78] sm:$0xff]
  %v53 = vld [vmem:[%s1 + $0x80] sm:$0xff]
  %v54 = vld [vmem:[%s1 + $0x88] sm:$0xff]
  %v55 = vld [vmem:[%s1 + $0x90] sm:$0xff]
  %v56 = vld [vmem:[%s1 + $0x98] sm:$0xff]
  %v57 = vld [vmem:[%s1 + $0xa0] sm:$0xff]
  %v58 = vld [vmem:[%s1 + $0xa8] sm:$0xff]
  %v59 = vld [vmem:[%s1 + $0xb0] sm:$0xff]
  %v60 = vld [vmem:[%s1 + $0xb8] sm:$0xff]
  %v61 = vmul.f32 %v37, %v37
  %v62 = vmul.f32 %v38, %v38
  %v63 = vmul.f32 %v39, %v39
  %v64 = vmul.f32 %v40, %v40
  %v65 = vmul.f32 %v41, %v41
  %v66 = vmul.f32 %v42, %v42
  %v67 = vmul.f32 %v43, %v43
  %v68 = vmul.f32 %v44, %v44
  %v69 = vmul.f32 %v45, %v45
  %v70 = vmul.f32 %v46, %v46
  %v71 = vmul.f32 %v47, %v47
  %v72 = vmul.f32 %v48, %v48
  %v73 = vmul.f32 %v49, %v49
  %v74 = vmul.f32 %v50, %v50
  %v75 = vmul.f32 %v51, %v51
  %v76 = vmul.f32 %v52, %v52
  %v77 = vadd.f32 %v61, %v69
  %v78 = vadd.f32 %v62, %v70
  %v79 = vadd.f32 %v63, %v71
  %v80 = vadd.f32 %v64, %v72
  %v81 = vadd.f32 %v65, %v73
  %v82 = vadd.f32 %v66, %v74
  %v83 = vadd.f32 %v67, %v75
  %v84 = vadd.f32 %v68, %v76
  %v85 = vmul.f32 %v53, %v53
  %v86 = vmul.f32 %v54, %v54
  %v87 = vmul.f32 %v55, %v55
  %v88 = vmul.f32 %v56, %v56
  %v89 = vmul.f32 %v57, %v57
  %v90 = vmul.f32 %v58, %v58
  %v91 = vmul.f32 %v59, %v59
  %v92 = vmul.f32 %v60, %v60
  %v93 = vadd.f32 %v77, %v85
  %v94 = vadd.f32 %v78, %v86
  %v95 = vadd.f32 %v79, %v87
  %v96 = vadd.f32 %v80, %v88
  %v97 = vadd.f32 %v81, %v89
  %v98 = vadd.f32 %v82, %v90
  %v99 = vadd.f32 %v83, %v91
  %v100 = vadd.f32 %v84, %v92
  %v101 = vrsqrt.pop %v93
  %v102 = vmul.f32 %v93, %v101
  %vm103 = vcmp.eq.f32.partialorder %v93, inf
  %v104 = vsel %vm103, %v93, %v102
  %vm105 = vcmp.eq.f32.partialorder %v93, 0.0
  %v106 = vand.u32 %v93, 2147483648
  %v107 = vsel %vm105, %v106, %v104
  %v108 = vrsqrt.pop %v94
  %v109 = vmul.f32 %v94, %v108
  %vm110 = vcmp.eq.f32.partialorder %v94, inf
  %v111 = vsel %vm110, %v94, %v109
  %vm112 = vcmp.eq.f32.partialorder %v94, 0.0
  %v113 = vand.u32 %v94, 2147483648
  %v114 = vsel %vm112, %v113, %v111
  %v115 = vrsqrt.pop %v95
  %v116 = vmul.f32 %v95, %v115
  %vm117 = vcmp.eq.f32.partialorder %v95, inf
  %v118 = vsel %vm117, %v95, %v116
  %vm119 = vcmp.eq.f32.partialorder %v95, 0.0
  %v120 = vand.u32 %v95, 2147483648
  %v121 = vsel %vm119, %v120, %v118
  %v122 = vrsqrt.pop %v96
  %v123 = vmul.f32 %v96, %v122
  %vm124 = vcmp.eq.f32.partialorder %v96, inf
  %v125 = vsel %vm124, %v96, %v123
  %vm126 = vcmp.eq.f32.partialorder %v96, 0.0
  %v127 = vand.u32 %v96, 2147483648
  %v128 = vsel %vm126, %v127, %v125
  %v129 = vrsqrt.pop %v97
  %v130 = vmul.f32 %v97, %v129
  %vm131 = vcmp.eq.f32.partialorder %v97, inf
  %v132 = vsel %vm131, %v97, %v130
  %vm133 = vcmp.eq.f32.partialorder %v97, 0.0
  %v134 = vand.u32 %v97, 2147483648
  %v135 = vsel %vm133, %v134, %v132
  %v136 = vrsqrt.pop %v98
  %v137 = vmul.f32 %v98, %v136
  %vm138 = vcmp.eq.f32.partialorder %v98, inf
  %v139 = vsel %vm138, %v98, %v137
  %vm140 = vcmp.eq.f32.partialorder %v98, 0.0
  %v141 = vand.u32 %v98, 2147483648
  %v142 = vsel %vm140, %v141, %v139
  %v143 = vrsqrt.pop %v99
  %v144 = vmul.f32 %v99, %v143
  %vm145 = vcmp.eq.f32.partialorder %v99, inf
  %v146 = vsel %vm145, %v99, %v144
  %vm147 = vcmp.eq.f32.partialorder %v99, 0.0
  %v148 = vand.u32 %v99, 2147483648
  %v149 = vsel %vm147, %v148, %v146
  %v150 = vrsqrt.pop %v100
  %v151 = vmul.f32 %v100, %v150
  %vm152 = vcmp.eq.f32.partialorder %v100, inf
  %v153 = vsel %vm152, %v100, %v151
  %vm154 = vcmp.eq.f32.partialorder %v100, 0.0
  %v155 = vand.u32 %v100, 2147483648
  %v156 = vsel %vm154, %v155, %v153
  %v157 = vld [vmem:[%s2] sm:$0xff]
  %v158 = vld [vmem:[%s2 + $0x8] sm:$0xff]
  %v159 = vld [vmem:[%s2 + $0x10] sm:$0xff]
  %v160 = vld [vmem:[%s2 + $0x18] sm:$0xff]
  %v161 = vld [vmem:[%s3] sm:$0xff]
  %v163 = vcombine.high %v161, %v161
  %vm164 = vcmask 31744
  %v166 = vsel %vm164, %v107, 0
  %v169 = vsel %vm164, %v114, 0
  %v172 = vsel %vm164, %v121, 0
  %v175 = vsel %vm164, %v128, 0
  %v178 = vsel %vm164, %v135, 0
  %v181 = vsel %vm164, %v142, 0
  %v184 = vsel %vm164, %v149, 0
  %v187 = vsel %vm164, %v156, 0
  %vm189 = vcmask 1043456
  %v190 = vsel %vm189, %v161, 0
  %v192 = vsel %vm189, %v163, 0
  %194 = vmatprep.subr.mxu0 0.0
  %195 = vmatpush1.msra.mxu0 0.0
  %196 = vmatprep.subr.mxu0 0.0
  %197 = vmatpush1.msra.mxu0 0.0
  %198 = vmatprep.subr.mxu0 0.0
  %199 = vmatpush1.msra.mxu0 0.0
  %200 = vmatprep.subr.mxu0 0.0
  %201 = vmatpush1.msra.mxu0 0.0
  %202 = vmatprep.subr.mxu0 0.0
  %203 = vmatpush1.msra.mxu0 0.0
  %204 = vmatprep.subr.mxu0 0.0
  %205 = vmatpush1.msra.mxu0 0.0
  %206 = vmatprep.subr.mxu0 0.0
  %207 = vmatpush1.msra.mxu0 0.0
  %208 = vmatprep.subr.mxu0 0.0
  %209 = vmatpush1.msra.mxu0 0.0
  %210 = vmatprep.subr.mxu0 0.0
  %211 = vmatpush1.msra.mxu0 0.0
  %212 = vmatprep.subr.mxu0 0.0
  %213 = vmatpush1.msra.mxu0 0.0
  %214 = vmatprep.subr.mxu0 0.0
  %215 = vmatpush1.msra.mxu0 0.0
  %216 = vmatprep.subr.mxu0 0.0
  %217 = vmatpush1.msra.mxu0 0.0
  %218 = vmatprep.subr.mxu0 0.0
  %219 = vmatpush1.msra.mxu0 0.0
  %220 = vmatprep.subr.mxu0 0.0
  %221 = vmatpush1.msra.mxu0 0.0
  %222 = vmatprep.subr.mxu0 0.0
  %223 = vmatpush1.msra.mxu0 0.0
  %224 = vmatprep.subr.mxu0 %v192
  %225 = vmatpush1.msra.mxu0 %v190
  %226 = vmatprep.subr.mxu0 0.0
  %227 = vmatpush2.msra.mxu0 0.0
  %228 = vmatprep.subr.mxu0 0.0
  %229 = vmatpush2.msra.mxu0 0.0
  %230 = vmatprep.subr.mxu0 0.0
  %231 = vmatpush2.msra.mxu0 0.0
  %232 = vmatprep.subr.mxu0 0.0
  %233 = vmatpush2.msra.mxu0 0.0
  %234 = vmatprep.subr.mxu0 0.0
  %235 = vmatpush2.msra.mxu0 0.0
  %236 = vmatprep.subr.mxu0 0.0
  %237 = vmatpush2.msra.mxu0 0.0
  %238 = vmatprep.subr.mxu0 0.0
  %239 = vmatpush2.msra.mxu0 0.0
  %240 = vmatprep.subr.mxu0 0.0
  %241 = vmatpush2.msra.mxu0 0.0
  %242 = vmatprep.subr.mxu0 0.0
  %243 = vmatpush2.msra.mxu0 0.0
  %244 = vmatprep.subr.mxu0 0.0
  %245 = vmatpush2.msra.mxu0 0.0
  %246 = vmatprep.subr.mxu0 0.0
  %247 = vmatpush2.msra.mxu0 0.0
  %248 = vmatprep.subr.mxu0 0.0
  %249 = vmatpush2.msra.mxu0 0.0
  %250 = vmatprep.subr.mxu0 0.0
  %251 = vmatpush2.msra.mxu0 0.0
  %252 = vmatprep.subr.mxu0 0.0
  %253 = vmatpush2.msra.mxu0 0.0
  %254 = vmatprep.subr.mxu0 0.0
  %255 = vmatpush2.msra.mxu0 0.0
  %256 = vmatprep.subr.mxu0 0.0
  %257 = vmatpush2.msra.mxu0 0.0
  %258 = vmatprep.mubr.f32.mxu0 0.0
  %259 = vmatmul.mubr.f32.gmra.mxu0 %v166
  %v260 = vpop.f32.mrf.mxu0
  %v261 = vadd.f32 0.0, %v260
  %v262 = vpop.f32.mrf.mxu0
  %v263 = vadd.f32 0.0, %v262
  %264 = vmatprep.mubr.f32.mxu0 0.0
  %265 = vmatmul.mubr.f32.gmra.mxu0 %v169
  %v266 = vpop.f32.mrf.mxu0
  %v267 = vadd.f32 0.0, %v266
  %v268 = vpop.f32.mrf.mxu0
  %v269 = vadd.f32 0.0, %v268
  %270 = vmatprep.mubr.f32.mxu0 0.0
  %271 = vmatmul.mubr.f32.gmra.mxu0 %v172
  %v272 = vpop.f32.mrf.mxu0
  %v273 = vadd.f32 0.0, %v272
  %v274 = vpop.f32.mrf.mxu0
  %v275 = vadd.f32 0.0, %v274
  %276 = vmatprep.mubr.f32.mxu0 0.0
  %277 = vmatmul.mubr.f32.gmra.mxu0 %v175
  %v278 = vpop.f32.mrf.mxu0
  %v279 = vadd.f32 0.0, %v278
  %v280 = vpop.f32.mrf.mxu0
  %v281 = vadd.f32 0.0, %v280
  %282 = vmatprep.mubr.f32.mxu0 0.0
  %283 = vmatmul.mubr.f32.gmra.mxu0 %v178
  %v284 = vpop.f32.mrf.mxu0
  %v285 = vadd.f32 0.0, %v284
  %v286 = vpop.f32.mrf.mxu0
  %v287 = vadd.f32 0.0, %v286
  %288 = vmatprep.mubr.f32.mxu0 0.0
  %289 = vmatmul.mubr.f32.gmra.mxu0 %v181
  %v290 = vpop.f32.mrf.mxu0
  %v291 = vadd.f32 0.0, %v290
  %v292 = vpop.f32.mrf.mxu0
  %v293 = vadd.f32 0.0, %v292
  %294 = vmatprep.mubr.f32.mxu0 0.0
  %295 = vmatmul.mubr.f32.gmra.mxu0 %v184
  %v296 = vpop.f32.mrf.mxu0
  %v297 = vadd.f32 0.0, %v296
  %v298 = vpop.f32.mrf.mxu0
  %v299 = vadd.f32 0.0, %v298
  %300 = vmatprep.mubr.f32.mxu0 0.0
  %301 = vmatmul.mubr.f32.gmra.mxu0 %v187
  %v302 = vpop.f32.mrf.mxu0
  %v303 = vadd.f32 0.0, %v302
  %v304 = vpop.f32.mrf.mxu0
  %v305 = vadd.f32 0.0, %v304
  %306 = vdwg.mxu0
  %vm307 = vcmask 130048
  %v309 = vsel %vm307, %v29, 0
  %v312 = vsel %vm307, %v30, 0
  %v315 = vsel %vm307, %v31, 0
  %v318 = vsel %vm307, %v32, 0
  %v321 = vsel %vm307, %v33, 0
  %v324 = vsel %vm307, %v34, 0
  %v327 = vsel %vm307, %v35, 0
  %v330 = vsel %vm307, %v36, 0
  %332 = vmatprep.subr.mxu0 0.0
  %333 = vmatpush1.msra.mxu0 0.0
  %334 = vmatprep.subr.mxu0 0.0
  %335 = vmatpush1.msra.mxu0 0.0
  %336 = vmatprep.subr.mxu0 0.0
  %337 = vmatpush1.msra.mxu0 0.0
  %338 = vmatprep.subr.mxu0 0.0
  %339 = vmatpush1.msra.mxu0 0.0
  %340 = vmatprep.subr.mxu0 0.0
  %341 = vmatpush1.msra.mxu0 0.0
  %342 = vmatprep.subr.mxu0 0.0
  %343 = vmatpush1.msra.mxu0 0.0
  %344 = vmatprep.subr.mxu0 0.0
  %345 = vmatpush1.msra.mxu0 0.0
  %346 = vmatprep.subr.mxu0 0.0
  %347 = vmatpush1.msra.mxu0 0.0
  %348 = vmatprep.subr.mxu0 0.0
  %349 = vmatpush1.msra.mxu0 0.0
  %350 = vmatprep.subr.mxu0 0.0
  %351 = vmatpush1.msra.mxu0 0.0
  %352 = vmatprep.subr.mxu0 0.0
  %353 = vmatpush1.msra.mxu0 0.0
  %354 = vmatprep.subr.mxu0 0.0
  %355 = vmatpush1.msra.mxu0 0.0
  %356 = vmatprep.subr.mxu0 0.0
  %357 = vmatpush1.msra.mxu0 0.0
  %358 = vmatprep.subr.mxu0 0.0
  %359 = vmatpush1.msra.mxu0 0.0
  %360 = vmatprep.subr.mxu0 %v160
  %361 = vmatpush1.msra.mxu0 %v159
  %362 = vmatprep.subr.mxu0 %v158
  %363 = vmatpush1.msra.mxu0 %v157
  %364 = vmatprep.subr.mxu0 0.0
  %365 = vmatpush2.msra.mxu0 0.0
  %366 = vmatprep.subr.mxu0 0.0
  %367 = vmatpush2.msra.mxu0 0.0
  %368 = vmatprep.subr.mxu0 0.0
  %369 = vmatpush2.msra.mxu0 0.0
  %370 = vmatprep.subr.mxu0 0.0
  %371 = vmatpush2.msra.mxu0 0.0
  %372 = vmatprep.subr.mxu0 0.0
  %373 = vmatpush2.msra.mxu0 0.0
  %374 = vmatprep.subr.mxu0 0.0
  %375 = vmatpush2.msra.mxu0 0.0
  %376 = vmatprep.subr.mxu0 0.0
  %377 = vmatpush2.msra.mxu0 0.0
  %378 = vmatprep.subr.mxu0 0.0
  %379 = vmatpush2.msra.mxu0 0.0
  %380 = vmatprep.subr.mxu0 0.0
  %381 = vmatpush2.msra.mxu0 0.0
  %382 = vmatprep.subr.mxu0 0.0
  %383 = vmatpush2.msra.mxu0 0.0
  %384 = vmatprep.subr.mxu0 0.0
  %385 = vmatpush2.msra.mxu0 0.0
  %386 = vmatprep.subr.mxu0 0.0
  %387 = vmatpush2.msra.mxu0 0.0
  %388 = vmatprep.subr.mxu0 0.0
  %389 = vmatpush2.msra.mxu0 0.0
  %390 = vmatprep.subr.mxu0 0.0
  %391 = vmatpush2.msra.mxu0 0.0
  %392 = vmatprep.subr.mxu0 0.0
  %393 = vmatpush2.msra.mxu0 0.0
  %394 = vmatprep.subr.mxu0 0.0
  %395 = vmatpush2.msra.mxu0 0.0
  %396 = vmatprep.mubr.f32.mxu0 0.0
  %397 = vmatmul.mubr.f32.gmra.mxu0 %v309
  %v398 = vpop.f32.mrf.mxu0
  %v399 = vadd.f32 %v261, %v398
  %v400 = vpop.f32.mrf.mxu0
  %v401 = vadd.f32 %v263, %v400
  %402 = vmatprep.mubr.f32.mxu0 0.0
  %403 = vmatmul.mubr.f32.gmra.mxu0 %v312
  %v404 = vpop.f32.mrf.mxu0
  %v405 = vadd.f32 %v267, %v404
  %v406 = vpop.f32.mrf.mxu0
  %v407 = vadd.f32 %v269, %v406
  %408 = vmatprep.mubr.f32.mxu0 0.0
  %409 = vmatmul.mubr.f32.gmra.mxu0 %v315
  %v410 = vpop.f32.mrf.mxu0
  %v411 = vadd.f32 %v273, %v410
  %v412 = vpop.f32.mrf.mxu0
  %v413 = vadd.f32 %v275, %v412
  %414 = vmatprep.mubr.f32.mxu0 0.0
  %415 = vmatmul.mubr.f32.gmra.mxu0 %v318
  %v416 = vpop.f32.mrf.mxu0
  %v417 = vadd.f32 %v279, %v416
  %v418 = vpop.f32.mrf.mxu0
  %v419 = vadd.f32 %v281, %v418
  %420 = vmatprep.mubr.f32.mxu0 0.0
  %421 = vmatmul.mubr.f32.gmra.mxu0 %v321
  %v422 = vpop.f32.mrf.mxu0
  %v423 = vadd.f32 %v285, %v422
  %v424 = vpop.f32.mrf.mxu0
  %v425 = vadd.f32 %v287, %v424
  %426 = vmatprep.mubr.f32.mxu0 0.0
  %427 = vmatmul.mubr.f32.gmra.mxu0 %v324
  %v428 = vpop.f32.mrf.mxu0
  %v429 = vadd.f32 %v291, %v428
  %v430 = vpop.f32.mrf.mxu0
  %v431 = vadd.f32 %v293, %v430
  %432 = vmatprep.mubr.f32.mxu0 0.0
  %433 = vmatmul.mubr.f32.gmra.mxu0 %v327
  %v434 = vpop.f32.mrf.mxu0
  %v435 = vadd.f32 %v297, %v434
  %v436 = vpop.f32.mrf.mxu0
  %v437 = vadd.f32 %v299, %v436
  %438 = vmatprep.mubr.f32.mxu0 0.0
  %439 = vmatmul.mubr.f32.gmra.mxu0 %v330
  %v440 = vpop.f32.mrf.mxu0
  %v441 = vadd.f32 %v303, %v440
  %v442 = vpop.f32.mrf.mxu0
  %v443 = vadd.f32 %v305, %v442
  %444 = vdwg.mxu0
  %v445 = vld [vmem:[%s4] sm:$0x3]
  %v447 = vlaneseq
  %v448 = vshrl.u32 %v447, 7
  %v449 = vsub.s32 0, %v448
  %v450 = vrot.slane %v445, %v449
  %v451 = vlaneseq
  %v452 = vshrl.u32 %v451, 7
  %v453 = vsub.s32 1, %v452
  %v454 = vrot.slane %v445, %v453
  %v457 = vadd.f32 %v399, %v450
  %v458 = vadd.f32 %v401, %v454
  %v459 = vadd.f32 %v405, %v450
  %v460 = vadd.f32 %v407, %v454
  %v461 = vadd.f32 %v411, %v450
  %v462 = vadd.f32 %v413, %v454
  %v463 = vadd.f32 %v417, %v450
  %v464 = vadd.f32 %v419, %v454
  %v465 = vadd.f32 %v423, %v450
  %v466 = vadd.f32 %v425, %v454
  %v467 = vadd.f32 %v429, %v450
  %v468 = vadd.f32 %v431, %v454
  %v469 = vadd.f32 %v435, %v450
  %v470 = vadd.f32 %v437, %v454
  %v471 = vadd.f32 %v441, %v450
  %v472 = vadd.f32 %v443, %v454
  %v473 = vld [vmem:[%s5] sm:$0xff]
  %v474 = vld [vmem:[%s5 + $0x8] sm:$0xff]
  %v475 = vld [vmem:[%s6] sm:$0x1]
  %v477 = vlaneseq
  %v478 = vshrl.u32 %v477, 7
  %v479 = vsub.s32 0, %v478
  %v480 = vrot.slane %v475, %v479
  %482 = vmatprep.subr.mxu0 0.0
  %483 = vmatpush1.msra.mxu0 0.0
  %484 = vmatprep.subr.mxu0 0.0
  %485 = vmatpush1.msra.mxu0 0.0
  %486 = vmatprep.subr.mxu0 0.0
  %487 = vmatpush1.msra.mxu0 0.0
  %488 = vmatprep.subr.mxu0 0.0
  %489 = vmatpush1.msra.mxu0 0.0
  %490 = vmatprep.subr.mxu0 0.0
  %491 = vmatpush1.msra.mxu0 0.0
  %492 = vmatprep.subr.mxu0 0.0
  %493 = vmatpush1.msra.mxu0 0.0
  %494 = vmatprep.subr.mxu0 0.0
  %495 = vmatpush1.msra.mxu0 0.0
  %496 = vmatprep.subr.mxu0 0.0
  %497 = vmatpush1.msra.mxu0 0.0
  %498 = vmatprep.subr.mxu0 0.0
  %499 = vmatpush1.msra.mxu0 0.0
  %500 = vmatprep.subr.mxu0 0.0
  %501 = vmatpush1.msra.mxu0 0.0
  %502 = vmatprep.subr.mxu0 0.0
  %503 = vmatpush1.msra.mxu0 0.0
  %504 = vmatprep.subr.mxu0 0.0
  %505 = vmatpush1.msra.mxu0 0.0
  %506 = vmatprep.subr.mxu0 0.0
  %507 = vmatpush1.msra.mxu0 0.0
  %508 = vmatprep.subr.mxu0 0.0
  %509 = vmatpush1.msra.mxu0 0.0
  %510 = vmatprep.subr.mxu0 0.0
  %511 = vmatpush1.msra.mxu0 %v474
  %512 = vmatprep.subr.mxu0 0.0
  %513 = vmatpush1.msra.mxu0 %v473
  %514 = vmatprep.subr.mxu0 0.0
  %515 = vmatpush2.msra.mxu0 0.0
  %516 = vmatprep.subr.mxu0 0.0
  %517 = vmatpush2.msra.mxu0 0.0
  %518 = vmatprep.subr.mxu0 0.0
  %519 = vmatpush2.msra.mxu0 0.0
  %520 = vmatprep.subr.mxu0 0.0
  %521 = vmatpush2.msra.mxu0 0.0
  %522 = vmatprep.subr.mxu0 0.0
  %523 = vmatpush2.msra.mxu0 0.0
  %524 = vmatprep.subr.mxu0 0.0
  %525 = vmatpush2.msra.mxu0 0.0
  %526 = vmatprep.subr.mxu0 0.0
  %527 = vmatpush2.msra.mxu0 0.0
  %528 = vmatprep.subr.mxu0 0.0
  %529 = vmatpush2.msra.mxu0 0.0
  %530 = vmatprep.subr.mxu0 0.0
  %531 = vmatpush2.msra.mxu0 0.0
  %532 = vmatprep.subr.mxu0 0.0
  %533 = vmatpush2.msra.mxu0 0.0
  %534 = vmatprep.subr.mxu0 0.0
  %535 = vmatpush2.msra.mxu0 0.0
  %536 = vmatprep.subr.mxu0 0.0
  %537 = vmatpush2.msra.mxu0 0.0
  %538 = vmatprep.subr.mxu0 0.0
  %539 = vmatpush2.msra.mxu0 0.0
  %540 = vmatprep.subr.mxu0 0.0
  %541 = vmatpush2.msra.mxu0 0.0
  %542 = vmatprep.subr.mxu0 0.0
  %543 = vmatpush2.msra.mxu0 0.0
  %544 = vmatprep.subr.mxu0 0.0
  %545 = vmatpush2.msra.mxu0 0.0
  %546 = vmatprep.mubr.f32.mxu0 0.0
  %547 = vmatmul.mubr.f32.gmra.mxu0 %v309
  %v548 = vpop.f32.mrf.mxu0
  %v549 = vadd.f32 %v480, %v548
  %v550 = vpop.f32.mrf.mxu0
  %551 = vmatprep.mubr.f32.mxu0 0.0
  %552 = vmatmul.mubr.f32.gmra.mxu0 %v312
  %v553 = vpop.f32.mrf.mxu0
  %v554 = vadd.f32 %v480, %v553
  %v555 = vpop.f32.mrf.mxu0
  %556 = vmatprep.mubr.f32.mxu0 0.0
  %557 = vmatmul.mubr.f32.gmra.mxu0 %v315
  %v558 = vpop.f32.mrf.mxu0
  %v559 = vadd.f32 %v480, %v558
  %v560 = vpop.f32.mrf.mxu0
  %561 = vmatprep.mubr.f32.mxu0 0.0
  %562 = vmatmul.mubr.f32.gmra.mxu0 %v318
  %v563 = vpop.f32.mrf.mxu0
  %v564 = vadd.f32 %v480, %v563
  %v565 = vpop.f32.mrf.mxu0
  %566 = vmatprep.mubr.f32.mxu0 0.0
  %567 = vmatmul.mubr.f32.gmra.mxu0 %v321
  %v568 = vpop.f32.mrf.mxu0
  %v569 = vadd.f32 %v480, %v568
  %v570 = vpop.f32.mrf.mxu0
  %571 = vmatprep.mubr.f32.mxu0 0.0
  %572 = vmatmul.mubr.f32.gmra.mxu0 %v324
  %v573 = vpop.f32.mrf.mxu0
  %v574 = vadd.f32 %v480, %v573
  %v575 = vpop.f32.mrf.mxu0
  %576 = vmatprep.mubr.f32.mxu0 0.0
  %577 = vmatmul.mubr.f32.gmra.mxu0 %v327
  %v578 = vpop.f32.mrf.mxu0
  %v579 = vadd.f32 %v480, %v578
  %v580 = vpop.f32.mrf.mxu0
  %581 = vmatprep.mubr.f32.mxu0 0.0
  %582 = vmatmul.mubr.f32.gmra.mxu0 %v330
  %v583 = vpop.f32.mrf.mxu0
  %v584 = vadd.f32 %v480, %v583
  %v585 = vpop.f32.mrf.mxu0
  %586 = vdwg.mxu0
  %vm587 = vcmask 162816
  %588 = vst.msk [vmem:[%s7] sm:$0xff] %vm587, %v457
  %589 = vst.msk [vmem:[%s7 + $0x8] sm:$0xff] %vm587, %v459
  %590 = vst.msk [vmem:[%s7 + $0x10] sm:$0xff] %vm587, %v461
  %591 = vst.msk [vmem:[%s7 + $0x18] sm:$0xff] %vm587, %v463
  %592 = vst.msk [vmem:[%s7 + $0x20] sm:$0xff] %vm587, %v465
  %593 = vst.msk [vmem:[%s7 + $0x28] sm:$0xff] %vm587, %v467
  %594 = vst.msk [vmem:[%s7 + $0x30] sm:$0xff] %vm587, %v469
  %595 = vst.msk [vmem:[%s7 + $0x38] sm:$0xff] %vm587, %v471
  %604 = vrot.lane.b32.xlu0 %v457, 48
  %v605 = vpop.permute.xlu0 %604
  %606 = vrot.lane.b32.xlu0 %v459, 48
  %v607 = vpop.permute.xlu0 %606
  %608 = vrot.lane.b32.xlu0 %v461, 48
  %v609 = vpop.permute.xlu0 %608
  %610 = vrot.lane.b32.xlu0 %v463, 48
  %v611 = vpop.permute.xlu0 %610
  %612 = vrot.lane.b32.xlu0 %v465, 48
  %v613 = vpop.permute.xlu0 %612
  %614 = vrot.lane.b32.xlu0 %v467, 48
  %v615 = vpop.permute.xlu0 %614
  %616 = vrot.lane.b32.xlu0 %v469, 48
  %v617 = vpop.permute.xlu0 %616
  %618 = vrot.lane.b32.xlu0 %v471, 48
  %v619 = vpop.permute.xlu0 %618
  %628 = vst.msk [vmem:[%s8] sm:$0xff] %vm587, %v605
  %629 = vst.msk [vmem:[%s8 + $0x8] sm:$0xff] %vm587, %v607
  %630 = vst.msk [vmem:[%s8 + $0x10] sm:$0xff] %vm587, %v609
  %631 = vst.msk [vmem:[%s8 + $0x18] sm:$0xff] %vm587, %v611
  %632 = vst.msk [vmem:[%s8 + $0x20] sm:$0xff] %vm587, %v613
  %633 = vst.msk [vmem:[%s8 + $0x28] sm:$0xff] %vm587, %v615
  %634 = vst.msk [vmem:[%s8 + $0x30] sm:$0xff] %vm587, %v617
  %635 = vst.msk [vmem:[%s8 + $0x38] sm:$0xff] %vm587, %v619
  %636 = vst.msk [vmem:[%s9] sm:$0xff] %vm307, %v549
  %637 = vst.msk [vmem:[%s9 + $0x8] sm:$0xff] %vm307, %v554
  %638 = vst.msk [vmem:[%s9 + $0x10] sm:$0xff] %vm307, %v559
  %639 = vst.msk [vmem:[%s9 + $0x18] sm:$0xff] %vm307, %v564
  %640 = vst.msk [vmem:[%s9 + $0x20] sm:$0xff] %vm307, %v569
  %641 = vst.msk [vmem:[%s9 + $0x28] sm:$0xff] %vm307, %v574
  %642 = vst.msk [vmem:[%s9 + $0x30] sm:$0xff] %vm307, %v579
  %643 = vst.msk [vmem:[%s9 + $0x38] sm:$0xff] %vm307, %v584
  %644 = vrot.lane.b32.xlu0 %v457, 108
  %v645 = vpop.permute.xlu0 %644
  %646 = vrot.lane.b32.xlu0 %v459, 108
  %v647 = vpop.permute.xlu0 %646
  %648 = vrot.lane.b32.xlu0 %v461, 108
  %v649 = vpop.permute.xlu0 %648
  %650 = vrot.lane.b32.xlu0 %v463, 108
  %v651 = vpop.permute.xlu0 %650
  %652 = vrot.lane.b32.xlu0 %v465, 108
  %v653 = vpop.permute.xlu0 %652
  %654 = vrot.lane.b32.xlu0 %v467, 108
  %v655 = vpop.permute.xlu0 %654
  %656 = vrot.lane.b32.xlu0 %v469, 108
  %v657 = vpop.permute.xlu0 %656
  %658 = vrot.lane.b32.xlu0 %v471, 108
  %v659 = vpop.permute.xlu0 %658
  %s668 = scalar_lea.vmem %s7, 64
  %669 = vst.msk [vmem:[%s668] sm:$0xff] %vm587, %v645
  %670 = vst.msk [vmem:[%s668 + $0x8] sm:$0xff] %vm587, %v647
  %671 = vst.msk [vmem:[%s668 + $0x10] sm:$0xff] %vm587, %v649
  %672 = vst.msk [vmem:[%s668 + $0x18] sm:$0xff] %vm587, %v651
  %673 = vst.msk [vmem:[%s668 + $0x20] sm:$0xff] %vm587, %v653
  %674 = vst.msk [vmem:[%s668 + $0x28] sm:$0xff] %vm587, %v655
  %675 = vst.msk [vmem:[%s668 + $0x30] sm:$0xff] %vm587, %v657
  %676 = vst.msk [vmem:[%s668 + $0x38] sm:$0xff] %vm587, %v659
  %677 = vrot.lane.b32.xlu0 %v457, 28
  %v678 = vpop.permute.xlu0 %677
  %679 = vrot.lane.b32.xlu0 %v459, 28
  %v680 = vpop.permute.xlu0 %679
  %681 = vrot.lane.b32.xlu0 %v461, 28
  %v682 = vpop.permute.xlu0 %681
  %683 = vrot.lane.b32.xlu0 %v463, 28
  %v684 = vpop.permute.xlu0 %683
  %685 = vrot.lane.b32.xlu0 %v465, 28
  %v686 = vpop.permute.xlu0 %685
  %687 = vrot.lane.b32.xlu0 %v467, 28
  %v688 = vpop.permute.xlu0 %687
  %689 = vrot.lane.b32.xlu0 %v469, 28
  %v690 = vpop.permute.xlu0 %689
  %691 = vrot.lane.b32.xlu0 %v471, 28
  %v692 = vpop.permute.xlu0 %691
  %s701 = scalar_lea.vmem %s8, 64
  %702 = vst.msk [vmem:[%s701] sm:$0xff] %vm587, %v678
  %703 = vst.msk [vmem:[%s701 + $0x8] sm:$0xff] %vm587, %v680
  %704 = vst.msk [vmem:[%s701 + $0x10] sm:$0xff] %vm587, %v682
  %705 = vst.msk [vmem:[%s701 + $0x18] sm:$0xff] %vm587, %v684
  %706 = vst.msk [vmem:[%s701 + $0x20] sm:$0xff] %vm587, %v686
  %707 = vst.msk [vmem:[%s701 + $0x28] sm:$0xff] %vm587, %v688
  %708 = vst.msk [vmem:[%s701 + $0x30] sm:$0xff] %vm587, %v690
  %709 = vst.msk [vmem:[%s701 + $0x38] sm:$0xff] %vm587, %v692
  %718 = vrot.lane.b32.xlu0 %v549, 112
  %v719 = vpop.permute.xlu0 %718
  %720 = vrot.lane.b32.xlu0 %v554, 112
  %v721 = vpop.permute.xlu0 %720
  %722 = vrot.lane.b32.xlu0 %v559, 112
  %v723 = vpop.permute.xlu0 %722
  %724 = vrot.lane.b32.xlu0 %v564, 112
  %v725 = vpop.permute.xlu0 %724
  %726 = vrot.lane.b32.xlu0 %v569, 112
  %v727 = vpop.permute.xlu0 %726
  %728 = vrot.lane.b32.xlu0 %v574, 112
  %v729 = vpop.permute.xlu0 %728
  %730 = vrot.lane.b32.xlu0 %v579, 112
  %v731 = vpop.permute.xlu0 %730
  %732 = vrot.lane.b32.xlu0 %v584, 112
  %v733 = vpop.permute.xlu0 %732
  %s742 = scalar_lea.vmem %s9, 64
  %743 = vst.msk [vmem:[%s742] sm:$0xff] %vm307, %v719
  %744 = vst.msk [vmem:[%s742 + $0x8] sm:$0xff] %vm307, %v721
  %745 = vst.msk [vmem:[%s742 + $0x10] sm:$0xff] %vm307, %v723
  %746 = vst.msk [vmem:[%s742 + $0x18] sm:$0xff] %vm307, %v725
  %747 = vst.msk [vmem:[%s742 + $0x20] sm:$0xff] %vm307, %v727
  %748 = vst.msk [vmem:[%s742 + $0x28] sm:$0xff] %vm307, %v729
  %749 = vst.msk [vmem:[%s742 + $0x30] sm:$0xff] %vm307, %v731
  %750 = vst.msk [vmem:[%s742 + $0x38] sm:$0xff] %vm307, %v733
  %751 = vrot.lane.b32.xlu0 %v457, 88
  %v752 = vpop.permute.xlu0 %751
  %753 = vrot.lane.b32.xlu0 %v459, 88
  %v754 = vpop.permute.xlu0 %753
  %755 = vrot.lane.b32.xlu0 %v461, 88
  %v756 = vpop.permute.xlu0 %755
  %757 = vrot.lane.b32.xlu0 %v463, 88
  %v758 = vpop.permute.xlu0 %757
  %759 = vrot.lane.b32.xlu0 %v465, 88
  %v760 = vpop.permute.xlu0 %759
  %761 = vrot.lane.b32.xlu0 %v467, 88
  %v762 = vpop.permute.xlu0 %761
  %763 = vrot.lane.b32.xlu0 %v469, 88
  %v764 = vpop.permute.xlu0 %763
  %765 = vrot.lane.b32.xlu0 %v471, 88
  %v766 = vpop.permute.xlu0 %765
  %s775 = scalar_lea.vmem %s7, 128
  %776 = vst.msk [vmem:[%s775] sm:$0xff] %vm587, %v752
  %777 = vst.msk [vmem:[%s775 + $0x8] sm:$0xff] %vm587, %v754
  %778 = vst.msk [vmem:[%s775 + $0x10] sm:$0xff] %vm587, %v756
  %779 = vst.msk [vmem:[%s775 + $0x18] sm:$0xff] %vm587, %v758
  %780 = vst.msk [vmem:[%s775 + $0x20] sm:$0xff] %vm587, %v760
  %781 = vst.msk [vmem:[%s775 + $0x28] sm:$0xff] %vm587, %v762
  %782 = vst.msk [vmem:[%s775 + $0x30] sm:$0xff] %vm587, %v764
  %783 = vst.msk [vmem:[%s775 + $0x38] sm:$0xff] %vm587, %v766
  %792 = vrot.lane.b32.xlu0 %v457, 8
  %v793 = vpop.permute.xlu0 %792
  %794 = vrot.lane.b32.xlu0 %v458, 8
  %v795 = vpop.permute.xlu0 %794
  %796 = vrot.lane.b32.xlu0 %v459, 8
  %v797 = vpop.permute.xlu0 %796
  %798 = vrot.lane.b32.xlu0 %v460, 8
  %v799 = vpop.permute.xlu0 %798
  %800 = vrot.lane.b32.xlu0 %v461, 8
  %v801 = vpop.permute.xlu0 %800
  %802 = vrot.lane.b32.xlu0 %v462, 8
  %v803 = vpop.permute.xlu0 %802
  %804 = vrot.lane.b32.xlu0 %v463, 8
  %v805 = vpop.permute.xlu0 %804
  %806 = vrot.lane.b32.xlu0 %v464, 8
  %v807 = vpop.permute.xlu0 %806
  %808 = vrot.lane.b32.xlu0 %v465, 8
  %v809 = vpop.permute.xlu0 %808
  %810 = vrot.lane.b32.xlu0 %v466, 8
  %v811 = vpop.permute.xlu0 %810
  %812 = vrot.lane.b32.xlu0 %v467, 8
  %v813 = vpop.permute.xlu0 %812
  %814 = vrot.lane.b32.xlu0 %v468, 8
  %v815 = vpop.permute.xlu0 %814
  %816 = vrot.lane.b32.xlu0 %v469, 8
  %v817 = vpop.permute.xlu0 %816
  %818 = vrot.lane.b32.xlu0 %v470, 8
  %v819 = vpop.permute.xlu0 %818
  %820 = vrot.lane.b32.xlu0 %v471, 8
  %v821 = vpop.permute.xlu0 %820
  %822 = vrot.lane.b32.xlu0 %v472, 8
  %v823 = vpop.permute.xlu0 %822
  %vm824 = vcmask 64512
  %v825 = vsel %vm824, %v793, %v795
  %v826 = vsel %vm824, %v797, %v799
  %v827 = vsel %vm824, %v801, %v803
  %v828 = vsel %vm824, %v805, %v807
  %v829 = vsel %vm824, %v809, %v811
  %v830 = vsel %vm824, %v813, %v815
  %v831 = vsel %vm824, %v817, %v819
  %v832 = vsel %vm824, %v821, %v823
  %s841 = scalar_lea.vmem %s8, 128
  %842 = vst.msk [vmem:[%s841] sm:$0xff] %vm587, %v825
  %843 = vst.msk [vmem:[%s841 + $0x8] sm:$0xff] %vm587, %v826
  %844 = vst.msk [vmem:[%s841 + $0x10] sm:$0xff] %vm587, %v827
  %845 = vst.msk [vmem:[%s841 + $0x18] sm:$0xff] %vm587, %v828
  %846 = vst.msk [vmem:[%s841 + $0x20] sm:$0xff] %vm587, %v829
  %847 = vst.msk [vmem:[%s841 + $0x28] sm:$0xff] %vm587, %v830
  %848 = vst.msk [vmem:[%s841 + $0x30] sm:$0xff] %vm587, %v831
  %849 = vst.msk [vmem:[%s841 + $0x38] sm:$0xff] %vm587, %v832
  %850 = vrot.lane.b32.xlu0 %v549, 96
  %v851 = vpop.permute.xlu0 %850
  %852 = vrot.lane.b32.xlu0 %v554, 96
  %v853 = vpop.permute.xlu0 %852
  %854 = vrot.lane.b32.xlu0 %v559, 96
  %v855 = vpop.permute.xlu0 %854
  %856 = vrot.lane.b32.xlu0 %v564, 96
  %v857 = vpop.permute.xlu0 %856
  %858 = vrot.lane.b32.xlu0 %v569, 96
  %v859 = vpop.permute.xlu0 %858
  %860 = vrot.lane.b32.xlu0 %v574, 96
  %v861 = vpop.permute.xlu0 %860
  %862 = vrot.lane.b32.xlu0 %v579, 96
  %v863 = vpop.permute.xlu0 %862
  %864 = vrot.lane.b32.xlu0 %v584, 96
  %v865 = vpop.permute.xlu0 %864
  %s874 = scalar_lea.vmem %s9, 128
  %875 = vst.msk [vmem:[%s874] sm:$0xff] %vm307, %v851
  %876 = vst.msk [vmem:[%s874 + $0x8] sm:$0xff] %vm307, %v853
  %877 = vst.msk [vmem:[%s874 + $0x10] sm:$0xff] %vm307, %v855
  %878 = vst.msk [vmem:[%s874 + $0x18] sm:$0xff] %vm307, %v857
  %879 = vst.msk [vmem:[%s874 + $0x20] sm:$0xff] %vm307, %v859
  %880 = vst.msk [vmem:[%s874 + $0x28] sm:$0xff] %vm307, %v861
  %881 = vst.msk [vmem:[%s874 + $0x30] sm:$0xff] %vm307, %v863
  %882 = vst.msk [vmem:[%s874 + $0x38] sm:$0xff] %vm307, %v865
  %883 = vrot.lane.b32.xlu0 %v457, 68
  %v884 = vpop.permute.xlu0 %883
  %885 = vrot.lane.b32.xlu0 %v459, 68
  %v886 = vpop.permute.xlu0 %885
  %887 = vrot.lane.b32.xlu0 %v461, 68
  %v888 = vpop.permute.xlu0 %887
  %889 = vrot.lane.b32.xlu0 %v463, 68
  %v890 = vpop.permute.xlu0 %889
  %891 = vrot.lane.b32.xlu0 %v465, 68
  %v892 = vpop.permute.xlu0 %891
  %893 = vrot.lane.b32.xlu0 %v467, 68
  %v894 = vpop.permute.xlu0 %893
  %895 = vrot.lane.b32.xlu0 %v469, 68
  %v896 = vpop.permute.xlu0 %895
  %897 = vrot.lane.b32.xlu0 %v471, 68
  %v898 = vpop.permute.xlu0 %897
  %s907 = scalar_lea.vmem %s7, 192
  %908 = vst.msk [vmem:[%s907] sm:$0xff] %vm587, %v884
  %909 = vst.msk [vmem:[%s907 + $0x8] sm:$0xff] %vm587, %v886
  %910 = vst.msk [vmem:[%s907 + $0x10] sm:$0xff] %vm587, %v888
  %911 = vst.msk [vmem:[%s907 + $0x18] sm:$0xff] %vm587, %v890
  %912 = vst.msk [vmem:[%s907 + $0x20] sm:$0xff] %vm587, %v892
  %913 = vst.msk [vmem:[%s907 + $0x28] sm:$0xff] %vm587, %v894
  %914 = vst.msk [vmem:[%s907 + $0x30] sm:$0xff] %vm587, %v896
  %915 = vst.msk [vmem:[%s907 + $0x38] sm:$0xff] %vm587, %v898
  %916 = vrot.lane.b32.xlu0 %v458, 116
  %v917 = vpop.permute.xlu0 %916
  %918 = vrot.lane.b32.xlu0 %v460, 116
  %v919 = vpop.permute.xlu0 %918
  %920 = vrot.lane.b32.xlu0 %v462, 116
  %v921 = vpop.permute.xlu0 %920
  %922 = vrot.lane.b32.xlu0 %v464, 116
  %v923 = vpop.permute.xlu0 %922
  %924 = vrot.lane.b32.xlu0 %v466, 116
  %v925 = vpop.permute.xlu0 %924
  %926 = vrot.lane.b32.xlu0 %v468, 116
  %v927 = vpop.permute.xlu0 %926
  %928 = vrot.lane.b32.xlu0 %v470, 116
  %v929 = vpop.permute.xlu0 %928
  %930 = vrot.lane.b32.xlu0 %v472, 116
  %v931 = vpop.permute.xlu0 %930
  %s940 = scalar_lea.vmem %s8, 192
  %941 = vst.msk [vmem:[%s940] sm:$0xff] %vm587, %v917
  %942 = vst.msk [vmem:[%s940 + $0x8] sm:$0xff] %vm587, %v919
  %943 = vst.msk [vmem:[%s940 + $0x10] sm:$0xff] %vm587, %v921
  %944 = vst.msk [vmem:[%s940 + $0x18] sm:$0xff] %vm587, %v923
  %945 = vst.msk [vmem:[%s940 + $0x20] sm:$0xff] %vm587, %v925
  %946 = vst.msk [vmem:[%s940 + $0x28] sm:$0xff] %vm587, %v927
  %947 = vst.msk [vmem:[%s940 + $0x30] sm:$0xff] %vm587, %v929
  %948 = vst.msk [vmem:[%s940 + $0x38] sm:$0xff] %vm587, %v931
  %949 = vrot.lane.b32.xlu0 %v549, 80
  %v950 = vpop.permute.xlu0 %949
  %951 = vrot.lane.b32.xlu0 %v554, 80
  %v952 = vpop.permute.xlu0 %951
  %953 = vrot.lane.b32.xlu0 %v559, 80
  %v954 = vpop.permute.xlu0 %953
  %955 = vrot.lane.b32.xlu0 %v564, 80
  %v956 = vpop.permute.xlu0 %955
  %957 = vrot.lane.b32.xlu0 %v569, 80
  %v958 = vpop.permute.xlu0 %957
  %959 = vrot.lane.b32.xlu0 %v574, 80
  %v960 = vpop.permute.xlu0 %959
  %961 = vrot.lane.b32.xlu0 %v579, 80
  %v962 = vpop.permute.xlu0 %961
  %963 = vrot.lane.b32.xlu0 %v584, 80
  %v964 = vpop.permute.xlu0 %963
  %s973 = scalar_lea.vmem %s9, 192
  %974 = vst.msk [vmem:[%s973] sm:$0xff] %vm307, %v950
  %975 = vst.msk [vmem:[%s973 + $0x8] sm:$0xff] %vm307, %v952
  %976 = vst.msk [vmem:[%s973 + $0x10] sm:$0xff] %vm307, %v954
  %977 = vst.msk [vmem:[%s973 + $0x18] sm:$0xff] %vm307, %v956
  %978 = vst.msk [vmem:[%s973 + $0x20] sm:$0xff] %vm307, %v958
  %979 = vst.msk [vmem:[%s973 + $0x28] sm:$0xff] %vm307, %v960
  %980 = vst.msk [vmem:[%s973 + $0x30] sm:$0xff] %vm307, %v962
  %981 = vst.msk [vmem:[%s973 + $0x38] sm:$0xff] %vm307, %v964
  // Predicated region
  $region30: #{graph_attention_layer.2} parent=0 // pred_check
    _
  $region31: #{graph_attention_layer.2} parent=0 // pred_check_branch
    %983 = sbr.rel (0) target = $region33
  $region32: #{graph_attention_layer.2} parent=0 // pred_region
    _
  $region33: #{graph_attention_layer.2} parent=0 // pred_fallthru
    _
  // Predicated region
  $region34: #{graph_attention_layer.2} parent=0 // pred_check
    _
  $region35: #{graph_attention_layer.2} parent=0 // pred_check_branch
    %985 = sbr.rel (0) target = $region37
  $region36: #{graph_attention_layer.2} parent=0 // pred_region
    _
  $region37: #{graph_attention_layer.2} parent=0 // pred_fallthru
    _
  // Predicated region
  $region38: #{graph_attention_layer.2} parent=0 // pred_check
    _
  $region39: #{graph_attention_layer.2} parent=0 // pred_check_branch
    %987 = sbr.rel (0) target = $region41
  $region40: #{graph_attention_layer.2} parent=0 // pred_region
    _
  $region41: #{graph_attention_layer.2} parent=0 // pred_fallthru
    _
  // Predicated region
  $region42: #{graph_attention_layer.2} parent=0 // pred_check
    _
  $region43: #{graph_attention_layer.2} parent=0 // pred_check_branch
    %989 = sbr.rel (0) target = $region45
  $region44: #{graph_attention_layer.2} parent=0 // pred_region
    _
  $region45: #{graph_attention_layer.2} parent=0 // pred_fallthru
    _
  // Predicated region
  $region46: #{graph_attention_layer.2} parent=0 // pred_check
    _
  $region47: #{graph_attention_layer.2} parent=0 // pred_check_branch
    %991 = sbr.rel (0) target = $region49
  $region48: #{graph_attention_layer.2} parent=0 // pred_region
    _
  $region49: #{graph_attention_layer.2} parent=0 // pred_fallthru
    _
  // Predicated region
  $region50: #{graph_attention_layer.2} parent=0 // pred_check
    _
  $region51: #{graph_attention_layer.2} parent=0 // pred_check_branch
    %993 = sbr.rel (0) target = $region53
  $region52: #{graph_attention_layer.2} parent=0 // pred_region
    _
  $region53: #{graph_attention_layer.2} parent=0 // pred_fallthru
    _

// kernel: graph_attention_layer.3
$region0: #{graph_attention_layer.3}
  #allocation0 [shape = 'u32[]', space=smem, size = 0x4, offset = 0x4, fixed_abs, tag = 'smem constant byte address 0x4 - core index']
  #allocation1 [shape = 'u32[144,128]{1,0:T(1,128)}', space=vmem, size = 0x12000, scoped, tag = 'internal scratch']
  %s0 = inlined_call_operand.vmem [shape: f32[4,64,20], index: 0, kind: input, shape index: {}]
  %s1 = inlined_call_operand.vmem [shape: f32[4,64,20], index: 1, kind: input, shape index: {}]
  %s2 = inlined_call_operand.vmem [shape: f32[4,64,16], index: 2, kind: input, shape index: {}]
  %s3 = inlined_call_operand.vmem [shape: f32[1,64], index: 3, kind: input, shape index: {}]
  %s4 = inlined_call_operand.vmem [shape: f32[16,16], index: 4, kind: input, shape index: {}]
  %s5 = inlined_call_operand.vmem [shape: f32[1,16], index: 5, kind: input, shape index: {}]
  %s6 = inlined_call_operand.vmem [shape: f32[64,16], index: 6, kind: output, shape index: {}]
  %s7 = sld [smem:[#allocation0]]
  $region95: #{graph_attention_layer.3} parent=0
    _
  %s9 = ssub.s32 1, %s7
  %s10 = scalar_select 0, %s9, %s7
  $region1: #{graph_attention_layer.3} parent=0
    #allocation2 [shape = 'u8[131072]{0}', space=vmem, size = 0x20000, scoped, tag = 'input window, operand 0']
    loop: start=0, step=1, limit=4
    $region2: #{graph_attention_layer.3} parent=1 // loop_pre_header
      _
    $region3: #{graph_attention_layer.3} parent=1 // loop_header
      %s12 = sphi 0, %s16
      %p13 = scmp.ge.s32.totalorder %s12, 4
      %s22 = sphi 0, %s24
      %s25 = sphi 0, %s22
      %s26 = sphi 0, %s25
      %s42 = sphi 0, %s26
      %s46 = sphi 0, %s46
      %s48 = sphi 0, %s46
      %s49 = sphi 0, %s48
      %s63 = sphi 0, %s49
      %s67 = sphi 0, %s67
      %s69 = sphi 0, %s67
      %s70 = sphi 0, %s69
      %s84 = sphi 0, %s70
      %s88 = sphi 0, %s88
      %s90 = sphi 0, %s88
      %s91 = sphi 0, %s90
      %s105 = sphi 0, %s91
      %s109 = sphi 0, %s109
      %s111 = sphi 0, %s109
      %s112 = sphi 0, %s111
      %s126 = sphi 0, %s112
      %s130 = sphi 0, %s130
      %s132 = sphi 0, %s130
      %s133 = sphi 0, %s132
      %s147 = sphi 0, %s133
      %s153 = sphi 0, %s155
      %s156 = sphi 0, %s153
      %s157 = sphi 0, %s156
      %s173 = sphi 0, %s157
    $region4: #{graph_attention_layer.3} parent=1 // loop_header_branch
      %15 = sbr.rel (%p13) target = $region8
    $region5: #{graph_attention_layer.3} parent=1 // loop_body
      %s17 = ssub.s32 %s12, 1
      %s18 = ssub.s32 %s12, 2
      %s19 = sadd.s32 %s12, 1
      %s20 = ssub.s32 %s12, %s19
      %p21 = scmp.eq.s32.totalorder %s20, 0
      %s23 = sadd.s32 %s22, 1
      %s24 = scalar_select %p21, %s22, %s23
      %p27 = pneg %p21
      %p28 = scmp.eq.s32.totalorder %s12, 1
      %p29 = por %p27, %p28
      %p30 = scmp.ne.s32.totalorder %s22, %s25
      %p31 = scmp.eq.s32.totalorder %s12, 0
      %p32 = por %p30, %p31
      %p33 = scmp.ne.s32.totalorder %s22, %s25
      %p34 = scmp.eq.s32.totalorder %s17, 1
      %p35 = por %p33, %p34
      %p36 = scmp.ne.s32.totalorder %s25, %s26
      %p37 = scmp.eq.s32.totalorder %s17, 0
      %p38 = por %p36, %p37
      %p39 = scmp.ne.s32.totalorder %s25, %s26
      %p40 = scmp.eq.s32.totalorder %s18, 1
      %p41 = por %p39, %p40
      %p43 = scmp.ne.s32.totalorder %s26, %s42
      %p44 = scmp.eq.s32.totalorder %s18, 0
      %p45 = por %p43, %p44
      %s47 = sadd.s32 %s46, 1
      %p50 = scmp.eq.s32.totalorder %s12, 1
      %p51 = scmp.ne.s32.totalorder %s46, %s48
      %p52 = scmp.eq.s32.totalorder %s12, 0
      %p53 = por %p51, %p52
      %p54 = scmp.ne.s32.totalorder %s46, %s48
      %p55 = scmp.eq.s32.totalorder %s17, 1
      %p56 = por %p54, %p55
      %p57 = scmp.ne.s32.totalorder %s48, %s49
      %p58 = scmp.eq.s32.totalorder %s17, 0
      %p59 = por %p57, %p58
      %p60 = scmp.ne.s32.totalorder %s48, %s49
      %p61 = scmp.eq.s32.totalorder %s18, 1
      %p62 = por %p60, %p61
      %p64 = scmp.ne.s32.totalorder %s49, %s63
      %p65 = scmp.eq.s32.totalorder %s18, 0
      %p66 = por %p64, %p65
      %s68 = sadd.s32 %s67, 1
      %p71 = scmp.eq.s32.totalorder %s12, 1
      %p72 = scmp.ne.s32.totalorder %s67, %s69
      %p73 = scmp.eq.s32.totalorder %s12, 0
      %p74 = por %p72, %p73
      %p75 = scmp.ne.s32.totalorder %s67, %s69
      %p76 = scmp.eq.s32.totalorder %s17, 1
      %p77 = por %p75, %p76
      %p78 = scmp.ne.s32.totalorder %s69, %s70
      %p79 = scmp.eq.s32.totalorder %s17, 0
      %p80 = por %p78, %p79
      %p81 = scmp.ne.s32.totalorder %s69, %s70
      %p82 = scmp.eq.s32.totalorder %s18, 1
      %p83 = por %p81, %p82
      %p85 = scmp.ne.s32.totalorder %s70, %s84
      %p86 = scmp.eq.s32.totalorder %s18, 0
      %p87 = por %p85, %p86
      %s89 = sadd.s32 %s88, 1
      %p92 = scmp.eq.s32.totalorder %s12, 1
      %p93 = scmp.ne.s32.totalorder %s88, %s90
      %p94 = scmp.eq.s32.totalorder %s12, 0
      %p95 = por %p93, %p94
      %p96 = scmp.ne.s32.totalorder %s88, %s90
      %p97 = scmp.eq.s32.totalorder %s17, 1
      %p98 = por %p96, %p97
      %p99 = scmp.ne.s32.totalorder %s90, %s91
      %p100 = scmp.eq.s32.totalorder %s17, 0
      %p101 = por %p99, %p100
      %p102 = scmp.ne.s32.totalorder %s90, %s91
      %p103 = scmp.eq.s32.totalorder %s18, 1
      %p104 = por %p102, %p103
      %p106 = scmp.ne.s32.totalorder %s91, %s105
      %p107 = scmp.eq.s32.totalorder %s18, 0
      %p108 = por %p106, %p107
      %s110 = sadd.s32 %s109, 1
      %p113 = scmp.eq.s32.totalorder %s12, 1
      %p114 = scmp.ne.s32.totalorder %s109, %s111
      %p115 = scmp.eq.s32.totalorder %s12, 0
      %p116 = por %p114, %p115
      %p117 = scmp.ne.s32.totalorder %s109, %s111
      %p118 = scmp.eq.s32.totalorder %s17, 1
      %p119 = por %p117, %p118
      %p120 = scmp.ne.s32.totalorder %s111, %s112
      %p121 = scmp.eq.s32.totalorder %s17, 0
      %p122 = por %p120, %p121
      %p123 = scmp.ne.s32.totalorder %s111, %s112
      %p124 = scmp.eq.s32.totalorder %s18, 1
      %p125 = por %p123, %p124
      %p127 = scmp.ne.s32.totalorder %s112, %s126
      %p128 = scmp.eq.s32.totalorder %s18, 0
      %p129 = por %p127, %p128
      %s131 = sadd.s32 %s130, 1
      %p134 = scmp.eq.s32.totalorder %s12, 1
      %p135 = scmp.ne.s32.totalorder %s130, %s132
      %p136 = scmp.eq.s32.totalorder %s12, 0
      %p137 = por %p135, %p136
      %p138 = scmp.ne.s32.totalorder %s130, %s132
      %p139 = scmp.eq.s32.totalorder %s17, 1
      %p140 = por %p138, %p139
      %p141 = scmp.ne.s32.totalorder %s132, %s133
      %p142 = scmp.eq.s32.totalorder %s17, 0
      %p143 = por %p141, %p142
      %p144 = scmp.ne.s32.totalorder %s132, %s133
      %p145 = scmp.eq.s32.totalorder %s18, 1
      %p146 = por %p144, %p145
      %p148 = scmp.ne.s32.totalorder %s133, %s147
      %p149 = scmp.eq.s32.totalorder %s18, 0
      %p150 = por %p148, %p149
      %s151 = ssub.s32 %s12, %s19
      %p152 = scmp.eq.s32.totalorder %s151, 0
      %s154 = sadd.s32 %s153, 1
      %s155 = scalar_select %p152, %s153, %s154
      %p158 = pneg %p152
      %p159 = scmp.eq.s32.totalorder %s12, 1
      %p160 = por %p158, %p159
      %p161 = scmp.ne.s32.totalorder %s153, %s156
      %p162 = scmp.eq.s32.totalorder %s12, 0
      %p163 = por %p161, %p162
      %p164 = scmp.ne.s32.totalorder %s153, %s156
      %p165 = scmp.eq.s32.totalorder %s17, 1
      %p166 = por %p164, %p165
      %p167 = scmp.ne.s32.totalorder %s156, %s157
      %p168 = scmp.eq.s32.totalorder %s17, 0
      %p169 = por %p167, %p168
      %p170 = scmp.ne.s32.totalorder %s156, %s157
      %p171 = scmp.eq.s32.totalorder %s18, 1
      %p172 = por %p170, %p171
      %p174 = scmp.ne.s32.totalorder %s157, %s173
      %p175 = scmp.eq.s32.totalorder %s18, 0
      %p176 = por %p174, %p175
      %p177 = scmp.le.s32.totalorder 1, %s12
      %p178 = scmp.lt.s32.totalorder %s12, 3
      %p179 = pnand %p177, %p178
      %p180 = pneg %p179
      // Predicated region
      $region9: #{graph_attention_layer.3} parent=5 // pred_check
        _
      $region10: #{graph_attention_layer.3} parent=5 // pred_check_branch
        %182 = sbr.rel (%p179) target = $region12
      $region11: #{graph_attention_layer.3} parent=5 // pred_region
        %s183 = ssub.s32 %s12, 1
        // Predicated region
        $region13: #{graph_attention_layer.3} parent=11 // pred_check
          %p184 = pneg %p59
        $region14: #{graph_attention_layer.3} parent=11 // pred_check_branch
          %186 = sbr.rel (%p184) target = $region16
        $region15: #{graph_attention_layer.3} parent=11 // pred_region
          _
        $region16: #{graph_attention_layer.3} parent=11 // pred_fallthru
          _
        // Predicated region
        $region17: #{graph_attention_layer.3} parent=11 // pred_check
          %p187 = pneg %p80
        $region18: #{graph_attention_layer.3} parent=11 // pred_check_branch
          %189 = sbr.rel (%p187) target = $region20
        $region19: #{graph_attention_layer.3} parent=11 // pred_region
          _
        $region20: #{graph_attention_layer.3} parent=11 // pred_fallthru
          _
        // Predicated region
        $region21: #{graph_attention_layer.3} parent=11 // pred_check
          %p190 = pneg %p101
        $region22: #{graph_attention_layer.3} parent=11 // pred_check_branch
          %192 = sbr.rel (%p190) target = $region24
        $region23: #{graph_attention_layer.3} parent=11 // pred_region
          _
        $region24: #{graph_attention_layer.3} parent=11 // pred_fallthru
          _
        // Predicated region
        $region25: #{graph_attention_layer.3} parent=11 // pred_check
          %p193 = pneg %p122
        $region26: #{graph_attention_layer.3} parent=11 // pred_check_branch
          %195 = sbr.rel (%p193) target = $region28
        $region27: #{graph_attention_layer.3} parent=11 // pred_region
          _
        $region28: #{graph_attention_layer.3} parent=11 // pred_fallthru
          _
        // Predicated region
        $region29: #{graph_attention_layer.3} parent=11 // pred_check
          %p196 = pneg %p143
        $region30: #{graph_attention_layer.3} parent=11 // pred_check_branch
          %198 = sbr.rel (%p196) target = $region32
        $region31: #{graph_attention_layer.3} parent=11 // pred_region
          _
        $region32: #{graph_attention_layer.3} parent=11 // pred_fallthru
          _
      $region12: #{graph_attention_layer.3} parent=5 // pred_fallthru
        _
      %p199 = scmp.lt.s32.totalorder %s12, 2
      // Predicated region
      $region33: #{graph_attention_layer.3} parent=5 // pred_check
        %p200 = pneg %p199
      $region34: #{graph_attention_layer.3} parent=5 // pred_check_branch
        %202 = sbr.rel (%p200) target = $region36
      $region35: #{graph_attention_layer.3} parent=5 // pred_region
        // Predicated region
        $region37: #{graph_attention_layer.3} parent=35 // pred_check
          %p203 = pneg %p32
        $region38: #{graph_attention_layer.3} parent=35 // pred_check_branch
          %205 = sbr.rel (%p203) target = $region40
        $region39: #{graph_attention_layer.3} parent=35 // pred_region
          %s206 = sand.u32 %s22, 1
          %s207 = sand.u32 %s22, 1
          %s208 = smul.addr %s207, 128
          %s209 = scalar_lea.vmem [#allocation2], %s208
          %s210 = smul.u32 4, %s12
          %s211 = smul.addr %s210, 8
          %s212 = scalar_lea.vmem %s0, %s211
          // Predicated region
          $region41: #{graph_attention_layer.3} parent=39 // pred_check
            _
          $region42: #{graph_attention_layer.3} parent=39 // pred_check_branch
            %214 = sbr.rel (0) target = $region44
          $region43: #{graph_attention_layer.3} parent=39 // pred_region
            // Predicated region
            $region45: #{graph_attention_layer.3} parent=43 // pred_check
              _
            $region46: #{graph_attention_layer.3} parent=43 // pred_check_branch
              %216 = sbr.rel (0) target = $region48
            $region47: #{graph_attention_layer.3} parent=43 // pred_region
              // Predicated region
              $region60: #{graph_attention_layer.3} parent=47 // pred_check
                _
              $region61: #{graph_attention_layer.3} parent=47 // pred_check_branch
                %262 = sbr.rel (0) target = $region63
              $region62: #{graph_attention_layer.3} parent=47 // pred_region
                loop: start=0, step=1, limit=1
                $region64: #{graph_attention_layer.3} parent=62 // loop_pre_header
                  _
                $region65: #{graph_attention_layer.3} parent=62 // loop_header
                  %s264 = sphi 0, %s268
                  %p265 = scmp.ge.s32.totalorder %s264, 1
                  %s269 = sphi %s212, %s212
                  %s270 = sphi %s209, %s209
                $region66: #{graph_attention_layer.3} parent=62 // loop_header_branch
                  %267 = sbr.rel (%p265) target = $region70
                $region67: #{graph_attention_layer.3} parent=62 // loop_body
                  %v271 = vld [vmem:[%s269] sm:$0xff]
                  %272 = vst [vmem:[%s270] sm:$0xff] %v271
                  %v273 = vld [vmem:[%s269 + $0x8] sm:$0xff]
                  %274 = vst [vmem:[%s270 + $0x8] sm:$0xff] %v273
                  %v275 = vld [vmem:[%s269 + $0x10] sm:$0xff]
                  %276 = vst [vmem:[%s270 + $0x10] sm:$0xff] %v275
                  %v277 = vld [vmem:[%s269 + $0x18] sm:$0xff]
                  %278 = vst [vmem:[%s270 + $0x18] sm:$0xff] %v277
                  %v279 = vld [vmem:[%s269 + $0x40] sm:$0xff]
                  %280 = vst [vmem:[%s270 + $0x20] sm:$0xff] %v279
                  %v281 = vld [vmem:[%s269 + $0x48] sm:$0xff]
                  %282 = vst [vmem:[%s270 + $0x28] sm:$0xff] %v281
                  %v283 = vld [vmem:[%s269 + $0x50] sm:$0xff]
                  %284 = vst [vmem:[%s270 + $0x30] sm:$0xff] %v283
                  %v285 = vld [vmem:[%s269 + $0x58] sm:$0xff]
                  %286 = vst [vmem:[%s270 + $0x38] sm:$0xff] %v285
                  %v287 = vld [vmem:[%s269 + $0x80] sm:$0xff]
                  %288 = vst [vmem:[%s270 + $0x40] sm:$0xff] %v287
                  %v289 = vld [vmem:[%s269 + $0x88] sm:$0xff]
                  %290 = vst [vmem:[%s270 + $0x48] sm:$0xff] %v289
                  %v291 = vld [vmem:[%s269 + $0x90] sm:$0xff]
                  %292 = vst [vmem:[%s270 + $0x50] sm:$0xff] %v291
                  %v293 = vld [vmem:[%s269 + $0x98] sm:$0xff]
                  %294 = vst [vmem:[%s270 + $0x58] sm:$0xff] %v293
                  %v295 = vld [vmem:[%s269 + $0xc0] sm:$0xff]
                  %296 = vst [vmem:[%s270 + $0x60] sm:$0xff] %v295
                  %v297 = vld [vmem:[%s269 + $0xc8] sm:$0xff]
                  %298 = vst [vmem:[%s270 + $0x68] sm:$0xff] %v297
                  %v299 = vld [vmem:[%s269 + $0xd0] sm:$0xff]
                  %300 = vst [vmem:[%s270 + $0x70] sm:$0xff] %v299
                  %v301 = vld [vmem:[%s269 + $0xd8] sm:$0xff]
                  %302 = vst [vmem:[%s270 + $0x78] sm:$0xff] %v301
                $region68: #{graph_attention_layer.3} parent=62 // loop_footer
                  %s268 = sadd.s32 1, %s264
                $region69: #{graph_attention_layer.3} parent=62 // loop_footer_branch
                  %263 = sbr.rel target = $region65
                $region70: #{graph_attention_layer.3} parent=62 // loop_exit
                  _
              $region63: #{graph_attention_layer.3} parent=47 // pred_fallthru
                _
              // Predicated region
              $region71: #{graph_attention_layer.3} parent=47 // pred_check
                _
              $region72: #{graph_attention_layer.3} parent=47 // pred_check_branch
                %304 = sbr.rel target = $region74
              $region73: #{graph_attention_layer.3} parent=47 // pred_region
                _
              $region74: #{graph_attention_layer.3} parent=47 // pred_fallthru
                _
            $region48: #{graph_attention_layer.3} parent=43 // pred_fallthru
              _
            // Predicated region
            $region49: #{graph_attention_layer.3} parent=43 // pred_check
              _
            $region50: #{graph_attention_layer.3} parent=43 // pred_check_branch
              %218 = sbr.rel target = $region52
            $region51: #{graph_attention_layer.3} parent=43 // pred_region
              %s220 = ssub.s32 256, 1
              loop: start=0, step=1, limit=1
              $region53: #{graph_attention_layer.3} parent=51 // loop_pre_header
                _
              $region54: #{graph_attention_layer.3} parent=51 // loop_header
                %s222 = sphi 0, %s226
                %p223 = scmp.ge.s32.totalorder %s222, 1
                %s227 = sphi %s212, %s212
                %s228 = sphi %s209, %s209
              $region55: #{graph_attention_layer.3} parent=51 // loop_header_branch
                %225 = sbr.rel (%p223) target = $region59
              $region56: #{graph_attention_layer.3} parent=51 // loop_body
                %v229 = vld [vmem:[%s227] sm:%s220]
                %230 = vst [vmem:[%s228] sm:%s220] %v229
                %v231 = vld [vmem:[%s227 + $0x8] sm:%s220]
                %232 = vst [vmem:[%s228 + $0x8] sm:%s220] %v231
                %v233 = vld [vmem:[%s227 + $0x10] sm:%s220]
                %234 = vst [vmem:[%s228 + $0x10] sm:%s220] %v233
                %v235 = vld [vmem:[%s227 + $0x18] sm:%s220]
                %236 = vst [vmem:[%s228 + $0x18] sm:%s220] %v235
                %v237 = vld [vmem:[%s227 + $0x40] sm:%s220]
                %238 = vst [vmem:[%s228 + $0x20] sm:%s220] %v237
                %v239 = vld [vmem:[%s227 + $0x48] sm:%s220]
                %240 = vst [vmem:[%s228 + $0x28] sm:%s220] %v239
                %v241 = vld [vmem:[%s227 + $0x50] sm:%s220]
                %242 = vst [vmem:[%s228 + $0x30] sm:%s220] %v241
                %v243 = vld [vmem:[%s227 + $0x58] sm:%s220]
                %244 = vst [vmem:[%s228 + $0x38] sm:%s220] %v243
                %v245 = vld [vmem:[%s227 + $0x80] sm:%s220]
                %246 = vst [vmem:[%s228 + $0x40] sm:%s220] %v245
                %v247 = vld [vmem:[%s227 + $0x88] sm:%s220]
                %248 = vst [vmem:[%s228 + $0x48] sm:%s220] %v247
                %v249 = vld [vmem:[%s227 + $0x90] sm:%s220]
                %250 = vst [vmem:[%s228 + $0x50] sm:%s220] %v249
                %v251 = vld [vmem:[%s227 + $0x98] sm:%s220]
                %252 = vst [vmem:[%s228 + $0x58] sm:%s220] %v251
                %v253 = vld [vmem:[%s227 + $0xc0] sm:%s220]
                %254 = vst [vmem:[%s228 + $0x60] sm:%s220] %v253
                %v255 = vld [vmem:[%s227 + $0xc8] sm:%s220]
                %256 = vst [vmem:[%s228 + $0x68] sm:%s220] %v255
                %v257 = vld [vmem:[%s227 + $0xd0] sm:%s220]
                %258 = vst [vmem:[%s228 + $0x70] sm:%s220] %v257
                %v259 = vld [vmem:[%s227 + $0xd8] sm:%s220]
                %260 = vst [vmem:[%s228 + $0x78] sm:%s220] %v259
              $region57: #{graph_attention_layer.3} parent=51 // loop_footer
                %s226 = sadd.s32 1, %s222
              $region58: #{graph_attention_layer.3} parent=51 // loop_footer_branch
                %221 = sbr.rel target = $region54
              $region59: #{graph_attention_layer.3} parent=51 // loop_exit
                _
            $region52: #{graph_attention_layer.3} parent=43 // pred_fallthru
              _
          $region44: #{graph_attention_layer.3} parent=39 // pred_fallthru
            _
          %305 = vnop
        $region40: #{graph_attention_layer.3} parent=35 // pred_fallthru
          _
      $region36: #{graph_attention_layer.3} parent=5 // pred_fallthru
        _
      %p306 = scmp.le.s32.totalorder 1, %s12
      %p307 = scmp.lt.s32.totalorder %s12, 3
      %p308 = pnand %p306, %p307
      %p309 = pneg %p308
      // Predicated region
      $region75: #{graph_attention_layer.3} parent=5 // pred_check
        _
      $region76: #{graph_attention_layer.3} parent=5 // pred_check_branch
        %311 = sbr.rel (%p308) target = $region78
      $region77: #{graph_attention_layer.3} parent=5 // pred_region
        %s312 = ssub.s32 %s12, 1
        %s313 = sand.u32 %s25, 1
        %s314 = sand.u32 %s25, 1
        %s315 = smul.addr %s314, 128
        %s316 = scalar_lea.vmem [#allocation2], %s315
        // Predicated region
        $region79: #{graph_attention_layer.3} parent=77 // pred_check
          %p317 = pneg %p38
        $region80: #{graph_attention_layer.3} parent=77 // pred_check_branch
          %319 = sbr.rel (%p317) target = $region82
        $region81: #{graph_attention_layer.3} parent=77 // pred_region
          _
        $region82: #{graph_attention_layer.3} parent=77 // pred_fallthru
          _
        %s320 = sand.u32 %s25, 1
        %s321 = sand.u32 %s25, 1
        %s322 = smul.addr %s321, 128
        %s323 = scalar_lea.vmem [#allocation2], %s322
        %p324 = pneg %p38
        %p325 = pneg %p35
        %p326 = pneg %p59
        %p327 = pneg %p56
        %p328 = pneg %p80
        %p329 = pneg %p77
        %p330 = pneg %p101
        %p331 = pneg %p98
        %p332 = pneg %p122
        %p333 = pneg %p119
        %p334 = pneg %p143
        %p335 = pneg %p140
        %p336 = pneg %p169
        %p337 = pneg %p166
        %s338 = smul.u32 4, %s17
        %p339 = scmp.lt.s32.totalorder %s338, 7
        %s340 = scalar_select %p339, %s338, 7
        %s341 = smul.addr %s340, 8
        %s342 = scalar_lea.vmem %s6, %s341
        %s343 = smul.u32 4, %s17
        %s344 = smul.u32 4, %s17
        %p345 = scmp.lt.s32.totalorder %s344, 7
        %s346 = scalar_select %p345, %s344, 7
        %s347 = smul.addr %s346, 8
        %s348 = scalar_lea.vmem %s6, %s347
        %s349 = smul.u32 4, %s17
        %v350 = vld [vmem:[%s316] sm:$0xff]
        %v351 = vld [vmem:[%s316 + $0x8] sm:$0xff]
        %v352 = vld [vmem:[%s316 + $0x10] sm:$0xff]
        %v353 = vld [vmem:[%s316 + $0x18] sm:$0xff]
        %v354 = vld [vmem:[%s1] sm:$0xff]
        %v355 = vld [vmem:[%s1 + $0x8] sm:$0xff]
        %v356 = vld [vmem:[%s1 + $0x10] sm:$0xff]
        %v357 = vld [vmem:[%s1 + $0x18] sm:$0xff]
        %v358 = vld [vmem:[%s1 + $0x20] sm:$0xff]
        %v359 = vld [vmem:[%s1 + $0x28] sm:$0xff]
        %v360 = vld [vmem:[%s1 + $0x30] sm:$0xff]
        %v361 = vld [vmem:[%s1 + $0x38] sm:$0xff]
        %v362 = vld [vmem:[%s3] sm:$0x1]
        %v364 = vlaneseq
        %v365 = vshrl.u32 %v364, 7
        %v366 = vsub.s32 0, %v365
        %v367 = vrot.slane %v362, %v366
        %vm369 = vcmask 162816
        %v371 = vsel %vm369, %v350, 0
        %v374 = vsel %vm369, %v351, 0
        %v377 = vsel %vm369, %v352, 0
        %v380 = vsel %vm369, %v353, 0
        %v383 = vsel %vm369, %v354, 0
        %v386 = vsel %vm369, %v355, 0
        %v389 = vsel %vm369, %v356, 0
        %v392 = vsel %vm369, %v357, 0
        %v395 = vsel %vm369, %v358, 0
        %v398 = vsel %vm369, %v359, 0
        %v401 = vsel %vm369, %v360, 0
        %v404 = vsel %vm369, %v361, 0
        %406 = vmatprep.subr.mxu0 0.0
        %407 = vmatpush1.xpose.msra.mxu0 0.0
        %408 = vmatprep.subr.mxu0 0.0
        %409 = vmatpush1.xpose.msra.mxu0 0.0
        %410 = vmatprep.subr.mxu0 0.0
        %411 = vmatpush1.xpose.msra.mxu0 0.0
        %412 = vmatprep.subr.mxu0 0.0
        %413 = vmatpush1.xpose.msra.mxu0 0.0
        %414 = vmatprep.subr.mxu0 0.0
        %415 = vmatpush1.xpose.msra.mxu0 0.0
        %416 = vmatprep.subr.mxu0 0.0
        %417 = vmatpush1.xpose.msra.mxu0 0.0
        %418 = vmatprep.subr.mxu0 0.0
        %419 = vmatpush1.xpose.msra.mxu0 0.0
        %420 = vmatprep.subr.mxu0 0.0
        %421 = vmatpush1.xpose.msra.mxu0 0.0
        %422 = vmatprep.subr.mxu0 0.0
        %423 = vmatpush1.xpose.msra.mxu0 %v404
        %424 = vmatprep.subr.mxu0 0.0
        %425 = vmatpush1.xpose.msra.mxu0 %v401
        %426 = vmatprep.subr.mxu0 0.0
        %427 = vmatpush1.xpose.msra.mxu0 %v398
        %428 = vmatprep.subr.mxu0 0.0
        %429 = vmatpush1.xpose.msra.mxu0 %v395
        %430 = vmatprep.subr.mxu0 0.0
        %431 = vmatpush1.xpose.msra.mxu0 %v392
        %432 = vmatprep.subr.mxu0 0.0
        %433 = vmatpush1.xpose.msra.mxu0 %v389
        %434 = vmatprep.subr.mxu0 0.0
        %435 = vmatpush1.xpose.msra.mxu0 %v386
        %436 = vmatprep.subr.mxu0 0.0
        %437 = vmatpush1.xpose.msra.mxu0 %v383
        %438 = vmatprep.subr.mxu0 0.0
        %439 = vmatpush2.xpose.msra.mxu0 0.0
        %440 = vmatprep.subr.mxu0 0.0
        %441 = vmatpush2.xpose.msra.mxu0 0.0
        %442 = vmatprep.subr.mxu0 0.0
        %443 = vmatpush2.xpose.msra.mxu0 0.0
        %444 = vmatprep.subr.mxu0 0.0
        %445 = vmatpush2.xpose.msra.mxu0 0.0
        %446 = vmatprep.subr.mxu0 0.0
        %447 = vmatpush2.xpose.msra.mxu0 0.0
        %448 = vmatprep.subr.mxu0 0.0
        %449 = vmatpush2.xpose.msra.mxu0 0.0
        %450 = vmatprep.subr.mxu0 0.0
        %451 = vmatpush2.xpose.msra.mxu0 0.0
        %452 = vmatprep.subr.mxu0 0.0
        %453 = vmatpush2.xpose.msra.mxu0 0.0
        %454 = vmatprep.subr.mxu0 0.0
        %455 = vmatpush2.xpose.msra.mxu0 0.0
        %456 = vmatprep.subr.mxu0 0.0
        %457 = vmatpush2.xpose.msra.mxu0 0.0
        %458 = vmatprep.subr.mxu0 0.0
        %459 = vmatpush2.xpose.msra.mxu0 0.0
        %460 = vmatprep.subr.mxu0 0.0
        %461 = vmatpush2.xpose.msra.mxu0 0.0
        %462 = vmatprep.subr.mxu0 0.0
        %463 = vmatpush2.xpose.msra.mxu0 0.0
        %464 = vmatprep.subr.mxu0 0.0
        %465 = vmatpush2.xpose.msra.mxu0 0.0
        %466 = vmatprep.subr.mxu0 0.0
        %467 = vmatpush2.xpose.msra.mxu0 0.0
        %468 = vmatprep.subr.mxu0 0.0
        %469 = vmatpush2.xpose.msra.mxu0 0.0
        %470 = vmatprep.mubr.f32.mxu0 0.0
        %471 = vmatmul.mubr.f32.gmra.mxu0 %v371
        %v472 = vpop.f32.mrf.mxu0
        %v473 = vadd.f32 %v367, %v472
        %v474 = vpop.f32.mrf.mxu0
        %475 = vmatprep.mubr.f32.mxu0 0.0
        %476 = vmatmul.mubr.f32.gmra.mxu0 %v374
        %v477 = vpop.f32.mrf.mxu0
        %v478 = vadd.f32 %v367, %v477
        %v479 = vpop.f32.mrf.mxu0
        %480 = vmatprep.mubr.f32.mxu0 0.0
        %481 = vmatmul.mubr.f32.gmra.mxu0 %v377
        %v482 = vpop.f32.mrf.mxu0
        %v483 = vadd.f32 %v367, %v482
        %v484 = vpop.f32.mrf.mxu0
        %485 = vmatprep.mubr.f32.mxu0 0.0
        %486 = vmatmul.mubr.f32.gmra.mxu0 %v380
        %v487 = vpop.f32.mrf.mxu0
        %v488 = vadd.f32 %v367, %v487
        %v489 = vpop.f32.mrf.mxu0
        %490 = vdwg.mxu0
        %vm491 = vcmask 523264
        %v492 = vsel %vm491, %v473, -inf
        %493 = vmax.xlane.f32.xlu0 %v492
        %v494 = vpop.xlane.xlu0 %493
        %v495 = vsel %vm491, %v478, -inf
        %496 = vmax.xlane.f32.xlu0 %v495
        %v497 = vpop.xlane.xlu0 %496
        %v498 = vsel %vm491, %v483, -inf
        %499 = vmax.xlane.f32.xlu0 %v498
        %v500 = vpop.xlane.xlu0 %499
        %v501 = vsel %vm491, %v488, -inf
        %502 = vmax.xlane.f32.xlu0 %v501
        %v503 = vpop.xlane.xlu0 %502
        %v504 = vsub.f32 %v473, %v494
        %v505 = vsub.f32 %v478, %v497
        %v506 = vsub.f32 %v483, %v500
        %v507 = vsub.f32 %v488, %v503
        %v508 = vmul.f32 %v504, 1.442695
        %v509 = vpow.pop %v508
        %v510 = vmul.f32 %v505, 1.442695
        %v511 = vpow.pop %v510
        %v512 = vmul.f32 %v506, 1.442695
        %v513 = vpow.pop %v512
        %v514 = vmul.f32 %v507, 1.442695
        %v515 = vpow.pop %v514
        %v516 = vsel %vm491, %v509, 0.0
        %517 = vadd.xlane.f32.xlu0 %v516
        %v518 = vpop.xlane.xlu0 %517
        %v519 = vsel %vm491, %v511, 0.0
        %520 = vadd.xlane.f32.xlu0 %v519
        %v521 = vpop.xlane.xlu0 %520
        %v522 = vsel %vm491, %v513, 0.0
        %523 = vadd.xlane.f32.xlu0 %v522
        %v524 = vpop.xlane.xlu0 %523
        %v525 = vsel %vm491, %v515, 0.0
        %526 = vadd.xlane.f32.xlu0 %v525
        %v527 = vpop.xlane.xlu0 %526
        %v528 = vrcp.pop %v518
        %v529 = vmul.f32 %v509, %v528
        %v530 = vrcp.pop %v521
        %v531 = vmul.f32 %v511, %v530
        %v532 = vrcp.pop %v524
        %v533 = vmul.f32 %v513, %v532
        %v534 = vrcp.pop %v527
        %v535 = vmul.f32 %v515, %v534
        %v536 = vld [vmem:[%s2] sm:$0xff]
        %v537 = vld [vmem:[%s2 + $0x8] sm:$0xff]
        %v538 = vld [vmem:[%s2 + $0x10] sm:$0xff]
        %v539 = vld [vmem:[%s2 + $0x18] sm:$0xff]
        %v540 = vld [vmem:[%s2 + $0x20] sm:$0xff]
        %v541 = vld [vmem:[%s2 + $0x28] sm:$0xff]
        %v542 = vld [vmem:[%s2 + $0x30] sm:$0xff]
        %v543 = vld [vmem:[%s2 + $0x38] sm:$0xff]
        %s544 = scalar_lea.vmem %s316, 32 [#allocation2]
        %v545 = vld [vmem:[%s544] sm:$0xff]
        %v546 = vld [vmem:[%s544 + $0x8] sm:$0xff]
        %v547 = vld [vmem:[%s544 + $0x10] sm:$0xff]
        %v548 = vld [vmem:[%s544 + $0x18] sm:$0xff]
        %s549 = scalar_lea.vmem %s1, 64
        %v550 = vld [vmem:[%s549] sm:$0xff]
        %v551 = vld [vmem:[%s549 + $0x8] sm:$0xff]
        %v552 = vld [vmem:[%s549 + $0x10] sm:$0xff]
        %v553 = vld [vmem:[%s549 + $0x18] sm:$0xff]
        %v554 = vld [vmem:[%s549 + $0x20] sm:$0xff]
        %v555 = vld [vmem:[%s549 + $0x28] sm:$0xff]
        %v556 = vld [vmem:[%s549 + $0x30] sm:$0xff]
        %v557 = vld [vmem:[%s549 + $0x38] sm:$0xff]
        %v559 = vsel %vm369, %v545, 0
        %v562 = vsel %vm369, %v546, 0
        %v565 = vsel %vm369, %v547, 0
        %v568 = vsel %vm369, %v548, 0
        %v571 = vsel %vm369, %v550, 0
        %v574 = vsel %vm369, %v551, 0
        %v577 = vsel %vm369, %v552, 0
        %v580 = vsel %vm369, %v553, 0
        %v583 = vsel %vm369, %v554, 0
        %v586 = vsel %vm369, %v555, 0
        %v589 = vsel %vm369, %v556, 0
        %v592 = vsel %vm369, %v557, 0
        %594 = vmatprep.subr.mxu0 0.0
        %595 = vmatpush1.xpose.msra.mxu0 0.0
        %596 = vmatprep.subr.mxu0 0.0
        %597 = vmatpush1.xpose.msra.mxu0 0.0
        %598 = vmatprep.subr.mxu0 0.0
        %599 = vmatpush1.xpose.msra.mxu0 0.0
        %600 = vmatprep.subr.mxu0 0.0
        %601 = vmatpush1.xpose.msra.mxu0 0.0
        %602 = vmatprep.subr.mxu0 0.0
        %603 = vmatpush1.xpose.msra.mxu0 0.0
        %604 = vmatprep.subr.mxu0 0.0
        %605 = vmatpush1.xpose.msra.mxu0 0.0
        %606 = vmatprep.subr.mxu0 0.0
        %607 = vmatpush1.xpose.msra.mxu0 0.0
        %608 = vmatprep.subr.mxu0 0.0
        %609 = vmatpush1.xpose.msra.mxu0 0.0
        %610 = vmatprep.subr.mxu0 0.0
        %611 = vmatpush1.xpose.msra.mxu0 %v592
        %612 = vmatprep.subr.mxu0 0.0
        %613 = vmatpush1.xpose.msra.mxu0 %v589
        %614 = vmatprep.subr.mxu0 0.0
        %615 = vmatpush1.xpose.msra.mxu0 %v586
        %616 = vmatprep.subr.mxu0 0.0
        %617 = vmatpush1.xpose.msra.mxu0 %v583
        %618 = vmatprep.subr.mxu0 0.0
        %619 = vmatpush1.xpose.msra.mxu0 %v580
        %620 = vmatprep.subr.mxu0 0.0
        %621 = vmatpush1.xpose.msra.mxu0 %v577
        %622 = vmatprep.subr.mxu0 0.0
        %623 = vmatpush1.xpose.msra.mxu0 %v574
        %624 = vmatprep.subr.mxu0 0.0
        %625 = vmatpush1.xpose.msra.mxu0 %v571
        %626 = vmatprep.subr.mxu0 0.0
        %627 = vmatpush2.xpose.msra.mxu0 0.0
        %628 = vmatprep.subr.mxu0 0.0
        %629 = vmatpush2.xpose.msra.mxu0 0.0
        %630 = vmatprep.subr.mxu0 0.0
        %631 = vmatpush2.xpose.msra.mxu0 0.0
        %632 = vmatprep.subr.mxu0 0.0
        %633 = vmatpush2.xpose.msra.mxu0 0.0
        %634 = vmatprep.subr.mxu0 0.0
        %635 = vmatpush2.xpose.msra.mxu0 0.0
        %636 = vmatprep.subr.mxu0 0.0
        %637 = vmatpush2.xpose.msra.mxu0 0.0
        %638 = vmatprep.subr.mxu0 0.0
        %639 = vmatpush2.xpose.msra.mxu0 0.0
        %640 = vmatprep.subr.mxu0 0.0
        %641 = vmatpush2.xpose.msra.mxu0 0.0
        %642 = vmatprep.subr.mxu0 0.0
        %643 = vmatpush2.xpose.msra.mxu0 0.0
        %644 = vmatprep.subr.mxu0 0.0
        %645 = vmatpush2.xpose.msra.mxu0 0.0
        %646 = vmatprep.subr.mxu0 0.0
        %647 = vmatpush2.xpose.msra.mxu0 0.0
        %648 = vmatprep.subr.mxu0 0.0
        %649 = vmatpush2.xpose.msra.mxu0 0.0
        %650 = vmatprep.subr.mxu0 0.0
        %651 = vmatpush2.xpose.msra.mxu0 0.0
        %652 = vmatprep.subr.mxu0 0.0
        %653 = vmatpush2.xpose.msra.mxu0 0.0
        %654 = vmatprep.subr.mxu0 0.0
        %655 = vmatpush2.xpose.msra.mxu0 0.0
        %656 = vmatprep.subr.mxu0 0.0
        %657 = vmatpush2.xpose.msra.mxu0 0.0
        %658 = vmatprep.mubr.f32.mxu0 0.0
        %659 = vmatmul.mubr.f32.gmra.mxu0 %v559
        %v660 = vpop.f32.mrf.mxu0
        %v661 = vadd.f32 %v367, %v660
        %v662 = vpop.f32.mrf.mxu0
        %663 = vmatprep.mubr.f32.mxu0 0.0
        %664 = vmatmul.mubr.f32.gmra.mxu0 %v562
        %v665 = vpop.f32.mrf.mxu0
        %v666 = vadd.f32 %v367, %v665
        %v667 = vpop.f32.mrf.mxu0
        %668 = vmatprep.mubr.f32.mxu0 0.0
        %669 = vmatmul.mubr.f32.gmra.mxu0 %v565
        %v670 = vpop.f32.mrf.mxu0
        %v671 = vadd.f32 %v367, %v670
        %v672 = vpop.f32.mrf.mxu0
        %673 = vmatprep.mubr.f32.mxu0 0.0
        %674 = vmatmul.mubr.f32.gmra.mxu0 %v568
        %v675 = vpop.f32.mrf.mxu0
        %v676 = vadd.f32 %v367, %v675
        %v677 = vpop.f32.mrf.mxu0
        %678 = vdwg.mxu0
        %v679 = vsel %vm491, %v661, -inf
        %680 = vmax.xlane.f32.xlu0 %v679
        %v681 = vpop.xlane.xlu0 %680
        %v682 = vsel %vm491, %v666, -inf
        %683 = vmax.xlane.f32.xlu0 %v682
        %v684 = vpop.xlane.xlu0 %683
        %v685 = vsel %vm491, %v671, -inf
        %686 = vmax.xlane.f32.xlu0 %v685
        %v687 = vpop.xlane.xlu0 %686
        %v688 = vsel %vm491, %v676, -inf
        %689 = vmax.xlane.f32.xlu0 %v688
        %v690 = vpop.xlane.xlu0 %689
        %v691 = vsub.f32 %v661, %v681
        %v692 = vsub.f32 %v666, %v684
        %v693 = vsub.f32 %v671, %v687
        %v694 = vsub.f32 %v676, %v690
        %v695 = vmul.f32 %v691, 1.442695
        %v696 = vpow.pop %v695
        %v697 = vmul.f32 %v692, 1.442695
        %v698 = vpow.pop %v697
        %v699 = vmul.f32 %v693, 1.442695
        %v700 = vpow.pop %v699
        %v701 = vmul.f32 %v694, 1.442695
        %v702 = vpow.pop %v701
        %v703 = vsel %vm491, %v696, 0.0
        %704 = vadd.xlane.f32.xlu0 %v703
        %v705 = vpop.xlane.xlu0 %704
        %v706 = vsel %vm491, %v698, 0.0
        %707 = vadd.xlane.f32.xlu0 %v706
        %v708 = vpop.xlane.xlu0 %707
        %v709 = vsel %vm491, %v700, 0.0
        %710 = vadd.xlane.f32.xlu0 %v709
        %v711 = vpop.xlane.xlu0 %710
        %v712 = vsel %vm491, %v702, 0.0
        %713 = vadd.xlane.f32.xlu0 %v712
        %v714 = vpop.xlane.xlu0 %713
        %v715 = vrcp.pop %v705
        %v716 = vmul.f32 %v696, %v715
        %v717 = vrcp.pop %v708
        %v718 = vmul.f32 %v698, %v717
        %v719 = vrcp.pop %v711
        %v720 = vmul.f32 %v700, %v719
        %v721 = vrcp.pop %v714
        %v722 = vmul.f32 %v702, %v721
        %s723 = scalar_lea.vmem %s2, 64
        %v724 = vld [vmem:[%s723] sm:$0xff]
        %v725 = vld [vmem:[%s723 + $0x8] sm:$0xff]
        %v726 = vld [vmem:[%s723 + $0x10] sm:$0xff]
        %v727 = vld [vmem:[%s723 + $0x18] sm:$0xff]
        %v728 = vld [vmem:[%s723 + $0x20] sm:$0xff]
        %v729 = vld [vmem:[%s723 + $0x28] sm:$0xff]
        %v730 = vld [vmem:[%s723 + $0x30] sm:$0xff]
        %v731 = vld [vmem:[%s723 + $0x38] sm:$0xff]
        %v733 = vsel %vm491, %v716, 0
        %v736 = vsel %vm491, %v718, 0
        %v739 = vsel %vm491, %v720, 0
        %v742 = vsel %vm491, %v722, 0
        %744 = vmatprep.subr.mxu0 0.0
        %745 = vmatpush1.msra.mxu0 0.0
        %746 = vmatprep.subr.mxu0 0.0
        %747 = vmatpush1.msra.mxu0 0.0
        %748 = vmatprep.subr.mxu0 0.0
        %749 = vmatpush1.msra.mxu0 0.0
        %750 = vmatprep.subr.mxu0 0.0
        %751 = vmatpush1.msra.mxu0 0.0
        %752 = vmatprep.subr.mxu0 0.0
        %753 = vmatpush1.msra.mxu0 0.0
        %754 = vmatprep.subr.mxu0 0.0
        %755 = vmatpush1.msra.mxu0 0.0
        %756 = vmatprep.subr.mxu0 0.0
        %757 = vmatpush1.msra.mxu0 0.0
        %758 = vmatprep.subr.mxu0 0.0
        %759 = vmatpush1.msra.mxu0 0.0
        %760 = vmatprep.subr.mxu0 0.0
        %761 = vmatpush1.msra.mxu0 %v731
        %762 = vmatprep.subr.mxu0 0.0
        %763 = vmatpush1.msra.mxu0 %v730
        %764 = vmatprep.subr.mxu0 0.0
        %765 = vmatpush1.msra.mxu0 %v729
        %766 = vmatprep.subr.mxu0 0.0
        %767 = vmatpush1.msra.mxu0 %v728
        %768 = vmatprep.subr.mxu0 0.0
        %769 = vmatpush1.msra.mxu0 %v727
        %770 = vmatprep.subr.mxu0 0.0
        %771 = vmatpush1.msra.mxu0 %v726
        %772 = vmatprep.subr.mxu0 0.0
        %773 = vmatpush1.msra.mxu0 %v725
        %774 = vmatprep.subr.mxu0 0.0
        %775 = vmatpush1.msra.mxu0 %v724
        %776 = vmatprep.subr.mxu0 0.0
        %777 = vmatpush2.msra.mxu0 0.0
        %778 = vmatprep.subr.mxu0 0.0
        %779 = vmatpush2.msra.mxu0 0.0
        %780 = vmatprep.subr.mxu0 0.0
        %781 = vmatpush2.msra.mxu0 0.0
        %782 = vmatprep.subr.mxu0 0.0
        %783 = vmatpush2.msra.mxu0 0.0
        %784 = vmatprep.subr.mxu0 0.0
        %785 = vmatpush2.msra.mxu0 0.0
        %786 = vmatprep.subr.mxu0 0.0
        %787 = vmatpush2.msra.mxu0 0.0
        %788 = vmatprep.subr.mxu0 0.0
        %789 = vmatpush2.msra.mxu0 0.0
        %790 = vmatprep.subr.mxu0 0.0
        %791 = vmatpush2.msra.mxu0 0.0
        %792 = vmatprep.subr.mxu0 0.0
        %793 = vmatpush2.msra.mxu0 0.0
        %794 = vmatprep.subr.mxu0 0.0
        %795 = vmatpush2.msra.mxu0 0.0
        %796 = vmatprep.subr.mxu0 0.0
        %797 = vmatpush2.msra.mxu0 0.0
        %798 = vmatprep.subr.mxu0 0.0
        %799 = vmatpush2.msra.mxu0 0.0
        %800 = vmatprep.subr.mxu0 0.0
        %801 = vmatpush2.msra.mxu0 0.0
        %802 = vmatprep.subr.mxu0 0.0
        %803 = vmatpush2.msra.mxu0 0.0
        %804 = vmatprep.subr.mxu0 0.0
        %805 = vmatpush2.msra.mxu0 0.0
        %806 = vmatprep.subr.mxu0 0.0
        %807 = vmatpush2.msra.mxu0 0.0
        %808 = vmatprep.mubr.f32.mxu0 0.0
        %809 = vmatmul.mubr.f32.gmra.mxu0 %v733
        %v810 = vpop.f32.mrf.mxu0
        %v811 = vadd.f32 0.0, %v810
        %v812 = vpop.f32.mrf.mxu0
        %813 = vmatprep.mubr.f32.mxu0 0.0
        %814 = vmatmul.mubr.f32.gmra.mxu0 %v736
        %v815 = vpop.f32.mrf.mxu0
        %v816 = vadd.f32 0.0, %v815
        %v817 = vpop.f32.mrf.mxu0
        %818 = vmatprep.mubr.f32.mxu0 0.0
        %819 = vmatmul.mubr.f32.gmra.mxu0 %v739
        %v820 = vpop.f32.mrf.mxu0
        %v821 = vadd.f32 0.0, %v820
        %v822 = vpop.f32.mrf.mxu0
        %823 = vmatprep.mubr.f32.mxu0 0.0
        %824 = vmatmul.mubr.f32.gmra.mxu0 %v742
        %v825 = vpop.f32.mrf.mxu0
        %v826 = vadd.f32 0.0, %v825
        %v827 = vpop.f32.mrf.mxu0
        %828 = vdwg.mxu0
        %v830 = vsel %vm491, %v529, 0
        %v833 = vsel %vm491, %v531, 0
        %v836 = vsel %vm491, %v533, 0
        %v839 = vsel %vm491, %v535, 0
        %841 = vmatprep.subr.mxu0 0.0
        %842 = vmatpush1.msra.mxu0 0.0
        %843 = vmatprep.subr.mxu0 0.0
        %844 = vmatpush1.msra.mxu0 0.0
        %845 = vmatprep.subr.mxu0 0.0
        %846 = vmatpush1.msra.mxu0 0.0
        %847 = vmatprep.subr.mxu0 0.0
        %848 = vmatpush1.msra.mxu0 0.0
        %849 = vmatprep.subr.mxu0 0.0
        %850 = vmatpush1.msra.mxu0 0.0
        %851 = vmatprep.subr.mxu0 0.0
        %852 = vmatpush1.msra.mxu0 0.0
        %853 = vmatprep.subr.mxu0 0.0
        %854 = vmatpush1.msra.mxu0 0.0
        %855 = vmatprep.subr.mxu0 0.0
        %856 = vmatpush1.msra.mxu0 0.0
        %857 = vmatprep.subr.mxu0 0.0
        %858 = vmatpush1.msra.mxu0 %v543
        %859 = vmatprep.subr.mxu0 0.0
        %860 = vmatpush1.msra.mxu0 %v542
        %861 = vmatprep.subr.mxu0 0.0
        %862 = vmatpush1.msra.mxu0 %v541
        %863 = vmatprep.subr.mxu0 0.0
        %864 = vmatpush1.msra.mxu0 %v540
        %865 = vmatprep.subr.mxu0 0.0
        %866 = vmatpush1.msra.mxu0 %v539
        %867 = vmatprep.subr.mxu0 0.0
        %868 = vmatpush1.msra.mxu0 %v538
        %869 = vmatprep.subr.mxu0 0.0
        %870 = vmatpush1.msra.mxu0 %v537
        %871 = vmatprep.subr.mxu0 0.0
        %872 = vmatpush1.msra.mxu0 %v536
        %873 = vmatprep.subr.mxu0 0.0
        %874 = vmatpush2.msra.mxu0 0.0
        %875 = vmatprep.subr.mxu0 0.0
        %876 = vmatpush2.msra.mxu0 0.0
        %877 = vmatprep.subr.mxu0 0.0
        %878 = vmatpush2.msra.mxu0 0.0
        %879 = vmatprep.subr.mxu0 0.0
        %880 = vmatpush2.msra.mxu0 0.0
        %881 = vmatprep.subr.mxu0 0.0
        %882 = vmatpush2.msra.mxu0 0.0
        %883 = vmatprep.subr.mxu0 0.0
        %884 = vmatpush2.msra.mxu0 0.0
        %885 = vmatprep.subr.mxu0 0.0
        %886 = vmatpush2.msra.mxu0 0.0
        %887 = vmatprep.subr.mxu0 0.0
        %888 = vmatpush2.msra.mxu0 0.0
        %889 = vmatprep.subr.mxu0 0.0
        %890 = vmatpush2.msra.mxu0 0.0
        %891 = vmatprep.subr.mxu0 0.0
        %892 = vmatpush2.msra.mxu0 0.0
        %893 = vmatprep.subr.mxu0 0.0
        %894 = vmatpush2.msra.mxu0 0.0
        %895 = vmatprep.subr.mxu0 0.0
        %896 = vmatpush2.msra.mxu0 0.0
        %897 = vmatprep.subr.mxu0 0.0
        %898 = vmatpush2.msra.mxu0 0.0
        %899 = vmatprep.subr.mxu0 0.0
        %900 = vmatpush2.msra.mxu0 0.0
        %901 = vmatprep.subr.mxu0 0.0
        %902 = vmatpush2.msra.mxu0 0.0
        %903 = vmatprep.subr.mxu0 0.0
        %904 = vmatpush2.msra.mxu0 0.0
        %905 = vmatprep.mubr.f32.mxu0 0.0
        %906 = vmatmul.mubr.f32.gmra.mxu0 %v830
        %v907 = vpop.f32.mrf.mxu0
        %v908 = vadd.f32 %v811, %v907
        %v909 = vpop.f32.mrf.mxu0
        %910 = vmatprep.mubr.f32.mxu0 0.0
        %911 = vmatmul.mubr.f32.gmra.mxu0 %v833
        %v912 = vpop.f32.mrf.mxu0
        %v913 = vadd.f32 %v816, %v912
        %v914 = vpop.f32.mrf.mxu0
        %915 = vmatprep.mubr.f32.mxu0 0.0
        %916 = vmatmul.mubr.f32.gmra.mxu0 %v836
        %v917 = vpop.f32.mrf.mxu0
        %v918 = vadd.f32 %v821, %v917
        %v919 = vpop.f32.mrf.mxu0
        %920 = vmatprep.mubr.f32.mxu0 0.0
        %921 = vmatmul.mubr.f32.gmra.mxu0 %v839
        %v922 = vpop.f32.mrf.mxu0
        %v923 = vadd.f32 %v826, %v922
        %v924 = vpop.f32.mrf.mxu0
        %925 = vdwg.mxu0
        %s926 = scalar_lea.vmem %s316, 64 [#allocation2]
        %v927 = vld [vmem:[%s926] sm:$0xff]
        %v928 = vld [vmem:[%s926 + $0x8] sm:$0xff]
        %v929 = vld [vmem:[%s926 + $0x10] sm:$0xff]
        %v930 = vld [vmem:[%s926 + $0x18] sm:$0xff]
        %s931 = scalar_lea.vmem %s1, 128
        %v932 = vld [vmem:[%s931] sm:$0xff]
        %v933 = vld [vmem:[%s931 + $0x8] sm:$0xff]
        %v934 = vld [vmem:[%s931 + $0x10] sm:$0xff]
        %v935 = vld [vmem:[%s931 + $0x18] sm:$0xff]
        %v936 = vld [vmem:[%s931 + $0x20] sm:$0xff]
        %v937 = vld [vmem:[%s931 + $0x28] sm:$0xff]
        %v938 = vld [vmem:[%s931 + $0x30] sm:$0xff]
        %v939 = vld [vmem:[%s931 + $0x38] sm:$0xff]
        %v941 = vsel %vm369, %v927, 0
        %v944 = vsel %vm369, %v928, 0
        %v947 = vsel %vm369, %v929, 0
        %v950 = vsel %vm369, %v930, 0
        %v953 = vsel %vm369, %v932, 0
        %v956 = vsel %vm369, %v933, 0
        %v959 = vsel %vm369, %v934, 0
        %v962 = vsel %vm369, %v935, 0
        %v965 = vsel %vm369, %v936, 0
        %v968 = vsel %vm369, %v937, 0
        %v971 = vsel %vm369, %v938, 0
        %v974 = vsel %vm369, %v939, 0
        %976 = vmatprep.subr.mxu0 0.0
        %977 = vmatpush1.xpose.msra.mxu0 0.0
        %978 = vmatprep.subr.mxu0 0.0
        %979 = vmatpush1.xpose.msra.mxu0 0.0
        %980 = vmatprep.subr.mxu0 0.0
        %981 = vmatpush1.xpose.msra.mxu0 0.0
        %982 = vmatprep.subr.mxu0 0.0
        %983 = vmatpush1.xpose.msra.mxu0 0.0
        %984 = vmatprep.subr.mxu0 0.0
        %985 = vmatpush1.xpose.msra.mxu0 0.0
        %986 = vmatprep.subr.mxu0 0.0
        %987 = vmatpush1.xpose.msra.mxu0 0.0
        %988 = vmatprep.subr.mxu0 0.0
        %989 = vmatpush1.xpose.msra.mxu0 0.0
        %990 = vmatprep.subr.mxu0 0.0
        %991 = vmatpush1.xpose.msra.mxu0 0.0
        %992 = vmatprep.subr.mxu0 0.0
        %993 = vmatpush1.xpose.msra.mxu0 %v974
        %994 = vmatprep.subr.mxu0 0.0
        %995 = vmatpush1.xpose.msra.mxu0 %v971
        %996 = vmatprep.subr.mxu0 0.0
        %997 = vmatpush1.xpose.msra.mxu0 %v968
        %998 = vmatprep.subr.mxu0 0.0
        %999 = vmatpush1.xpose.msra.mxu0 %v965
        %1000 = vmatprep.subr.mxu0 0.0
        %1001 = vmatpush1.xpose.msra.mxu0 %v962
        %1002 = vmatprep.subr.mxu0 0.0
        %1003 = vmatpush1.xpose.msra.mxu0 %v959
        %1004 = vmatprep.subr.mxu0 0.0
        %1005 = vmatpush1.xpose.msra.mxu0 %v956
        %1006 = vmatprep.subr.mxu0 0.0
        %1007 = vmatpush1.xpose.msra.mxu0 %v953
        %1008 = vmatprep.subr.mxu0 0.0
        %1009 = vmatpush2.xpose.msra.mxu0 0.0
        %1010 = vmatprep.subr.mxu0 0.0
        %1011 = vmatpush2.xpose.msra.mxu0 0.0
        %1012 = vmatprep.subr.mxu0 0.0
        %1013 = vmatpush2.xpose.msra.mxu0 0.0
        %1014 = vmatprep.subr.mxu0 0.0
        %1015 = vmatpush2.xpose.msra.mxu0 0.0
        %1016 = vmatprep.subr.mxu0 0.0
        %1017 = vmatpush2.xpose.msra.mxu0 0.0
        %1018 = vmatprep.subr.mxu0 0.0
        %1019 = vmatpush2.xpose.msra.mxu0 0.0
        %1020 = vmatprep.subr.mxu0 0.0
        %1021 = vmatpush2.xpose.msra.mxu0 0.0
        %1022 = vmatprep.subr.mxu0 0.0
        %1023 = vmatpush2.xpose.msra.mxu0 0.0
        %1024 = vmatprep.subr.mxu0 0.0
        %1025 = vmatpush2.xpose.msra.mxu0 0.0
        %1026 = vmatprep.subr.mxu0 0.0
        %1027 = vmatpush2.xpose.msra.mxu0 0.0
        %1028 = vmatprep.subr.mxu0 0.0
        %1029 = vmatpush2.xpose.msra.mxu0 0.0
        %1030 = vmatprep.subr.mxu0 0.0
        %1031 = vmatpush2.xpose.msra.mxu0 0.0
        %1032 = vmatprep.subr.mxu0 0.0
        %1033 = vmatpush2.xpose.msra.mxu0 0.0
        %1034 = vmatprep.subr.mxu0 0.0
        %1035 = vmatpush2.xpose.msra.mxu0 0.0
        %1036 = vmatprep.subr.mxu0 0.0
        %1037 = vmatpush2.xpose.msra.mxu0 0.0
        %1038 = vmatprep.subr.mxu0 0.0
        %1039 = vmatpush2.xpose.msra.mxu0 0.0
        %1040 = vmatprep.mubr.f32.mxu0 0.0
        %1041 = vmatmul.mubr.f32.gmra.mxu0 %v941
        %v1042 = vpop.f32.mrf.mxu0
        %v1043 = vadd.f32 %v367, %v1042
        %v1044 = vpop.f32.mrf.mxu0
        %1045 = vmatprep.mubr.f32.mxu0 0.0
        %1046 = vmatmul.mubr.f32.gmra.mxu0 %v944
        %v1047 = vpop.f32.mrf.mxu0
        %v1048 = vadd.f32 %v367, %v1047
        %v1049 = vpop.f32.mrf.mxu0
        %1050 = vmatprep.mubr.f32.mxu0 0.0
        %1051 = vmatmul.mubr.f32.gmra.mxu0 %v947
        %v1052 = vpop.f32.mrf.mxu0
        %v1053 = vadd.f32 %v367, %v1052
        %v1054 = vpop.f32.mrf.mxu0
        %1055 = vmatprep.mubr.f32.mxu0 0.0
        %1056 = vmatmul.mubr.f32.gmra.mxu0 %v950
        %v1057 = vpop.f32.mrf.mxu0
        %v1058 = vadd.f32 %v367, %v1057
        %v1059 = vpop.f32.mrf.mxu0
        %1060 = vdwg.mxu0
        %v1061 = vsel %vm491, %v1043, -inf
        %1062 = vmax.xlane.f32.xlu0 %v1061
        %v1063 = vpop.xlane.xlu0 %1062
        %v1064 = vsel %vm491, %v1048, -inf
        %1065 = vmax.xlane.f32.xlu0 %v1064
        %v1066 = vpop.xlane.xlu0 %1065
        %v1067 = vsel %vm491, %v1053, -inf
        %1068 = vmax.xlane.f32.xlu0 %v1067
        %v1069 = vpop.xlane.xlu0 %1068
        %v1070 = vsel %vm491, %v1058, -inf
        %1071 = vmax.xlane.f32.xlu0 %v1070
        %v1072 = vpop.xlane.xlu0 %1071
        %v1073 = vsub.f32 %v1043, %v1063
        %v1074 = vsub.f32 %v1048, %v1066
        %v1075 = vsub.f32 %v1053, %v1069
        %v1076 = vsub.f32 %v1058, %v1072
        %v1077 = vmul.f32 %v1073, 1.442695
        %v1078 = vpow.pop %v1077
        %v1079 = vmul.f32 %v1074, 1.442695
        %v1080 = vpow.pop %v1079
        %v1081 = vmul.f32 %v1075, 1.442695
        %v1082 = vpow.pop %v1081
        %v1083 = vmul.f32 %v1076, 1.442695
        %v1084 = vpow.pop %v1083
        %v1085 = vsel %vm491, %v1078, 0.0
        %1086 = vadd.xlane.f32.xlu0 %v1085
        %v1087 = vpop.xlane.xlu0 %1086
        %v1088 = vsel %vm491, %v1080, 0.0
        %1089 = vadd.xlane.f32.xlu0 %v1088
        %v1090 = vpop.xlane.xlu0 %1089
        %v1091 = vsel %vm491, %v1082, 0.0
        %1092 = vadd.xlane.f32.xlu0 %v1091
        %v1093 = vpop.xlane.xlu0 %1092
        %v1094 = vsel %vm491, %v1084, 0.0
        %1095 = vadd.xlane.f32.xlu0 %v1094
        %v1096 = vpop.xlane.xlu0 %1095
        %v1097 = vrcp.pop %v1087
        %v1098 = vmul.f32 %v1078, %v1097
        %v1099 = vrcp.pop %v1090
        %v1100 = vmul.f32 %v1080, %v1099
        %v1101 = vrcp.pop %v1093
        %v1102 = vmul.f32 %v1082, %v1101
        %v1103 = vrcp.pop %v1096
        %v1104 = vmul.f32 %v1084, %v1103
        %s1105 = scalar_lea.vmem %s2, 128
        %v1106 = vld [vmem:[%s1105] sm:$0xff]
        %v1107 = vld [vmem:[%s1105 + $0x8] sm:$0xff]
        %v1108 = vld [vmem:[%s1105 + $0x10] sm:$0xff]
        %v1109 = vld [vmem:[%s1105 + $0x18] sm:$0xff]
        %v1110 = vld [vmem:[%s1105 + $0x20] sm:$0xff]
        %v1111 = vld [vmem:[%s1105 + $0x28] sm:$0xff]
        %v1112 = vld [vmem:[%s1105 + $0x30] sm:$0xff]
        %v1113 = vld [vmem:[%s1105 + $0x38] sm:$0xff]
        %v1115 = vsel %vm491, %v1098, 0
        %v1118 = vsel %vm491, %v1100, 0
        %v1121 = vsel %vm491, %v1102, 0
        %v1124 = vsel %vm491, %v1104, 0
        %1126 = vmatprep.subr.mxu0 0.0
        %1127 = vmatpush1.msra.mxu0 0.0
        %1128 = vmatprep.subr.mxu0 0.0
        %1129 = vmatpush1.msra.mxu0 0.0
        %1130 = vmatprep.subr.mxu0 0.0
        %1131 = vmatpush1.msra.mxu0 0.0
        %1132 = vmatprep.subr.mxu0 0.0
        %1133 = vmatpush1.msra.mxu0 0.0
        %1134 = vmatprep.subr.mxu0 0.0
        %1135 = vmatpush1.msra.mxu0 0.0
        %1136 = vmatprep.subr.mxu0 0.0
        %1137 = vmatpush1.msra.mxu0 0.0
        %1138 = vmatprep.subr.mxu0 0.0
        %1139 = vmatpush1.msra.mxu0 0.0
        %1140 = vmatprep.subr.mxu0 0.0
        %1141 = vmatpush1.msra.mxu0 0.0
        %1142 = vmatprep.subr.mxu0 0.0
        %1143 = vmatpush1.msra.mxu0 %v1113
        %1144 = vmatprep.subr.mxu0 0.0
        %1145 = vmatpush1.msra.mxu0 %v1112
        %1146 = vmatprep.subr.mxu0 0.0
        %1147 = vmatpush1.msra.mxu0 %v1111
        %1148 = vmatprep.subr.mxu0 0.0
        %1149 = vmatpush1.msra.mxu0 %v1110
        %1150 = vmatprep.subr.mxu0 0.0
        %1151 = vmatpush1.msra.mxu0 %v1109
        %1152 = vmatprep.subr.mxu0 0.0
        %1153 = vmatpush1.msra.mxu0 %v1108
        %1154 = vmatprep.subr.mxu0 0.0
        %1155 = vmatpush1.msra.mxu0 %v1107
        %1156 = vmatprep.subr.mxu0 0.0
        %1157 = vmatpush1.msra.mxu0 %v1106
        %1158 = vmatprep.subr.mxu0 0.0
        %1159 = vmatpush2.msra.mxu0 0.0
        %1160 = vmatprep.subr.mxu0 0.0
        %1161 = vmatpush2.msra.mxu0 0.0
        %1162 = vmatprep.subr.mxu0 0.0
        %1163 = vmatpush2.msra.mxu0 0.0
        %1164 = vmatprep.subr.mxu0 0.0
        %1165 = vmatpush2.msra.mxu0 0.0
        %1166 = vmatprep.subr.mxu0 0.0
        %1167 = vmatpush2.msra.mxu0 0.0
        %1168 = vmatprep.subr.mxu0 0.0
        %1169 = vmatpush2.msra.mxu0 0.0
        %1170 = vmatprep.subr.mxu0 0.0
        %1171 = vmatpush2.msra.mxu0 0.0
        %1172 = vmatprep.subr.mxu0 0.0
        %1173 = vmatpush2.msra.mxu0 0.0
        %1174 = vmatprep.subr.mxu0 0.0
        %1175 = vmatpush2.msra.mxu0 0.0
        %1176 = vmatprep.subr.mxu0 0.0
        %1177 = vmatpush2.msra.mxu0 0.0
        %1178 = vmatprep.subr.mxu0 0.0
        %1179 = vmatpush2.msra.mxu0 0.0
        %1180 = vmatprep.subr.mxu0 0.0
        %1181 = vmatpush2.msra.mxu0 0.0
        %1182 = vmatprep.subr.mxu0 0.0
        %1183 = vmatpush2.msra.mxu0 0.0
        %1184 = vmatprep.subr.mxu0 0.0
        %1185 = vmatpush2.msra.mxu0 0.0
        %1186 = vmatprep.subr.mxu0 0.0
        %1187 = vmatpush2.msra.mxu0 0.0
        %1188 = vmatprep.subr.mxu0 0.0
        %1189 = vmatpush2.msra.mxu0 0.0
        %1190 = vmatprep.mubr.f32.mxu0 0.0
        %1191 = vmatmul.mubr.f32.gmra.mxu0 %v1115
        %v1192 = vpop.f32.mrf.mxu0
        %v1193 = vadd.f32 0.0, %v1192
        %v1194 = vpop.f32.mrf.mxu0
        %1195 = vmatprep.mubr.f32.mxu0 0.0
        %1196 = vmatmul.mubr.f32.gmra.mxu0 %v1118
        %v1197 = vpop.f32.mrf.mxu0
        %v1198 = vadd.f32 0.0, %v1197
        %v1199 = vpop.f32.mrf.mxu0
        %1200 = vmatprep.mubr.f32.mxu0 0.0
        %1201 = vmatmul.mubr.f32.gmra.mxu0 %v1121
        %v1202 = vpop.f32.mrf.mxu0
        %v1203 = vadd.f32 0.0, %v1202
        %v1204 = vpop.f32.mrf.mxu0
        %1205 = vmatprep.mubr.f32.mxu0 0.0
        %1206 = vmatmul.mubr.f32.gmra.mxu0 %v1124
        %v1207 = vpop.f32.mrf.mxu0
        %v1208 = vadd.f32 0.0, %v1207
        %v1209 = vpop.f32.mrf.mxu0
        %1210 = vdwg.mxu0
        %v1211 = vadd.f32 %v908, %v1193
        %v1212 = vadd.f32 %v913, %v1198
        %v1213 = vadd.f32 %v918, %v1203
        %v1214 = vadd.f32 %v923, %v1208
        %s1215 = scalar_lea.vmem %s316, 96 [#allocation2]
        %v1216 = vld [vmem:[%s1215] sm:$0xff]
        %v1217 = vld [vmem:[%s1215 + $0x8] sm:$0xff]
        %v1218 = vld [vmem:[%s1215 + $0x10] sm:$0xff]
        %v1219 = vld [vmem:[%s1215 + $0x18] sm:$0xff]
        %s1220 = scalar_lea.vmem %s1, 192
        %v1221 = vld [vmem:[%s1220] sm:$0xff]
        %v1222 = vld [vmem:[%s1220 + $0x8] sm:$0xff]
        %v1223 = vld [vmem:[%s1220 + $0x10] sm:$0xff]
        %v1224 = vld [vmem:[%s1220 + $0x18] sm:$0xff]
        %v1225 = vld [vmem:[%s1220 + $0x20] sm:$0xff]
        %v1226 = vld [vmem:[%s1220 + $0x28] sm:$0xff]
        %v1227 = vld [vmem:[%s1220 + $0x30] sm:$0xff]
        %v1228 = vld [vmem:[%s1220 + $0x38] sm:$0xff]
        %v1230 = vsel %vm369, %v1216, 0
        %v1233 = vsel %vm369, %v1217, 0
        %v1236 = vsel %vm369, %v1218, 0
        %v1239 = vsel %vm369, %v1219, 0
        %v1242 = vsel %vm369, %v1221, 0
        %v1245 = vsel %vm369, %v1222, 0
        %v1248 = vsel %vm369, %v1223, 0
        %v1251 = vsel %vm369, %v1224, 0
        %v1254 = vsel %vm369, %v1225, 0
        %v1257 = vsel %vm369, %v1226, 0
        %v1260 = vsel %vm369, %v1227, 0
        %v1263 = vsel %vm369, %v1228, 0
        %1265 = vmatprep.subr.mxu0 0.0
        %1266 = vmatpush1.xpose.msra.mxu0 0.0
        %1267 = vmatprep.subr.mxu0 0.0
        %1268 = vmatpush1.xpose.msra.mxu0 0.0
        %1269 = vmatprep.subr.mxu0 0.0
        %1270 = vmatpush1.xpose.msra.mxu0 0.0
        %1271 = vmatprep.subr.mxu0 0.0
        %1272 = vmatpush1.xpose.msra.mxu0 0.0
        %1273 = vmatprep.subr.mxu0 0.0
        %1274 = vmatpush1.xpose.msra.mxu0 0.0
        %1275 = vmatprep.subr.mxu0 0.0
        %1276 = vmatpush1.xpose.msra.mxu0 0.0
        %1277 = vmatprep.subr.mxu0 0.0
        %1278 = vmatpush1.xpose.msra.mxu0 0.0
        %1279 = vmatprep.subr.mxu0 0.0
        %1280 = vmatpush1.xpose.msra.mxu0 0.0
        %1281 = vmatprep.subr.mxu0 0.0
        %1282 = vmatpush1.xpose.msra.mxu0 %v1263
        %1283 = vmatprep.subr.mxu0 0.0
        %1284 = vmatpush1.xpose.msra.mxu0 %v1260
        %1285 = vmatprep.subr.mxu0 0.0
        %1286 = vmatpush1.xpose.msra.mxu0 %v1257
        %1287 = vmatprep.subr.mxu0 0.0
        %1288 = vmatpush1.xpose.msra.mxu0 %v1254
        %1289 = vmatprep.subr.mxu0 0.0
        %1290 = vmatpush1.xpose.msra.mxu0 %v1251
        %1291 = vmatprep.subr.mxu0 0.0
        %1292 = vmatpush1.xpose.msra.mxu0 %v1248
        %1293 = vmatprep.subr.mxu0 0.0
        %1294 = vmatpush1.xpose.msra.mxu0 %v1245
        %1295 = vmatprep.subr.mxu0 0.0
        %1296 = vmatpush1.xpose.msra.mxu0 %v1242
        %1297 = vmatprep.subr.mxu0 0.0
        %1298 = vmatpush2.xpose.msra.mxu0 0.0
        %1299 = vmatprep.subr.mxu0 0.0
        %1300 = vmatpush2.xpose.msra.mxu0 0.0
        %1301 = vmatprep.subr.mxu0 0.0
        %1302 = vmatpush2.xpose.msra.mxu0 0.0
        %1303 = vmatprep.subr.mxu0 0.0
        %1304 = vmatpush2.xpose.msra.mxu0 0.0
        %1305 = vmatprep.subr.mxu0 0.0
        %1306 = vmatpush2.xpose.msra.mxu0 0.0
        %1307 = vmatprep.subr.mxu0 0.0
        %1308 = vmatpush2.xpose.msra.mxu0 0.0
        %1309 = vmatprep.subr.mxu0 0.0
        %1310 = vmatpush2.xpose.msra.mxu0 0.0
        %1311 = vmatprep.subr.mxu0 0.0
        %1312 = vmatpush2.xpose.msra.mxu0 0.0
        %1313 = vmatprep.subr.mxu0 0.0
        %1314 = vmatpush2.xpose.msra.mxu0 0.0
        %1315 = vmatprep.subr.mxu0 0.0
        %1316 = vmatpush2.xpose.msra.mxu0 0.0
        %1317 = vmatprep.subr.mxu0 0.0
        %1318 = vmatpush2.xpose.msra.mxu0 0.0
        %1319 = vmatprep.subr.mxu0 0.0
        %1320 = vmatpush2.xpose.msra.mxu0 0.0
        %1321 = vmatprep.subr.mxu0 0.0
        %1322 = vmatpush2.xpose.msra.mxu0 0.0
        %1323 = vmatprep.subr.mxu0 0.0
        %1324 = vmatpush2.xpose.msra.mxu0 0.0
        %1325 = vmatprep.subr.mxu0 0.0
        %1326 = vmatpush2.xpose.msra.mxu0 0.0
        %1327 = vmatprep.subr.mxu0 0.0
        %1328 = vmatpush2.xpose.msra.mxu0 0.0
        %1329 = vmatprep.mubr.f32.mxu0 0.0
        %1330 = vmatmul.mubr.f32.gmra.mxu0 %v1230
        %v1331 = vpop.f32.mrf.mxu0
        %v1332 = vadd.f32 %v367, %v1331
        %v1333 = vpop.f32.mrf.mxu0
        %1334 = vmatprep.mubr.f32.mxu0 0.0
        %1335 = vmatmul.mubr.f32.gmra.mxu0 %v1233
        %v1336 = vpop.f32.mrf.mxu0
        %v1337 = vadd.f32 %v367, %v1336
        %v1338 = vpop.f32.mrf.mxu0
        %1339 = vmatprep.mubr.f32.mxu0 0.0
        %1340 = vmatmul.mubr.f32.gmra.mxu0 %v1236
        %v1341 = vpop.f32.mrf.mxu0
        %v1342 = vadd.f32 %v367, %v1341
        %v1343 = vpop.f32.mrf.mxu0
        %1344 = vmatprep.mubr.f32.mxu0 0.0
        %1345 = vmatmul.mubr.f32.gmra.mxu0 %v1239
        %v1346 = vpop.f32.mrf.mxu0
        %v1347 = vadd.f32 %v367, %v1346
        %v1348 = vpop.f32.mrf.mxu0
        %1349 = vdwg.mxu0
        %v1350 = vsel %vm491, %v1332, -inf
        %1351 = vmax.xlane.f32.xlu0 %v1350
        %v1352 = vpop.xlane.xlu0 %1351
        %v1353 = vsel %vm491, %v1337, -inf
        %1354 = vmax.xlane.f32.xlu0 %v1353
        %v1355 = vpop.xlane.xlu0 %1354
        %v1356 = vsel %vm491, %v1342, -inf
        %1357 = vmax.xlane.f32.xlu0 %v1356
        %v1358 = vpop.xlane.xlu0 %1357
        %v1359 = vsel %vm491, %v1347, -inf
        %1360 = vmax.xlane.f32.xlu0 %v1359
        %v1361 = vpop.xlane.xlu0 %1360
        %v1362 = vsub.f32 %v1332, %v1352
        %v1363 = vsub.f32 %v1337, %v1355
        %v1364 = vsub.f32 %v1342, %v1358
        %v1365 = vsub.f32 %v1347, %v1361
        %v1366 = vmul.f32 %v1362, 1.442695
        %v1367 = vpow.pop %v1366
        %v1368 = vmul.f32 %v1363, 1.442695
        %v1369 = vpow.pop %v1368
        %v1370 = vmul.f32 %v1364, 1.442695
        %v1371 = vpow.pop %v1370
        %v1372 = vmul.f32 %v1365, 1.442695
        %v1373 = vpow.pop %v1372
        %v1374 = vsel %vm491, %v1367, 0.0
        %1375 = vadd.xlane.f32.xlu0 %v1374
        %v1376 = vpop.xlane.xlu0 %1375
        %v1377 = vsel %vm491, %v1369, 0.0
        %1378 = vadd.xlane.f32.xlu0 %v1377
        %v1379 = vpop.xlane.xlu0 %1378
        %v1380 = vsel %vm491, %v1371, 0.0
        %1381 = vadd.xlane.f32.xlu0 %v1380
        %v1382 = vpop.xlane.xlu0 %1381
        %v1383 = vsel %vm491, %v1373, 0.0
        %1384 = vadd.xlane.f32.xlu0 %v1383
        %v1385 = vpop.xlane.xlu0 %1384
        %v1386 = vrcp.pop %v1376
        %v1387 = vmul.f32 %v1367, %v1386
        %v1388 = vrcp.pop %v1379
        %v1389 = vmul.f32 %v1369, %v1388
        %v1390 = vrcp.pop %v1382
        %v1391 = vmul.f32 %v1371, %v1390
        %v1392 = vrcp.pop %v1385
        %v1393 = vmul.f32 %v1373, %v1392
        %s1394 = scalar_lea.vmem %s2, 192
        %v1395 = vld [vmem:[%s1394] sm:$0xff]
        %v1396 = vld [vmem:[%s1394 + $0x8] sm:$0xff]
        %v1397 = vld [vmem:[%s1394 + $0x10] sm:$0xff]
        %v1398 = vld [vmem:[%s1394 + $0x18] sm:$0xff]
        %v1399 = vld [vmem:[%s1394 + $0x20] sm:$0xff]
        %v1400 = vld [vmem:[%s1394 + $0x28] sm:$0xff]
        %v1401 = vld [vmem:[%s1394 + $0x30] sm:$0xff]
        %v1402 = vld [vmem:[%s1394 + $0x38] sm:$0xff]
        %v1404 = vsel %vm491, %v1387, 0
        %v1407 = vsel %vm491, %v1389, 0
        %v1410 = vsel %vm491, %v1391, 0
        %v1413 = vsel %vm491, %v1393, 0
        %1415 = vmatprep.subr.mxu0 0.0
        %1416 = vmatpush1.msra.mxu0 0.0
        %1417 = vmatprep.subr.mxu0 0.0
        %1418 = vmatpush1.msra.mxu0 0.0
        %1419 = vmatprep.subr.mxu0 0.0
        %1420 = vmatpush1.msra.mxu0 0.0
        %1421 = vmatprep.subr.mxu0 0.0
        %1422 = vmatpush1.msra.mxu0 0.0
        %1423 = vmatprep.subr.mxu0 0.0
        %1424 = vmatpush1.msra.mxu0 0.0
        %1425 = vmatprep.subr.mxu0 0.0
        %1426 = vmatpush1.msra.mxu0 0.0
        %1427 = vmatprep.subr.mxu0 0.0
        %1428 = vmatpush1.msra.mxu0 0.0
        %1429 = vmatprep.subr.mxu0 0.0
        %1430 = vmatpush1.msra.mxu0 0.0
        %1431 = vmatprep.subr.mxu0 0.0
        %1432 = vmatpush1.msra.mxu0 %v1402
        %1433 = vmatprep.subr.mxu0 0.0
        %1434 = vmatpush1.msra.mxu0 %v1401
        %1435 = vmatprep.subr.mxu0 0.0
        %1436 = vmatpush1.msra.mxu0 %v1400
        %1437 = vmatprep.subr.mxu0 0.0
        %1438 = vmatpush1.msra.mxu0 %v1399
        %1439 = vmatprep.subr.mxu0 0.0
        %1440 = vmatpush1.msra.mxu0 %v1398
        %1441 = vmatprep.subr.mxu0 0.0
        %1442 = vmatpush1.msra.mxu0 %v1397
        %1443 = vmatprep.subr.mxu0 0.0
        %1444 = vmatpush1.msra.mxu0 %v1396
        %1445 = vmatprep.subr.mxu0 0.0
        %1446 = vmatpush1.msra.mxu0 %v1395
        %1447 = vmatprep.subr.mxu0 0.0
        %1448 = vmatpush2.msra.mxu0 0.0
        %1449 = vmatprep.subr.mxu0 0.0
        %1450 = vmatpush2.msra.mxu0 0.0
        %1451 = vmatprep.subr.mxu0 0.0
        %1452 = vmatpush2.msra.mxu0 0.0
        %1453 = vmatprep.subr.mxu0 0.0
        %1454 = vmatpush2.msra.mxu0 0.0
        %1455 = vmatprep.subr.mxu0 0.0
        %1456 = vmatpush2.msra.mxu0 0.0
        %1457 = vmatprep.subr.mxu0 0.0
        %1458 = vmatpush2.msra.mxu0 0.0
        %1459 = vmatprep.subr.mxu0 0.0
        %1460 = vmatpush2.msra.mxu0 0.0
        %1461 = vmatprep.subr.mxu0 0.0
        %1462 = vmatpush2.msra.mxu0 0.0
        %1463 = vmatprep.subr.mxu0 0.0
        %1464 = vmatpush2.msra.mxu0 0.0
        %1465 = vmatprep.subr.mxu0 0.0
        %1466 = vmatpush2.msra.mxu0 0.0
        %1467 = vmatprep.subr.mxu0 0.0
        %1468 = vmatpush2.msra.mxu0 0.0
        %1469 = vmatprep.subr.mxu0 0.0
        %1470 = vmatpush2.msra.mxu0 0.0
        %1471 = vmatprep.subr.mxu0 0.0
        %1472 = vmatpush2.msra.mxu0 0.0
        %1473 = vmatprep.subr.mxu0 0.0
        %1474 = vmatpush2.msra.mxu0 0.0
        %1475 = vmatprep.subr.mxu0 0.0
        %1476 = vmatpush2.msra.mxu0 0.0
        %1477 = vmatprep.subr.mxu0 0.0
        %1478 = vmatpush2.msra.mxu0 0.0
        %1479 = vmatprep.mubr.f32.mxu0 0.0
        %1480 = vmatmul.mubr.f32.gmra.mxu0 %v1404
        %v1481 = vpop.f32.mrf.mxu0
        %v1482 = vadd.f32 0.0, %v1481
        %v1483 = vpop.f32.mrf.mxu0
        %1484 = vmatprep.mubr.f32.mxu0 0.0
        %1485 = vmatmul.mubr.f32.gmra.mxu0 %v1407
        %v1486 = vpop.f32.mrf.mxu0
        %v1487 = vadd.f32 0.0, %v1486
        %v1488 = vpop.f32.mrf.mxu0
        %1489 = vmatprep.mubr.f32.mxu0 0.0
        %1490 = vmatmul.mubr.f32.gmra.mxu0 %v1410
        %v1491 = vpop.f32.mrf.mxu0
        %v1492 = vadd.f32 0.0, %v1491
        %v1493 = vpop.f32.mrf.mxu0
        %1494 = vmatprep.mubr.f32.mxu0 0.0
        %1495 = vmatmul.mubr.f32.gmra.mxu0 %v1413
        %v1496 = vpop.f32.mrf.mxu0
        %v1497 = vadd.f32 0.0, %v1496
        %v1498 = vpop.f32.mrf.mxu0
        %1499 = vdwg.mxu0
        %v1500 = vadd.f32 %v1211, %v1482
        %v1501 = vadd.f32 %v1212, %v1487
        %v1502 = vadd.f32 %v1213, %v1492
        %v1503 = vadd.f32 %v1214, %v1497
        %v1504 = vmul.f32 %v1500, 0.25
        %v1505 = vmul.f32 %v1501, 0.25
        %v1506 = vmul.f32 %v1502, 0.25
        %v1507 = vmul.f32 %v1503, 0.25
        %v1508 = vld [vmem:[%s4] sm:$0xff]
        %v1509 = vld [vmem:[%s4 + $0x8] sm:$0xff]
        %v1510 = vld [vmem:[%s5] sm:$0x1]
        %v1512 = vlaneseq
        %v1513 = vshrl.u32 %v1512, 7
        %v1514 = vsub.s32 0, %v1513
        %v1515 = vrot.slane %v1510, %v1514
        %vm1517 = vcmask 130048
        %v1519 = vsel %vm1517, %v1504, 0
        %v1522 = vsel %vm1517, %v1505, 0
        %v1525 = vsel %vm1517, %v1506, 0
        %v1528 = vsel %vm1517, %v1507, 0
        %1530 = vmatprep.subr.mxu0 0.0
        %1531 = vmatpush1.msra.mxu0 0.0
        %1532 = vmatprep.subr.mxu0 0.0
        %1533 = vmatpush1.msra.mxu0 0.0
        %1534 = vmatprep.subr.mxu0 0.0
        %1535 = vmatpush1.msra.mxu0 0.0
        %1536 = vmatprep.subr.mxu0 0.0
        %1537 = vmatpush1.msra.mxu0 0.0
        %1538 = vmatprep.subr.mxu0 0.0
        %1539 = vmatpush1.msra.mxu0 0.0
        %1540 = vmatprep.subr.mxu0 0.0
        %1541 = vmatpush1.msra.mxu0 0.0
        %1542 = vmatprep.subr.mxu0 0.0
        %1543 = vmatpush1.msra.mxu0 0.0
        %1544 = vmatprep.subr.mxu0 0.0
        %1545 = vmatpush1.msra.mxu0 0.0
        %1546 = vmatprep.subr.mxu0 0.0
        %1547 = vmatpush1.msra.mxu0 0.0
        %1548 = vmatprep.subr.mxu0 0.0
        %1549 = vmatpush1.msra.mxu0 0.0
        %1550 = vmatprep.subr.mxu0 0.0
        %1551 = vmatpush1.msra.mxu0 0.0
        %1552 = vmatprep.subr.mxu0 0.0
        %1553 = vmatpush1.msra.mxu0 0.0
        %1554 = vmatprep.subr.mxu0 0.0
        %1555 = vmatpush1.msra.mxu0 0.0
        %1556 = vmatprep.subr.mxu0 0.0
        %1557 = vmatpush1.msra.mxu0 0.0
        %1558 = vmatprep.subr.mxu0 0.0
        %1559 = vmatpush1.msra.mxu0 %v1509
        %1560 = vmatprep.subr.mxu0 0.0
        %1561 = vmatpush1.msra.mxu0 %v1508
        %1562 = vmatprep.subr.mxu0 0.0
        %1563 = vmatpush2.msra.mxu0 0.0
        %1564 = vmatprep.subr.mxu0 0.0
        %1565 = vmatpush2.msra.mxu0 0.0
        %1566 = vmatprep.subr.mxu0 0.0
        %1567 = vmatpush2.msra.mxu0 0.0
        %1568 = vmatprep.subr.mxu0 0.0
        %1569 = vmatpush2.msra.mxu0 0.0
        %1570 = vmatprep.subr.mxu0 0.0
        %1571 = vmatpush2.msra.mxu0 0.0
        %1572 = vmatprep.subr.mxu0 0.0
        %1573 = vmatpush2.msra.mxu0 0.0
        %1574 = vmatprep.subr.mxu0 0.0
        %1575 = vmatpush2.msra.mxu0 0.0
        %1576 = vmatprep.subr.mxu0 0.0
        %1577 = vmatpush2.msra.mxu0 0.0
        %1578 = vmatprep.subr.mxu0 0.0
        %1579 = vmatpush2.msra.mxu0 0.0
        %1580 = vmatprep.subr.mxu0 0.0
        %1581 = vmatpush2.msra.mxu0 0.0
        %1582 = vmatprep.subr.mxu0 0.0
        %1583 = vmatpush2.msra.mxu0 0.0
        %1584 = vmatprep.subr.mxu0 0.0
        %1585 = vmatpush2.msra.mxu0 0.0
        %1586 = vmatprep.subr.mxu0 0.0
        %1587 = vmatpush2.msra.mxu0 0.0
        %1588 = vmatprep.subr.mxu0 0.0
        %1589 = vmatpush2.msra.mxu0 0.0
        %1590 = vmatprep.subr.mxu0 0.0
        %1591 = vmatpush2.msra.mxu0 0.0
        %1592 = vmatprep.subr.mxu0 0.0
        %1593 = vmatpush2.msra.mxu0 0.0
        %1594 = vmatprep.mubr.f32.mxu0 0.0
        %1595 = vmatmul.mubr.f32.gmra.mxu0 %v1519
        %v1596 = vpop.f32.mrf.mxu0
        %v1597 = vadd.f32 %v1515, %v1596
        %v1598 = vpop.f32.mrf.mxu0
        %1599 = vmatprep.mubr.f32.mxu0 0.0
        %1600 = vmatmul.mubr.f32.gmra.mxu0 %v1522
        %v1601 = vpop.f32.mrf.mxu0
        %v1602 = vadd.f32 %v1515, %v1601
        %v1603 = vpop.f32.mrf.mxu0
        %1604 = vmatprep.mubr.f32.mxu0 0.0
        %1605 = vmatmul.mubr.f32.gmra.mxu0 %v1525
        %v1606 = vpop.f32.mrf.mxu0
        %v1607 = vadd.f32 %v1515, %v1606
        %v1608 = vpop.f32.mrf.mxu0
        %1609 = vmatprep.mubr.f32.mxu0 0.0
        %1610 = vmatmul.mubr.f32.gmra.mxu0 %v1528
        %v1611 = vpop.f32.mrf.mxu0
        %v1612 = vadd.f32 %v1515, %v1611
        %v1613 = vpop.f32.mrf.mxu0
        %1614 = vdwg.mxu0
        %1615 = vst.msk [vmem:[%s348] sm:$0xff] %vm1517, %v1597
        %1616 = vst.msk [vmem:[%s348 + $0x8] sm:$0xff] %vm1517, %v1602
        %1617 = vst.msk [vmem:[%s348 + $0x10] sm:$0xff] %vm1517, %v1607
        %1618 = vst.msk [vmem:[%s348 + $0x18] sm:$0xff] %vm1517, %v1612
        %s1619 = smul.u32 4, %s17
        %p1620 = scmp.lt.s32.totalorder %s1619, 7
        %s1621 = scalar_select %p1620, %s1619, 7
        %s1622 = smul.addr %s1621, 8
        %s1623 = scalar_lea.vmem %s6, %s1622
        // Predicated region
        $region83: #{graph_attention_layer.3} parent=77 // pred_check
          %p1624 = pneg %p166
        $region84: #{graph_attention_layer.3} parent=77 // pred_check_branch
          %1626 = sbr.rel (%p1624) target = $region86
        $region85: #{graph_attention_layer.3} parent=77 // pred_region
          %s1627 = smul.u32 4, %s17
        $region86: #{graph_attention_layer.3} parent=77 // pred_fallthru
          _
      $region78: #{graph_attention_layer.3} parent=5 // pred_fallthru
        _
      %p1628 = scmp.le.s32.totalorder 2, %s12
      // Predicated region
      $region87: #{graph_attention_layer.3} parent=5 // pred_check
        %p1629 = pneg %p1628
      $region88: #{graph_attention_layer.3} parent=5 // pred_check_branch
        %1631 = sbr.rel (%p1629) target = $region90
      $region89: #{graph_attention_layer.3} parent=5 // pred_region
        %s1632 = ssub.s32 %s12, 2
        // Predicated region
        $region91: #{graph_attention_layer.3} parent=89 // pred_check
          %p1633 = pneg %p172
        $region92: #{graph_attention_layer.3} parent=89 // pred_check_branch
          %1635 = sbr.rel (%p1633) target = $region94
        $region93: #{graph_attention_layer.3} parent=89 // pred_region
          %s1636 = smul.u32 4, %s18
          %p1637 = scmp.lt.s32.totalorder %s1636, 7
          %s1638 = scalar_select %p1637, %s1636, 7
          %s1639 = smul.addr %s1638, 8
          %s1640 = scalar_lea.vmem %s6, %s1639
        $region94: #{graph_attention_layer.3} parent=89 // pred_fallthru
          _
      $region90: #{graph_attention_layer.3} parent=5 // pred_fallthru
        _
    $region6: #{graph_attention_layer.3} parent=1 // loop_footer
      %s16 = sadd.s32 1, %s12
    $region7: #{graph_attention_layer.3} parent=1 // loop_footer_branch
      %11 = sbr.rel target = $region3
    $region8: #{graph_attention_layer.3} parent=1 // loop_exit
      _

</llo_original>
